<compile_context>
chip_gen: v6e
topology: v6e:2x2x1
jax: 0.10.0
libtpu: 0.0.40
codegen_flags: <defaults>
</compile_context>

<pallas_src>
import numpy as np
import jax
import jax.numpy as jnp
from jax.experimental import pallas as pl
from jax.experimental.pallas import tpu as pltpu

# --- configuration (mirrors MAF(n_blocks, in_dim, hidden_layer, n_nodes, cond_dim)) ---
N_BLOCKS = 2        # n_blocks
IN_DIM = 4          # in_dim       (event dim)
HIDDEN_LAYER = 1    # hidden_layer (# hidden masked layers inside each MADE)
N_NODES = 32        # n_nodes      (MADE hidden width)
COND_DIM = 6        # cond_dim
BATCH = 512         # demo batch (multiple of TILE_B so the grid has >1 tile)
TILE_B = 256        # batch rows / tile: fills the 256x256 MXU on v6e/v7x; use 128 on v5e
BN_EPS = 1e-5       # flow BatchNorm eps


def _create_masks_sequential(input_size, hidden_size, n_hidden, input_degrees=None):
    """NumPy port of MADE's create_masks (input_order='sequential')."""
    degrees = []
    degrees.append(np.arange(input_size) if input_degrees is None
                   else np.asarray(input_degrees, dtype=np.int64))
    for _ in range(n_hidden + 1):
        degrees.append(np.arange(hidden_size) % (input_size - 1))
    if input_degrees is None:
        degrees.append(np.arange(input_size) % input_size - 1)
    else:
        degrees.append(np.asarray(input_degrees, dtype=np.int64) % input_size - 1)
    masks = []
    for d0, d1 in zip(degrees[:-1], degrees[1:]):
        masks.append((d1[:, None] >= d0[None, :]).astype(np.float32))
    return masks, degrees[0]


# --------------------------------------------------------------------------
# Kernel 1: (previous block's BatchNorm as a fused affine) + MADE + partial
#           BatchNorm statistics for this block's output.  Grid = batch tiles.
# --------------------------------------------------------------------------
def made_block_kernel(act_ref, ladj_ref, scale_ref, shift_ref,
                      w_in_ref, b0_ref, wht_ref, bh_ref,
                      wot_m_ref, bo_m_ref, wot_loga_ref, bo_loga_ref,
                      act_out_ref, ladj_out_ref, s1_ref, m2_ref):
    D = IN_DIM
    # Previous block's BatchNorm as a precomputed affine (identity for block 0);
    # cond lanes carry an identity affine so the whole packed slab is one FMA.
    xc = act_ref[...] * scale_ref[...] + shift_ref[...]          # (TB, D+C)
    x = xc[:, :D]                                                # (TB, D)

    # MADE: weights pre-masked / pre-transposed; fused [x|cond] input matmul.
    h = jnp.dot(xc, w_in_ref[...], preferred_element_type=jnp.float32) + b0_ref[...]
    for l in range(HIDDEN_LAYER):                                # static unroll
        h = jnp.maximum(h, 0.0)
        h = jnp.dot(h, wht_ref[l], preferred_element_type=jnp.float32) + bh_ref[l]
    h = jnp.maximum(h, 0.0)
    # TODO(synk): re-merging wot_m / wot_loga into one (H, 2D) matmul trades an
    # MXU push for an XLU lane split; only worth it if the bundle dump shows
    # MXU pops on the critical path (review micro-opt, measure first).
    m = jnp.dot(h, wot_m_ref[...], preferred_element_type=jnp.float32) + bo_m_ref[...]
    loga = jnp.dot(h, wot_loga_ref[...], preferred_element_type=jnp.float32) + bo_loga_ref[...]

    y = (x - m) * jnp.exp(-loga)                                 # MAF eq. 4
    # Packed slab out: cond lanes pass through, x lanes refreshed with y
    # (masked sub-store, no in-kernel lane concat).
    act_out_ref[...] = xc
    act_out_ref[:, :D] = y
    ladj_out_ref[...] = ladj_ref[...] - loga                     # MAF eq. 5

    # Per-tile *centered* BatchNorm partial statistics; combined across tiles
    # in the wrapper with Chan's formula -> exact full-batch mean / var.
    inv_tb = 1.0 / y.shape[0]
    s1 = jnp.sum(y, axis=0, keepdims=True)                       # (1, D) tile sum
    d0 = y - s1 * inv_tb
    m2 = jnp.sum(d0 * d0, axis=0, keepdims=True)                 # (1, D) centered SS
    s1_ref[...] = jnp.broadcast_to(s1, s1_ref.shape)
    m2_ref[...] = jnp.broadcast_to(m2, m2_ref.shape)


# --------------------------------------------------------------------------
# Kernel 2: final block's BatchNorm affine + sum_ladj finalize.
# --------------------------------------------------------------------------
def bn_finalize_kernel(act_ref, ladj_ref, scale_ref, shift_ref, bn_ladj_ref,
                       u_ref, sladj_ref):
    x = act_ref[...][:, :IN_DIM]
    u_ref[...] = x * scale_ref[...] + shift_ref[...]
    sladj_ref[...] = ladj_ref[...] + bn_ladj_ref[...]


def _resident(shape):
    """Full-array BlockSpec with a constant index_map -> stays VMEM-resident."""
    zeros = (0,) * len(shape)
    return pl.BlockSpec(shape, lambda i: zeros)


def maf_forward(x, cond, params, tile_b=TILE_B):
    B, D = x.shape
    C = cond.shape[1]
    W = D + C
    H = params["w_in"].shape[-1]
    L = params["wht"].shape[1]
    tile_b = min(tile_b, B)
    assert B % tile_b == 0, "batch must be divisible by the batch tile"
    n_tiles = B // tile_b
    f32 = jnp.float32

    # Batch-tiled activation streams; stats blocks are per-tile (last two dims
    # (8, D) satisfy the (8,128)/full-dim block constraint).
    act_spec = pl.BlockSpec((tile_b, W), lambda i: (i, 0))
    vecd_spec = pl.BlockSpec((tile_b, D), lambda i: (i, 0))
    stats_spec = pl.BlockSpec((1, 8, D), lambda i: (i, 0, 0))
    comp = pltpu.CompilerParams(dimension_semantics=("parallel",))

    made_call = pl.pallas_call(
        made_block_kernel,
        grid=(n_tiles,),
        in_specs=[act_spec, vecd_spec,
                  _resident((1, W)), _resident((1, W)),
                  _resident((W, H)), _resident((1, H)),
                  _resident((L, H, H)), _resident((L, 1, H)),
                  _resident((H, D)), _resident((1, D)),
                  _resident((H, D)), _resident((1, D))],
        out_specs=(act_spec, vecd_spec, stats_spec, stats_spec),
        out_shape=(jax.ShapeDtypeStruct((B, W), f32),
                   jax.ShapeDtypeStruct((B, D), f32),
                   jax.ShapeDtypeStruct((n_tiles, 8, D), f32),
                   jax.ShapeDtypeStruct((n_tiles, 8, D), f32)),
        compiler_params=comp,
    )

    bn_call = pl.pallas_call(
        bn_finalize_kernel,
        grid=(n_tiles,),
        in_specs=[act_spec, vecd_spec,
                  _resident((1, D)), _resident((1, D)), _resident((1, D))],
        out_specs=(vecd_spec, vecd_spec),
        out_shape=(jax.ShapeDtypeStruct((B, D), f32),
                   jax.ShapeDtypeStruct((B, D), f32)),
        compiler_params=comp,
    )

    # TODO(synk): when the activation stream becomes HBM-bound at scale, store
    # act / ladj in bf16 between blocks and cast to f32 inside the kernels.
    act = jnp.concatenate([x, cond], axis=1)          # packed [x | cond] once
    ladj = jnp.zeros((B, D), f32)
    scale = jnp.ones((1, W), f32)                     # identity affine for block 0
    shift = jnp.zeros((1, W), f32)
    bn_ladj = jnp.zeros((1, D), f32)
    scale_d = jnp.ones((1, D), f32)
    shift_d = jnp.zeros((1, D), f32)

    for blk in range(N_BLOCKS):
        act, ladj, s1p, m2p = made_call(
            act, ladj, scale, shift,
            params["w_in"][blk], params["b0"][blk],
            params["wht"][blk], params["bh"][blk],
            params["wot_m"][blk], params["bo_m"][blk],
            params["wot_loga"][blk], params["bo_loga"][blk])

        # --- tiny cross-tile combine of the BN statistics (Chan's formula) ---
        s1 = s1p[:, 0, :]                             # (n_tiles, D) per-tile sums
        m2 = m2p[:, 0, :]                             # per-tile centered SS
        mean = jnp.sum(s1, axis=0, keepdims=True) / B
        tile_mean = s1 / tile_b
        m2_tot = jnp.sum(m2 + tile_b * (tile_mean - mean) ** 2,
                         axis=0, keepdims=True)
        var = m2_tot / (B - 1)                        # unbiased, like torch x.var(0)
        inv_std = jax.lax.rsqrt(var + BN_EPS)
        lg = params["log_gamma"][blk]                 # (1, D)
        scale_d = jnp.exp(lg) * inv_std
        shift_d = params["beta"][blk] - mean * scale_d
        bn_ladj = bn_ladj + lg - 0.5 * jnp.log(var + BN_EPS)
        # Fold this block's BN into the next kernel's input affine; cond lanes
        # get an identity affine so the packed slab is normalized in one FMA.
        scale = jnp.concatenate([scale_d, jnp.ones((1, C), f32)], axis=1)
        shift = jnp.concatenate([shift_d, jnp.zeros((1, C), f32)], axis=1)
        # TODO(synk): running_mean / running_var EMA buffer updates are a
        # host-side training side effect; forward math uses batch stats only.

    # Final block's BatchNorm + ladj finalize: two separate lane-0-aligned
    # outputs (no packed output slab, no epilogue concat).
    u, sum_ladj = bn_call(act, ladj, scale_d, shift_d, bn_ladj)
    return u, sum_ladj


def maf_forward_ref(x, cond, params):
    """Pure-JAX reference mirroring the PyTorch forward semantics."""
    B, D = x.shape
    sum_ladj = jnp.zeros_like(x)
    for blk in range(N_BLOCKS):
        xc = jnp.concatenate([x, cond], axis=1)
        h = xc @ params["w_in"][blk] + params["b0"][blk]
        for l in range(HIDDEN_LAYER):
            h = jnp.maximum(h, 0.0)
            h = h @ params["wht"][blk, l] + params["bh"][blk, l]
        h = jnp.maximum(h, 0.0)
        m = h @ params["wot_m"][blk] + params["bo_m"][blk]
        loga = h @ params["wot_loga"][blk] + params["bo_loga"][blk]
        x = (x - m) * jnp.exp(-loga)
        sum_ladj = sum_ladj - loga
        # Two-pass unbiased variance + sqrt/divide (PyTorch formulation) to
        # cross-check the kernel's tile-partial / Chan-combined statistics.
        mean = jnp.mean(x, axis=0, keepdims=True)
        var = jnp.sum((x - mean) ** 2, axis=0, keepdims=True) / (B - 1)
        x_hat = (x - mean) / jnp.sqrt(var + BN_EPS)
        lg = params["log_gamma"][blk]
        x = jnp.exp(lg) * x_hat + params["beta"][blk]
        sum_ladj = sum_ladj + (lg - 0.5 * jnp.log(var + BN_EPS))
    return x, sum_ladj


def init_params(key):
    """Deterministic synthetic parameters with the shapes MAF.__init__ implies,
    pre-masked / pre-transposed / pre-packed for the kernel hot path."""
    D, H, C, L = IN_DIM, N_NODES, COND_DIM, HIDDEN_LAYER
    input_degrees = None
    w_in, b0, wht, bh = [], [], [], []
    wot_m, bo_m, wot_loga, bo_loga = [], [], [], []
    for _ in range(N_BLOCKS):
        masks, in_deg = _create_masks_sequential(D, H, L, input_degrees)
        input_degrees = in_deg[::-1]  # .flip(0) between stacked MADEs

        key, k0, k1, k2, k3, k4 = jax.random.split(key, 6)
        s_d, s_h = 1.0 / np.sqrt(D), 1.0 / np.sqrt(H)
        W0 = jax.random.uniform(k0, (H, D), jnp.float32, -s_d, s_d)
        b0_ = jax.random.uniform(k1, (H,), jnp.float32, -s_d, s_d)
        Wc = jax.random.uniform(k2, (H, C), jnp.float32, 0.0, 1.0) / np.sqrt(C)
        Whs, bhs = [], []
        for l in range(L):
            key, kw, kb = jax.random.split(key, 3)
            Wh = jax.random.uniform(kw, (H, H), jnp.float32, -s_h, s_h)
            bh_ = jax.random.uniform(kb, (H,), jnp.float32, -s_h, s_h)
            Whs.append((Wh * jnp.asarray(masks[1 + l])).T)
            bhs.append(bh_[None, :])                                   # (1, H)
        Wo = jax.random.uniform(k3, (2 * D, H), jnp.float32, -s_h, s_h)
        bo_ = jax.random.uniform(k4, (2 * D,), jnp.float32, -s_h, s_h)
        mask_out = jnp.asarray(np.tile(masks[-1], (2, 1)))  # masks[-1].repeat(2, 1)

        w0t = (W0 * jnp.asarray(masks[0])).T                           # (D, H)
        wct = Wc.T                                                     # (C, H)
        wot = (Wo * mask_out).T                                        # (H, 2D)

        w_in.append(jnp.concatenate([w0t, wct], axis=0))               # (D+C, H)
        b0.append(b0_[None, :])                                        # (1, H)
        wht.append(jnp.stack(Whs))                                     # (L, H, H)
        bh.append(jnp.stack(bhs))                                      # (L, 1, H)
        wot_m.append(wot[:, :D])                                       # (H, D)
        wot_loga.append(wot[:, D:])                                    # (H, D)
        bo_m.append(bo_[None, :D])                                     # (1, D)
        bo_loga.append(bo_[None, D:])                                  # (1, D)

    # BatchNorm flow params init to zeros, exactly as in the module's __init__.
    return dict(
        w_in=jnp.stack(w_in), b0=jnp.stack(b0),
        wht=jnp.stack(wht), bh=jnp.stack(bh),
        wot_m=jnp.stack(wot_m), bo_m=jnp.stack(bo_m),
        wot_loga=jnp.stack(wot_loga), bo_loga=jnp.stack(bo_loga),
        log_gamma=jnp.zeros((N_BLOCKS, 1, D), jnp.float32),
        beta=jnp.zeros((N_BLOCKS, 1, D), jnp.float32),
    )


if __name__ == "__main__":
    assert BATCH >= 2, "BatchNorm unbiased variance requires batch >= 2"
    key = jax.random.PRNGKey(0)
    key, kx, kc, kp = jax.random.split(key, 4)
    x = jax.random.normal(kx, (BATCH, IN_DIM), jnp.float32)
    cond = jax.random.uniform(kc, (BATCH, COND_DIM), jnp.float32, -1.0, 1.0)
    params = init_params(kp)

    fwd = jax.jit(maf_forward)
    u, sum_ladj = fwd(x, cond, params)
    u = jax.block_until_ready(u)
    sum_ladj = jax.block_until_ready(sum_ladj)

    u_ref, ladj_ref = maf_forward_ref(x, cond, params)
    assert u.shape == (BATCH, IN_DIM) and sum_ladj.shape == (BATCH, IN_DIM)
    np.testing.assert_allclose(np.asarray(u), np.asarray(u_ref), rtol=1e-4, atol=1e-4)
    np.testing.assert_allclose(np.asarray(sum_ladj), np.asarray(ladj_ref), rtol=1e-4, atol=1e-4)

    print("KERNEL_OK")
</pallas_src>

<mosaic_0001>
module attributes {stable_mosaic.version = 11 : i64} {
  func.func @made_block_kernel(%arg0: i32, %arg1: memref<256x10xf32, #tpu.memory_space<vmem>>, %arg2: memref<256x4xf32, #tpu.memory_space<vmem>>, %arg3: memref<1x10xf32, #tpu.memory_space<vmem>>, %arg4: memref<1x10xf32, #tpu.memory_space<vmem>>, %arg5: memref<10x32xf32, #tpu.memory_space<vmem>>, %arg6: memref<1x32xf32, #tpu.memory_space<vmem>>, %arg7: memref<1x32x32xf32, #tpu.memory_space<vmem>>, %arg8: memref<1x1x32xf32, #tpu.memory_space<vmem>>, %arg9: memref<32x4xf32, #tpu.memory_space<vmem>>, %arg10: memref<1x4xf32, #tpu.memory_space<vmem>>, %arg11: memref<32x4xf32, #tpu.memory_space<vmem>>, %arg12: memref<1x4xf32, #tpu.memory_space<vmem>>, %arg13: memref<256x10xf32, #tpu.memory_space<vmem>>, %arg14: memref<256x4xf32, #tpu.memory_space<vmem>>, %arg15: memref<1x8x4xf32, #tpu.memory_space<vmem>>, %arg16: memref<1x8x4xf32, #tpu.memory_space<vmem>>) attributes {dimension_semantics = [#tpu.dimension_semantics<parallel>], iteration_bounds = array<i64: 2>, scalar_prefetch = 0 : i64, scratch_operands = 0 : i64, tpu.core_type = #tpu.core_type<tc>, window_params = [{transform_indices = @transform_0, window_bounds = array<i64: 256, 10>}, {transform_indices = @transform_1, window_bounds = array<i64: 256, 4>}, {pipeline_mode = #tpu.pipeline_mode<synchronous>, transform_indices = @transform_2, window_bounds = array<i64: 1, 10>}, {pipeline_mode = #tpu.pipeline_mode<synchronous>, transform_indices = @transform_3, window_bounds = array<i64: 1, 10>}, {pipeline_mode = #tpu.pipeline_mode<synchronous>, transform_indices = @transform_4, window_bounds = array<i64: 10, 32>}, {pipeline_mode = #tpu.pipeline_mode<synchronous>, transform_indices = @transform_5, window_bounds = array<i64: 1, 32>}, {pipeline_mode = #tpu.pipeline_mode<synchronous>, transform_indices = @transform_6, window_bounds = array<i64: 1, 32, 32>}, {pipeline_mode = #tpu.pipeline_mode<synchronous>, transform_indices = @transform_7, window_bounds = array<i64: 1, 1, 32>}, {pipeline_mode = #tpu.pipeline_mode<synchronous>, transform_indices = @transform_8, window_bounds = array<i64: 32, 4>}, {pipeline_mode = #tpu.pipeline_mode<synchronous>, transform_indices = @transform_9, window_bounds = array<i64: 1, 4>}, {pipeline_mode = #tpu.pipeline_mode<synchronous>, transform_indices = @transform_10, window_bounds = array<i64: 32, 4>}, {pipeline_mode = #tpu.pipeline_mode<synchronous>, transform_indices = @transform_11, window_bounds = array<i64: 1, 4>}, {transform_indices = @transform_12, window_bounds = array<i64: 256, 10>}, {transform_indices = @transform_13, window_bounds = array<i64: 256, 4>}, {transform_indices = @transform_14, window_bounds = array<i64: 1, 8, 4>}, {transform_indices = @transform_15, window_bounds = array<i64: 1, 8, 4>}]} {
    %c0 = arith.constant 0 : index
    %c0_0 = arith.constant 0 : index
    %0 = vector.load %arg1[%c0, %c0_0] : memref<256x10xf32, #tpu.memory_space<vmem>>, vector<256x10xf32>
    %c0_1 = arith.constant 0 : index
    %c0_2 = arith.constant 0 : index
    %1 = vector.load %arg3[%c0_1, %c0_2] : memref<1x10xf32, #tpu.memory_space<vmem>>, vector<1x10xf32>
    %2 = vector.broadcast %1 : vector<1x10xf32> to vector<256x10xf32>
    %3 = arith.mulf %0, %2 : vector<256x10xf32>
    %c0_3 = arith.constant 0 : index
    %c0_4 = arith.constant 0 : index
    %4 = vector.load %arg4[%c0_3, %c0_4] : memref<1x10xf32, #tpu.memory_space<vmem>>, vector<1x10xf32>
    %5 = vector.broadcast %4 : vector<1x10xf32> to vector<256x10xf32>
    %6 = arith.addf %3, %5 : vector<256x10xf32>
    %7 = vector.extract_strided_slice %6 {offsets = [0, 0], sizes = [256, 4], strides = [1, 1]} : vector<256x10xf32> to vector<256x4xf32>
    %c0_5 = arith.constant 0 : index
    %c0_6 = arith.constant 0 : index
    %8 = vector.load %arg5[%c0_5, %c0_6] : memref<10x32xf32, #tpu.memory_space<vmem>>, vector<10x32xf32>
    %cst = arith.constant dense<0.000000e+00> : vector<256x32xf32>
    %9 = tpu.matmul %6, %8, %cst {dimension_numbers = #tpu.dot_dimension_numbers<[1], [0], [0], [1], [0, 0, 1, 1], [], []>} : vector<256x10xf32>, vector<10x32xf32>, vector<256x32xf32> -> vector<256x32xf32>
    %c0_7 = arith.constant 0 : index
    %c0_8 = arith.constant 0 : index
    %10 = vector.load %arg6[%c0_7, %c0_8] : memref<1x32xf32, #tpu.memory_space<vmem>>, vector<1x32xf32>
    %11 = vector.broadcast %10 : vector<1x32xf32> to vector<256x32xf32>
    %12 = arith.addf %9, %11 : vector<256x32xf32>
    %cst_9 = arith.constant 0.000000e+00 : f32
    %13 = vector.broadcast %cst_9 : f32 to vector<256x32xf32>
    %14 = arith.maximumf %12, %13 : vector<256x32xf32>
    %c0_10 = arith.constant 0 : index
    %c0_11 = arith.constant 0 : index
    %c0_12 = arith.constant 0 : index
    %15 = vector.load %arg7[%c0_10, %c0_11, %c0_12] : memref<1x32x32xf32, #tpu.memory_space<vmem>>, vector<1x32x32xf32>
    %16 = vector.shape_cast %15 : vector<1x32x32xf32> to vector<32x32xf32>
    %cst_13 = arith.constant dense<0.000000e+00> : vector<256x32xf32>
    %17 = tpu.matmul %14, %16, %cst_13 {dimension_numbers = #tpu.dot_dimension_numbers<[1], [0], [0], [1], [0, 0, 1, 1], [], []>} : vector<256x32xf32>, vector<32x32xf32>, vector<256x32xf32> -> vector<256x32xf32>
    %c0_14 = arith.constant 0 : index
    %c0_15 = arith.constant 0 : index
    %c0_16 = arith.constant 0 : index
    %18 = vector.load %arg8[%c0_14, %c0_15, %c0_16] : memref<1x1x32xf32, #tpu.memory_space<vmem>>, vector<1x1x32xf32>
    %19 = vector.shape_cast %18 : vector<1x1x32xf32> to vector<1x32xf32>
    %20 = vector.broadcast %19 : vector<1x32xf32> to vector<256x32xf32>
    %21 = arith.addf %17, %20 : vector<256x32xf32>
    %cst_17 = arith.constant 0.000000e+00 : f32
    %22 = vector.broadcast %cst_17 : f32 to vector<256x32xf32>
    %23 = arith.maximumf %21, %22 : vector<256x32xf32>
    %c0_18 = arith.constant 0 : index
    %c0_19 = arith.constant 0 : index
    %24 = vector.load %arg9[%c0_18, %c0_19] : memref<32x4xf32, #tpu.memory_space<vmem>>, vector<32x4xf32>
    %cst_20 = arith.constant dense<0.000000e+00> : vector<256x4xf32>
    %25 = tpu.matmul %23, %24, %cst_20 {dimension_numbers = #tpu.dot_dimension_numbers<[1], [0], [0], [1], [0, 0, 1, 1], [], []>} : vector<256x32xf32>, vector<32x4xf32>, vector<256x4xf32> -> vector<256x4xf32>
    %c0_21 = arith.constant 0 : index
    %c0_22 = arith.constant 0 : index
    %26 = vector.load %arg10[%c0_21, %c0_22] : memref<1x4xf32, #tpu.memory_space<vmem>>, vector<1x4xf32>
    %27 = vector.broadcast %26 : vector<1x4xf32> to vector<256x4xf32>
    %28 = arith.addf %25, %27 : vector<256x4xf32>
    %c0_23 = arith.constant 0 : index
    %c0_24 = arith.constant 0 : index
    %29 = vector.load %arg11[%c0_23, %c0_24] : memref<32x4xf32, #tpu.memory_space<vmem>>, vector<32x4xf32>
    %cst_25 = arith.constant dense<0.000000e+00> : vector<256x4xf32>
    %30 = tpu.matmul %23, %29, %cst_25 {dimension_numbers = #tpu.dot_dimension_numbers<[1], [0], [0], [1], [0, 0, 1, 1], [], []>} : vector<256x32xf32>, vector<32x4xf32>, vector<256x4xf32> -> vector<256x4xf32>
    %c0_26 = arith.constant 0 : index
    %c0_27 = arith.constant 0 : index
    %31 = vector.load %arg12[%c0_26, %c0_27] : memref<1x4xf32, #tpu.memory_space<vmem>>, vector<1x4xf32>
    %32 = vector.broadcast %31 : vector<1x4xf32> to vector<256x4xf32>
    %33 = arith.addf %30, %32 : vector<256x4xf32>
    %34 = arith.subf %7, %28 : vector<256x4xf32>
    %cst_28 = arith.constant 0.000000e+00 : f32
    %35 = vector.broadcast %cst_28 : f32 to vector<256x4xf32>
    %36 = arith.subf %35, %33 : vector<256x4xf32>
    %37 = math.exp %36 : vector<256x4xf32>
    %38 = arith.mulf %34, %37 : vector<256x4xf32>
    %c0_29 = arith.constant 0 : index
    %c0_30 = arith.constant 0 : index
    %39 = vector.load %arg13[%c0_29, %c0_30] : memref<256x10xf32, #tpu.memory_space<vmem>>, vector<256x10xf32>
    tpu.vector_store %arg13[%c0_29, %c0_30], %6 {strides = array<i32>} : memref<256x10xf32, #tpu.memory_space<vmem>>, vector<256x10xf32>,
    %c0_31 = arith.constant 0 : index
    %c0_32 = arith.constant 0 : index
    %40 = vector.load %arg13[%c0_31, %c0_32] : memref<256x10xf32, #tpu.memory_space<vmem>>, vector<256x4xf32>
    tpu.vector_store %arg13[%c0_31, %c0_32], %38 {strides = array<i32>} : memref<256x10xf32, #tpu.memory_space<vmem>>, vector<256x4xf32>,
    %c0_33 = arith.constant 0 : index
    %c0_34 = arith.constant 0 : index
    %41 = vector.load %arg2[%c0_33, %c0_34] : memref<256x4xf32, #tpu.memory_space<vmem>>, vector<256x4xf32>
    %42 = arith.subf %41, %33 : vector<256x4xf32>
    %c0_35 = arith.constant 0 : index
    %c0_36 = arith.constant 0 : index
    %43 = vector.load %arg14[%c0_35, %c0_36] : memref<256x4xf32, #tpu.memory_space<vmem>>, vector<256x4xf32>
    tpu.vector_store %arg14[%c0_35, %c0_36], %42 {strides = array<i32>} : memref<256x4xf32, #tpu.memory_space<vmem>>, vector<256x4xf32>,
    %cst_37 = arith.constant dense<0.000000e+00> : vector<4xf32>
    %44 = vector.multi_reduction <add>, %38, %cst_37 [0] : vector<256x4xf32> to vector<4xf32>
    %45 = vector.shape_cast %44 : vector<4xf32> to vector<1x4xf32>
    %cst_38 = arith.constant 3.906250e-03 : f32
    %46 = vector.broadcast %cst_38 : f32 to vector<1x4xf32>
    %47 = arith.mulf %45, %46 : vector<1x4xf32>
    %48 = vector.broadcast %47 : vector<1x4xf32> to vector<256x4xf32>
    %49 = arith.subf %38, %48 : vector<256x4xf32>
    %50 = arith.mulf %49, %49 : vector<256x4xf32>
    %cst_39 = arith.constant dense<0.000000e+00> : vector<4xf32>
    %51 = vector.multi_reduction <add>, %50, %cst_39 [0] : vector<256x4xf32> to vector<4xf32>
    %52 = vector.shape_cast %51 : vector<4xf32> to vector<1x4xf32>
    %53 = vector.shape_cast %45 : vector<1x4xf32> to vector<1x1x4xf32>
    %54 = vector.broadcast %53 : vector<1x1x4xf32> to vector<1x8x4xf32>
    %c0_40 = arith.constant 0 : index
    %c0_41 = arith.constant 0 : index
    %c0_42 = arith.constant 0 : index
    %55 = vector.load %arg15[%c0_40, %c0_41, %c0_42] : memref<1x8x4xf32, #tpu.memory_space<vmem>>, vector<1x8x4xf32>
    tpu.vector_store %arg15[%c0_40, %c0_41, %c0_42], %54 {strides = array<i32>} : memref<1x8x4xf32, #tpu.memory_space<vmem>>, vector<1x8x4xf32>,
    %56 = vector.shape_cast %52 : vector<1x4xf32> to vector<1x1x4xf32>
    %57 = vector.broadcast %56 : vector<1x1x4xf32> to vector<1x8x4xf32>
    %c0_43 = arith.constant 0 : index
    %c0_44 = arith.constant 0 : index
    %c0_45 = arith.constant 0 : index
    %58 = vector.load %arg16[%c0_43, %c0_44, %c0_45] : memref<1x8x4xf32, #tpu.memory_space<vmem>>, vector<1x8x4xf32>
    tpu.vector_store %arg16[%c0_43, %c0_44, %c0_45], %57 {strides = array<i32>} : memref<1x8x4xf32, #tpu.memory_space<vmem>>, vector<1x8x4xf32>,
    return
  }
  func.func @transform_0(%arg0: i32) -> (i32, i32) {
    %c0_i32 = arith.constant 0 : i32
    %c0_i32_0 = arith.constant 0 : i32
    return %arg0, %c0_i32 : i32, i32
  }
  func.func @transform_1(%arg0: i32) -> (i32, i32) {
    %c0_i32 = arith.constant 0 : i32
    %c0_i32_0 = arith.constant 0 : i32
    return %arg0, %c0_i32 : i32, i32
  }
  func.func @transform_2(%arg0: i32) -> (i32, i32) {
    %c0_i32 = arith.constant 0 : i32
    %c0_i32_0 = arith.constant 0 : i32
    %c0_i32_1 = arith.constant 0 : i32
    return %c0_i32, %c0_i32_0 : i32, i32
  }
  func.func @transform_3(%arg0: i32) -> (i32, i32) {
    %c0_i32 = arith.constant 0 : i32
    %c0_i32_0 = arith.constant 0 : i32
    %c0_i32_1 = arith.constant 0 : i32
    return %c0_i32, %c0_i32_0 : i32, i32
  }
  func.func @transform_4(%arg0: i32) -> (i32, i32) {
    %c0_i32 = arith.constant 0 : i32
    %c0_i32_0 = arith.constant 0 : i32
    %c0_i32_1 = arith.constant 0 : i32
    return %c0_i32, %c0_i32_0 : i32, i32
  }
  func.func @transform_5(%arg0: i32) -> (i32, i32) {
    %c0_i32 = arith.constant 0 : i32
    %c0_i32_0 = arith.constant 0 : i32
    %c0_i32_1 = arith.constant 0 : i32
    return %c0_i32, %c0_i32_0 : i32, i32
  }
  func.func @transform_6(%arg0: i32) -> (i32, i32, i32) {
    %c0_i32 = arith.constant 0 : i32
    %c0_i32_0 = arith.constant 0 : i32
    %c0_i32_1 = arith.constant 0 : i32
    %c0_i32_2 = arith.constant 0 : i32
    return %c0_i32, %c0_i32_0, %c0_i32_1 : i32, i32, i32
  }
  func.func @transform_7(%arg0: i32) -> (i32, i32, i32) {
    %c0_i32 = arith.constant 0 : i32
    %c0_i32_0 = arith.constant 0 : i32
    %c0_i32_1 = arith.constant 0 : i32
    %c0_i32_2 = arith.constant 0 : i32
    return %c0_i32, %c0_i32_0, %c0_i32_1 : i32, i32, i32
  }
  func.func @transform_8(%arg0: i32) -> (i32, i32) {
    %c0_i32 = arith.constant 0 : i32
    %c0_i32_0 = arith.constant 0 : i32
    %c0_i32_1 = arith.constant 0 : i32
    return %c0_i32, %c0_i32_0 : i32, i32
  }
  func.func @transform_9(%arg0: i32) -> (i32, i32) {
    %c0_i32 = arith.constant 0 : i32
    %c0_i32_0 = arith.constant 0 : i32
    %c0_i32_1 = arith.constant 0 : i32
    return %c0_i32, %c0_i32_0 : i32, i32
  }
  func.func @transform_10(%arg0: i32) -> (i32, i32) {
    %c0_i32 = arith.constant 0 : i32
    %c0_i32_0 = arith.constant 0 : i32
    %c0_i32_1 = arith.constant 0 : i32
    return %c0_i32, %c0_i32_0 : i32, i32
  }
  func.func @transform_11(%arg0: i32) -> (i32, i32) {
    %c0_i32 = arith.constant 0 : i32
    %c0_i32_0 = arith.constant 0 : i32
    %c0_i32_1 = arith.constant 0 : i32
    return %c0_i32, %c0_i32_0 : i32, i32
  }
  func.func @transform_12(%arg0: i32) -> (i32, i32) {
    %c0_i32 = arith.constant 0 : i32
    %c0_i32_0 = arith.constant 0 : i32
    return %arg0, %c0_i32 : i32, i32
  }
  func.func @transform_13(%arg0: i32) -> (i32, i32) {
    %c0_i32 = arith.constant 0 : i32
    %c0_i32_0 = arith.constant 0 : i32
    return %arg0, %c0_i32 : i32, i32
  }
  func.func @transform_14(%arg0: i32) -> (i32, i32, i32) {
    %c0_i32 = arith.constant 0 : i32
    %c0_i32_0 = arith.constant 0 : i32
    %c0_i32_1 = arith.constant 0 : i32
    return %arg0, %c0_i32, %c0_i32_0 : i32, i32, i32
  }
  func.func @transform_15(%arg0: i32) -> (i32, i32, i32) {
    %c0_i32 = arith.constant 0 : i32
    %c0_i32_0 = arith.constant 0 : i32
    %c0_i32_1 = arith.constant 0 : i32
    return %arg0, %c0_i32, %c0_i32_0 : i32, i32, i32
  }
}

module attributes {stable_mosaic.version = 11 : i64} {
  func.func @bn_finalize_kernel(%arg0: i32, %arg1: memref<256x10xf32, #tpu.memory_space<vmem>>, %arg2: memref<256x4xf32, #tpu.memory_space<vmem>>, %arg3: memref<1x4xf32, #tpu.memory_space<vmem>>, %arg4: memref<1x4xf32, #tpu.memory_space<vmem>>, %arg5: memref<1x4xf32, #tpu.memory_space<vmem>>, %arg6: memref<256x4xf32, #tpu.memory_space<vmem>>, %arg7: memref<256x4xf32, #tpu.memory_space<vmem>>) attributes {dimension_semantics = [#tpu.dimension_semantics<parallel>], iteration_bounds = array<i64: 2>, scalar_prefetch = 0 : i64, scratch_operands = 0 : i64, tpu.core_type = #tpu.core_type<tc>, window_params = [{transform_indices = @transform_0, window_bounds = array<i64: 256, 10>}, {transform_indices = @transform_1, window_bounds = array<i64: 256, 4>}, {pipeline_mode = #tpu.pipeline_mode<synchronous>, transform_indices = @transform_2, window_bounds = array<i64: 1, 4>}, {pipeline_mode = #tpu.pipeline_mode<synchronous>, transform_indices = @transform_3, window_bounds = array<i64: 1, 4>}, {pipeline_mode = #tpu.pipeline_mode<synchronous>, transform_indices = @transform_4, window_bounds = array<i64: 1, 4>}, {transform_indices = @transform_5, window_bounds = array<i64: 256, 4>}, {transform_indices = @transform_6, window_bounds = array<i64: 256, 4>}]} {
    %c0 = arith.constant 0 : index
    %c0_0 = arith.constant 0 : index
    %0 = vector.load %arg1[%c0, %c0_0] : memref<256x10xf32, #tpu.memory_space<vmem>>, vector<256x10xf32>
    %1 = vector.extract_strided_slice %0 {offsets = [0, 0], sizes = [256, 4], strides = [1, 1]} : vector<256x10xf32> to vector<256x4xf32>
    %c0_1 = arith.constant 0 : index
    %c0_2 = arith.constant 0 : index
    %2 = vector.load %arg3[%c0_1, %c0_2] : memref<1x4xf32, #tpu.memory_space<vmem>>, vector<1x4xf32>
    %3 = vector.broadcast %2 : vector<1x4xf32> to vector<256x4xf32>
    %4 = arith.mulf %1, %3 : vector<256x4xf32>
    %c0_3 = arith.constant 0 : index
    %c0_4 = arith.constant 0 : index
    %5 = vector.load %arg4[%c0_3, %c0_4] : memref<1x4xf32, #tpu.memory_space<vmem>>, vector<1x4xf32>
    %6 = vector.broadcast %5 : vector<1x4xf32> to vector<256x4xf32>
    %7 = arith.addf %4, %6 : vector<256x4xf32>
    %c0_5 = arith.constant 0 : index
    %c0_6 = arith.constant 0 : index
    %8 = vector.load %arg6[%c0_5, %c0_6] : memref<256x4xf32, #tpu.memory_space<vmem>>, vector<256x4xf32>
    tpu.vector_store %arg6[%c0_5, %c0_6], %7 {strides = array<i32>} : memref<256x4xf32, #tpu.memory_space<vmem>>, vector<256x4xf32>,
    %c0_7 = arith.constant 0 : index
    %c0_8 = arith.constant 0 : index
    %9 = vector.load %arg2[%c0_7, %c0_8] : memref<256x4xf32, #tpu.memory_space<vmem>>, vector<256x4xf32>
    %c0_9 = arith.constant 0 : index
    %c0_10 = arith.constant 0 : index
    %10 = vector.load %arg5[%c0_9, %c0_10] : memref<1x4xf32, #tpu.memory_space<vmem>>, vector<1x4xf32>
    %11 = vector.broadcast %10 : vector<1x4xf32> to vector<256x4xf32>
    %12 = arith.addf %9, %11 : vector<256x4xf32>
    %c0_11 = arith.constant 0 : index
    %c0_12 = arith.constant 0 : index
    %13 = vector.load %arg7[%c0_11, %c0_12] : memref<256x4xf32, #tpu.memory_space<vmem>>, vector<256x4xf32>
    tpu.vector_store %arg7[%c0_11, %c0_12], %12 {strides = array<i32>} : memref<256x4xf32, #tpu.memory_space<vmem>>, vector<256x4xf32>,
    return
  }
  func.func @transform_0(%arg0: i32) -> (i32, i32) {
    %c0_i32 = arith.constant 0 : i32
    %c0_i32_0 = arith.constant 0 : i32
    return %arg0, %c0_i32 : i32, i32
  }
  func.func @transform_1(%arg0: i32) -> (i32, i32) {
    %c0_i32 = arith.constant 0 : i32
    %c0_i32_0 = arith.constant 0 : i32
    return %arg0, %c0_i32 : i32, i32
  }
  func.func @transform_2(%arg0: i32) -> (i32, i32) {
    %c0_i32 = arith.constant 0 : i32
    %c0_i32_0 = arith.constant 0 : i32
    %c0_i32_1 = arith.constant 0 : i32
    return %c0_i32, %c0_i32_0 : i32, i32
  }
  func.func @transform_3(%arg0: i32) -> (i32, i32) {
    %c0_i32 = arith.constant 0 : i32
    %c0_i32_0 = arith.constant 0 : i32
    %c0_i32_1 = arith.constant 0 : i32
    return %c0_i32, %c0_i32_0 : i32, i32
  }
  func.func @transform_4(%arg0: i32) -> (i32, i32) {
    %c0_i32 = arith.constant 0 : i32
    %c0_i32_0 = arith.constant 0 : i32
    %c0_i32_1 = arith.constant 0 : i32
    return %c0_i32, %c0_i32_0 : i32, i32
  }
  func.func @transform_5(%arg0: i32) -> (i32, i32) {
    %c0_i32 = arith.constant 0 : i32
    %c0_i32_0 = arith.constant 0 : i32
    return %arg0, %c0_i32 : i32, i32
  }
  func.func @transform_6(%arg0: i32) -> (i32, i32) {
    %c0_i32 = arith.constant 0 : i32
    %c0_i32_0 = arith.constant 0 : i32
    return %arg0, %c0_i32 : i32, i32
  }
}

</mosaic_0001>

<llo_original>
// kernel: maf_forward.5
$region0: #{maf_forward.5}
  #allocation0 [shape = 'u32[]', space=smem, size = 0x4, offset = 0x4, fixed_abs, tag = 'smem constant byte address 0x4 - core index']
  #allocation1 [shape = 'u32[144,128]{1,0:T(1,128)}', space=vmem, size = 0x12000, scoped, tag = 'internal scratch']
  %s0 = inlined_call_operand.vmem [shape: f32[512,10], index: 0, kind: input, shape index: {}]
  %s1 = inlined_call_operand.vmem [shape: f32[512,4], index: 1, kind: input, shape index: {}]
  %s2 = inlined_call_operand.vmem [shape: f32[1,4], index: 2, kind: input, shape index: {}]
  %s3 = inlined_call_operand.vmem [shape: f32[1,4], index: 3, kind: input, shape index: {}]
  %s4 = inlined_call_operand.vmem [shape: f32[1,4], index: 4, kind: input, shape index: {}]
  %s5 = inlined_call_operand.vmem [shape: f32[512,4], index: 5, kind: output, shape index: {0}]
  %s6 = inlined_call_operand.vmem [shape: f32[512,4], index: 6, kind: output, shape index: {1}]
  %7 = xla_tuple %s5, %s6
  %s8 = sld [smem:[#allocation0]]
  $region61: #{maf_forward.5} parent=0
    _
  %s10 = ssub.s32 1, %s8
  %s11 = scalar_select 0, %s10, %s8
  loop: start=0, step=1, limit=4
  $region2: #{maf_forward.5} parent=0 // loop_pre_header
    _
  $region3: #{maf_forward.5} parent=0 // loop_header
    %s13 = sphi 0, %s17
    %p14 = scmp.ge.s32.totalorder %s13, 4
    %s23 = sphi 0, %s25
    %s26 = sphi 0, %s23
    %s27 = sphi 0, %s26
    %s43 = sphi 0, %s27
    %s49 = sphi 0, %s51
    %s52 = sphi 0, %s49
    %s53 = sphi 0, %s52
    %s69 = sphi 0, %s53
    %s73 = sphi 0, %s73
    %s75 = sphi 0, %s73
    %s76 = sphi 0, %s75
    %s90 = sphi 0, %s76
    %s94 = sphi 0, %s94
    %s96 = sphi 0, %s94
    %s97 = sphi 0, %s96
    %s111 = sphi 0, %s97
    %s115 = sphi 0, %s115
    %s117 = sphi 0, %s115
    %s118 = sphi 0, %s117
    %s132 = sphi 0, %s118
    %s138 = sphi 0, %s140
    %s141 = sphi 0, %s138
    %s142 = sphi 0, %s141
    %s158 = sphi 0, %s142
    %s164 = sphi 0, %s166
    %s167 = sphi 0, %s164
    %s168 = sphi 0, %s167
    %s184 = sphi 0, %s168
  $region4: #{maf_forward.5} parent=0 // loop_header_branch
    %16 = sbr.rel (%p14) target = $region8
  $region5: #{maf_forward.5} parent=0 // loop_body
    %s18 = ssub.s32 %s13, 1
    %s19 = ssub.s32 %s13, 2
    %s20 = sadd.s32 %s13, 1
    %s21 = ssub.s32 %s13, %s20
    %p22 = scmp.eq.s32.totalorder %s21, 0
    %s24 = sadd.s32 %s23, 1
    %s25 = scalar_select %p22, %s23, %s24
    %p28 = pneg %p22
    %p29 = scmp.eq.s32.totalorder %s13, 1
    %p30 = por %p28, %p29
    %p31 = scmp.ne.s32.totalorder %s23, %s26
    %p32 = scmp.eq.s32.totalorder %s13, 0
    %p33 = por %p31, %p32
    %p34 = scmp.ne.s32.totalorder %s23, %s26
    %p35 = scmp.eq.s32.totalorder %s18, 1
    %p36 = por %p34, %p35
    %p37 = scmp.ne.s32.totalorder %s26, %s27
    %p38 = scmp.eq.s32.totalorder %s18, 0
    %p39 = por %p37, %p38
    %p40 = scmp.ne.s32.totalorder %s26, %s27
    %p41 = scmp.eq.s32.totalorder %s19, 1
    %p42 = por %p40, %p41
    %p44 = scmp.ne.s32.totalorder %s27, %s43
    %p45 = scmp.eq.s32.totalorder %s19, 0
    %p46 = por %p44, %p45
    %s47 = ssub.s32 %s13, %s20
    %p48 = scmp.eq.s32.totalorder %s47, 0
    %s50 = sadd.s32 %s49, 1
    %s51 = scalar_select %p48, %s49, %s50
    %p54 = pneg %p48
    %p55 = scmp.eq.s32.totalorder %s13, 1
    %p56 = por %p54, %p55
    %p57 = scmp.ne.s32.totalorder %s49, %s52
    %p58 = scmp.eq.s32.totalorder %s13, 0
    %p59 = por %p57, %p58
    %p60 = scmp.ne.s32.totalorder %s49, %s52
    %p61 = scmp.eq.s32.totalorder %s18, 1
    %p62 = por %p60, %p61
    %p63 = scmp.ne.s32.totalorder %s52, %s53
    %p64 = scmp.eq.s32.totalorder %s18, 0
    %p65 = por %p63, %p64
    %p66 = scmp.ne.s32.totalorder %s52, %s53
    %p67 = scmp.eq.s32.totalorder %s19, 1
    %p68 = por %p66, %p67
    %p70 = scmp.ne.s32.totalorder %s53, %s69
    %p71 = scmp.eq.s32.totalorder %s19, 0
    %p72 = por %p70, %p71
    %s74 = sadd.s32 %s73, 1
    %p77 = scmp.eq.s32.totalorder %s13, 1
    %p78 = scmp.ne.s32.totalorder %s73, %s75
    %p79 = scmp.eq.s32.totalorder %s13, 0
    %p80 = por %p78, %p79
    %p81 = scmp.ne.s32.totalorder %s73, %s75
    %p82 = scmp.eq.s32.totalorder %s18, 1
    %p83 = por %p81, %p82
    %p84 = scmp.ne.s32.totalorder %s75, %s76
    %p85 = scmp.eq.s32.totalorder %s18, 0
    %p86 = por %p84, %p85
    %p87 = scmp.ne.s32.totalorder %s75, %s76
    %p88 = scmp.eq.s32.totalorder %s19, 1
    %p89 = por %p87, %p88
    %p91 = scmp.ne.s32.totalorder %s76, %s90
    %p92 = scmp.eq.s32.totalorder %s19, 0
    %p93 = por %p91, %p92
    %s95 = sadd.s32 %s94, 1
    %p98 = scmp.eq.s32.totalorder %s13, 1
    %p99 = scmp.ne.s32.totalorder %s94, %s96
    %p100 = scmp.eq.s32.totalorder %s13, 0
    %p101 = por %p99, %p100
    %p102 = scmp.ne.s32.totalorder %s94, %s96
    %p103 = scmp.eq.s32.totalorder %s18, 1
    %p104 = por %p102, %p103
    %p105 = scmp.ne.s32.totalorder %s96, %s97
    %p106 = scmp.eq.s32.totalorder %s18, 0
    %p107 = por %p105, %p106
    %p108 = scmp.ne.s32.totalorder %s96, %s97
    %p109 = scmp.eq.s32.totalorder %s19, 1
    %p110 = por %p108, %p109
    %p112 = scmp.ne.s32.totalorder %s97, %s111
    %p113 = scmp.eq.s32.totalorder %s19, 0
    %p114 = por %p112, %p113
    %s116 = sadd.s32 %s115, 1
    %p119 = scmp.eq.s32.totalorder %s13, 1
    %p120 = scmp.ne.s32.totalorder %s115, %s117
    %p121 = scmp.eq.s32.totalorder %s13, 0
    %p122 = por %p120, %p121
    %p123 = scmp.ne.s32.totalorder %s115, %s117
    %p124 = scmp.eq.s32.totalorder %s18, 1
    %p125 = por %p123, %p124
    %p126 = scmp.ne.s32.totalorder %s117, %s118
    %p127 = scmp.eq.s32.totalorder %s18, 0
    %p128 = por %p126, %p127
    %p129 = scmp.ne.s32.totalorder %s117, %s118
    %p130 = scmp.eq.s32.totalorder %s19, 1
    %p131 = por %p129, %p130
    %p133 = scmp.ne.s32.totalorder %s118, %s132
    %p134 = scmp.eq.s32.totalorder %s19, 0
    %p135 = por %p133, %p134
    %s136 = ssub.s32 %s13, %s20
    %p137 = scmp.eq.s32.totalorder %s136, 0
    %s139 = sadd.s32 %s138, 1
    %s140 = scalar_select %p137, %s138, %s139
    %p143 = pneg %p137
    %p144 = scmp.eq.s32.totalorder %s13, 1
    %p145 = por %p143, %p144
    %p146 = scmp.ne.s32.totalorder %s138, %s141
    %p147 = scmp.eq.s32.totalorder %s13, 0
    %p148 = por %p146, %p147
    %p149 = scmp.ne.s32.totalorder %s138, %s141
    %p150 = scmp.eq.s32.totalorder %s18, 1
    %p151 = por %p149, %p150
    %p152 = scmp.ne.s32.totalorder %s141, %s142
    %p153 = scmp.eq.s32.totalorder %s18, 0
    %p154 = por %p152, %p153
    %p155 = scmp.ne.s32.totalorder %s141, %s142
    %p156 = scmp.eq.s32.totalorder %s19, 1
    %p157 = por %p155, %p156
    %p159 = scmp.ne.s32.totalorder %s142, %s158
    %p160 = scmp.eq.s32.totalorder %s19, 0
    %p161 = por %p159, %p160
    %s162 = ssub.s32 %s13, %s20
    %p163 = scmp.eq.s32.totalorder %s162, 0
    %s165 = sadd.s32 %s164, 1
    %s166 = scalar_select %p163, %s164, %s165
    %p169 = pneg %p163
    %p170 = scmp.eq.s32.totalorder %s13, 1
    %p171 = por %p169, %p170
    %p172 = scmp.ne.s32.totalorder %s164, %s167
    %p173 = scmp.eq.s32.totalorder %s13, 0
    %p174 = por %p172, %p173
    %p175 = scmp.ne.s32.totalorder %s164, %s167
    %p176 = scmp.eq.s32.totalorder %s18, 1
    %p177 = por %p175, %p176
    %p178 = scmp.ne.s32.totalorder %s167, %s168
    %p179 = scmp.eq.s32.totalorder %s18, 0
    %p180 = por %p178, %p179
    %p181 = scmp.ne.s32.totalorder %s167, %s168
    %p182 = scmp.eq.s32.totalorder %s19, 1
    %p183 = por %p181, %p182
    %p185 = scmp.ne.s32.totalorder %s168, %s184
    %p186 = scmp.eq.s32.totalorder %s19, 0
    %p187 = por %p185, %p186
    %p188 = scmp.le.s32.totalorder 1, %s13
    %p189 = scmp.lt.s32.totalorder %s13, 3
    %p190 = pnand %p188, %p189
    %p191 = pneg %p190
    // Predicated region
    $region9: #{maf_forward.5} parent=5 // pred_check
      _
    $region10: #{maf_forward.5} parent=5 // pred_check_branch
      %193 = sbr.rel (%p190) target = $region12
    $region11: #{maf_forward.5} parent=5 // pred_region
      %s194 = ssub.s32 %s13, 1
      // Predicated region
      $region13: #{maf_forward.5} parent=11 // pred_check
        %p195 = pneg %p86
      $region14: #{maf_forward.5} parent=11 // pred_check_branch
        %197 = sbr.rel (%p195) target = $region16
      $region15: #{maf_forward.5} parent=11 // pred_region
        _
      $region16: #{maf_forward.5} parent=11 // pred_fallthru
        _
      // Predicated region
      $region17: #{maf_forward.5} parent=11 // pred_check
        %p198 = pneg %p107
      $region18: #{maf_forward.5} parent=11 // pred_check_branch
        %200 = sbr.rel (%p198) target = $region20
      $region19: #{maf_forward.5} parent=11 // pred_region
        _
      $region20: #{maf_forward.5} parent=11 // pred_fallthru
        _
      // Predicated region
      $region21: #{maf_forward.5} parent=11 // pred_check
        %p201 = pneg %p128
      $region22: #{maf_forward.5} parent=11 // pred_check_branch
        %203 = sbr.rel (%p201) target = $region24
      $region23: #{maf_forward.5} parent=11 // pred_region
        _
      $region24: #{maf_forward.5} parent=11 // pred_fallthru
        _
    $region12: #{maf_forward.5} parent=5 // pred_fallthru
      _
    %p204 = scmp.lt.s32.totalorder %s13, 2
    // Predicated region
    $region25: #{maf_forward.5} parent=5 // pred_check
      %p205 = pneg %p204
    $region26: #{maf_forward.5} parent=5 // pred_check_branch
      %207 = sbr.rel (%p205) target = $region28
    $region27: #{maf_forward.5} parent=5 // pred_region
      // Predicated region
      $region29: #{maf_forward.5} parent=27 // pred_check
        %p208 = pneg %p33
      $region30: #{maf_forward.5} parent=27 // pred_check_branch
        %210 = sbr.rel (%p208) target = $region32
      $region31: #{maf_forward.5} parent=27 // pred_region
        %s211 = smul.u32 32, %s13
        %p212 = scmp.lt.s32.totalorder %s211, 63
        %s213 = scalar_select %p212, %s211, 63
        %s214 = smul.addr %s213, 8
        %s215 = scalar_lea.vmem %s0, %s214
        %s216 = smul.u32 32, %s13
      $region32: #{maf_forward.5} parent=27 // pred_fallthru
        _
      // Predicated region
      $region33: #{maf_forward.5} parent=27 // pred_check
        %p217 = pneg %p59
      $region34: #{maf_forward.5} parent=27 // pred_check_branch
        %219 = sbr.rel (%p217) target = $region36
      $region35: #{maf_forward.5} parent=27 // pred_region
        %s220 = smul.u32 32, %s13
        %p221 = scmp.lt.s32.totalorder %s220, 63
        %s222 = scalar_select %p221, %s220, 63
        %s223 = smul.addr %s222, 8
        %s224 = scalar_lea.vmem %s1, %s223
        %s225 = smul.u32 32, %s13
      $region36: #{maf_forward.5} parent=27 // pred_fallthru
        _
    $region28: #{maf_forward.5} parent=5 // pred_fallthru
      _
    %p226 = scmp.le.s32.totalorder 1, %s13
    %p227 = scmp.lt.s32.totalorder %s13, 3
    %p228 = pnand %p226, %p227
    %p229 = pneg %p228
    // Predicated region
    $region37: #{maf_forward.5} parent=5 // pred_check
      _
    $region38: #{maf_forward.5} parent=5 // pred_check_branch
      %231 = sbr.rel (%p228) target = $region40
    $region39: #{maf_forward.5} parent=5 // pred_region
      %s232 = ssub.s32 %s13, 1
      %s233 = smul.u32 32, %s18
      %p234 = scmp.lt.s32.totalorder %s233, 63
      %s235 = scalar_select %p234, %s233, 63
      %s236 = smul.addr %s235, 8
      %s237 = scalar_lea.vmem %s0, %s236
      %p238 = pneg %p39
      %p239 = pneg %p36
      %s240 = smul.u32 32, %s18
      %p241 = scmp.lt.s32.totalorder %s240, 63
      %s242 = scalar_select %p241, %s240, 63
      %s243 = smul.addr %s242, 8
      %s244 = scalar_lea.vmem %s1, %s243
      %p245 = pneg %p65
      %p246 = pneg %p62
      %p247 = pneg %p86
      %p248 = pneg %p83
      %p249 = pneg %p107
      %p250 = pneg %p104
      %p251 = pneg %p128
      %p252 = pneg %p125
      %p253 = pneg %p154
      %p254 = pneg %p151
      %s255 = smul.u32 32, %s18
      %p256 = scmp.lt.s32.totalorder %s255, 63
      %s257 = scalar_select %p256, %s255, 63
      %s258 = smul.addr %s257, 8
      %s259 = scalar_lea.vmem %s5, %s258
      %p260 = pneg %p180
      %p261 = pneg %p177
      %s262 = smul.u32 32, %s18
      %p263 = scmp.lt.s32.totalorder %s262, 63
      %s264 = scalar_select %p263, %s262, 63
      %s265 = smul.addr %s264, 8
      %s266 = scalar_lea.vmem %s6, %s265
      %s267 = smul.u32 32, %s18
      %p268 = scmp.lt.s32.totalorder %s267, 63
      %s269 = scalar_select %p268, %s267, 63
      %s270 = smul.addr %s269, 8
      %s271 = scalar_lea.vmem %s0, %s270
      %s272 = smul.u32 32, %s18
      %s273 = smul.u32 32, %s18
      %p274 = scmp.lt.s32.totalorder %s273, 63
      %s275 = scalar_select %p274, %s273, 63
      %s276 = smul.addr %s275, 8
      %s277 = scalar_lea.vmem %s1, %s276
      %s278 = smul.u32 32, %s18
      %s279 = smul.u32 32, %s18
      %p280 = scmp.lt.s32.totalorder %s279, 63
      %s281 = scalar_select %p280, %s279, 63
      %s282 = smul.addr %s281, 8
      %s283 = scalar_lea.vmem %s5, %s282
      %s284 = smul.u32 32, %s18
      %s285 = smul.u32 32, %s18
      %p286 = scmp.lt.s32.totalorder %s285, 63
      %s287 = scalar_select %p286, %s285, 63
      %s288 = smul.addr %s287, 8
      %s289 = scalar_lea.vmem %s6, %s288
      %s290 = smul.u32 32, %s18
      %v291 = vld [vmem:[%s271] sm:$0xff]
      %v292 = vld [vmem:[%s271 + $0x8] sm:$0xff]
      %v293 = vld [vmem:[%s271 + $0x10] sm:$0xff]
      %v294 = vld [vmem:[%s271 + $0x18] sm:$0xff]
      %v295 = vld [vmem:[%s271 + $0x20] sm:$0xff]
      %v296 = vld [vmem:[%s271 + $0x28] sm:$0xff]
      %v297 = vld [vmem:[%s271 + $0x30] sm:$0xff]
      %v298 = vld [vmem:[%s271 + $0x38] sm:$0xff]
      %v299 = vld [vmem:[%s271 + $0x40] sm:$0xff]
      %v300 = vld [vmem:[%s271 + $0x48] sm:$0xff]
      %v301 = vld [vmem:[%s271 + $0x50] sm:$0xff]
      %v302 = vld [vmem:[%s271 + $0x58] sm:$0xff]
      %v303 = vld [vmem:[%s271 + $0x60] sm:$0xff]
      %v304 = vld [vmem:[%s271 + $0x68] sm:$0xff]
      %v305 = vld [vmem:[%s271 + $0x70] sm:$0xff]
      %v306 = vld [vmem:[%s271 + $0x78] sm:$0xff]
      %v307 = vld [vmem:[%s271 + $0x80] sm:$0xff]
      %v308 = vld [vmem:[%s271 + $0x88] sm:$0xff]
      %v309 = vld [vmem:[%s271 + $0x90] sm:$0xff]
      %v310 = vld [vmem:[%s271 + $0x98] sm:$0xff]
      %v311 = vld [vmem:[%s271 + $0xa0] sm:$0xff]
      %v312 = vld [vmem:[%s271 + $0xa8] sm:$0xff]
      %v313 = vld [vmem:[%s271 + $0xb0] sm:$0xff]
      %v314 = vld [vmem:[%s271 + $0xb8] sm:$0xff]
      %v315 = vld [vmem:[%s271 + $0xc0] sm:$0xff]
      %v316 = vld [vmem:[%s271 + $0xc8] sm:$0xff]
      %v317 = vld [vmem:[%s271 + $0xd0] sm:$0xff]
      %v318 = vld [vmem:[%s271 + $0xd8] sm:$0xff]
      %v319 = vld [vmem:[%s271 + $0xe0] sm:$0xff]
      %v320 = vld [vmem:[%s271 + $0xe8] sm:$0xff]
      %v321 = vld [vmem:[%s271 + $0xf0] sm:$0xff]
      %v322 = vld [vmem:[%s271 + $0xf8] sm:$0xff]
      %v323 = vld [vmem:[%s2] sm:$0x1]
      %v325 = vlaneseq
      %v326 = vshrl.u32 %v325, 7
      %v327 = vsub.s32 0, %v326
      %v328 = vrot.slane %v323, %v327
      %v330 = vmul.f32 %v291, %v328
      %v331 = vmul.f32 %v292, %v328
      %v332 = vmul.f32 %v293, %v328
      %v333 = vmul.f32 %v294, %v328
      %v334 = vmul.f32 %v295, %v328
      %v335 = vmul.f32 %v296, %v328
      %v336 = vmul.f32 %v297, %v328
      %v337 = vmul.f32 %v298, %v328
      %v338 = vmul.f32 %v299, %v328
      %v339 = vmul.f32 %v300, %v328
      %v340 = vmul.f32 %v301, %v328
      %v341 = vmul.f32 %v302, %v328
      %v342 = vmul.f32 %v303, %v328
      %v343 = vmul.f32 %v304, %v328
      %v344 = vmul.f32 %v305, %v328
      %v345 = vmul.f32 %v306, %v328
      %v346 = vmul.f32 %v307, %v328
      %v347 = vmul.f32 %v308, %v328
      %v348 = vmul.f32 %v309, %v328
      %v349 = vmul.f32 %v310, %v328
      %v350 = vmul.f32 %v311, %v328
      %v351 = vmul.f32 %v312, %v328
      %v352 = vmul.f32 %v313, %v328
      %v353 = vmul.f32 %v314, %v328
      %v354 = vmul.f32 %v315, %v328
      %v355 = vmul.f32 %v316, %v328
      %v356 = vmul.f32 %v317, %v328
      %v357 = vmul.f32 %v318, %v328
      %v358 = vmul.f32 %v319, %v328
      %v359 = vmul.f32 %v320, %v328
      %v360 = vmul.f32 %v321, %v328
      %v361 = vmul.f32 %v322, %v328
      %v362 = vld [vmem:[%s3] sm:$0x1]
      %v364 = vlaneseq
      %v365 = vshrl.u32 %v364, 7
      %v366 = vsub.s32 0, %v365
      %v367 = vrot.slane %v362, %v366
      %v369 = vadd.f32 %v330, %v367
      %v370 = vadd.f32 %v331, %v367
      %v371 = vadd.f32 %v332, %v367
      %v372 = vadd.f32 %v333, %v367
      %v373 = vadd.f32 %v334, %v367
      %v374 = vadd.f32 %v335, %v367
      %v375 = vadd.f32 %v336, %v367
      %v376 = vadd.f32 %v337, %v367
      %v377 = vadd.f32 %v338, %v367
      %v378 = vadd.f32 %v339, %v367
      %v379 = vadd.f32 %v340, %v367
      %v380 = vadd.f32 %v341, %v367
      %v381 = vadd.f32 %v342, %v367
      %v382 = vadd.f32 %v343, %v367
      %v383 = vadd.f32 %v344, %v367
      %v384 = vadd.f32 %v345, %v367
      %v385 = vadd.f32 %v346, %v367
      %v386 = vadd.f32 %v347, %v367
      %v387 = vadd.f32 %v348, %v367
      %v388 = vadd.f32 %v349, %v367
      %v389 = vadd.f32 %v350, %v367
      %v390 = vadd.f32 %v351, %v367
      %v391 = vadd.f32 %v352, %v367
      %v392 = vadd.f32 %v353, %v367
      %v393 = vadd.f32 %v354, %v367
      %v394 = vadd.f32 %v355, %v367
      %v395 = vadd.f32 %v356, %v367
      %v396 = vadd.f32 %v357, %v367
      %v397 = vadd.f32 %v358, %v367
      %v398 = vadd.f32 %v359, %v367
      %v399 = vadd.f32 %v360, %v367
      %v400 = vadd.f32 %v361, %v367
      %vm401 = vcmask 31744
      %402 = vst.msk [vmem:[%s283] sm:$0xff] %vm401, %v369
      %403 = vst.msk [vmem:[%s283 + $0x8] sm:$0xff] %vm401, %v370
      %404 = vst.msk [vmem:[%s283 + $0x10] sm:$0xff] %vm401, %v371
      %405 = vst.msk [vmem:[%s283 + $0x18] sm:$0xff] %vm401, %v372
      %406 = vst.msk [vmem:[%s283 + $0x20] sm:$0xff] %vm401, %v373
      %407 = vst.msk [vmem:[%s283 + $0x28] sm:$0xff] %vm401, %v374
      %408 = vst.msk [vmem:[%s283 + $0x30] sm:$0xff] %vm401, %v375
      %409 = vst.msk [vmem:[%s283 + $0x38] sm:$0xff] %vm401, %v376
      %410 = vst.msk [vmem:[%s283 + $0x40] sm:$0xff] %vm401, %v377
      %411 = vst.msk [vmem:[%s283 + $0x48] sm:$0xff] %vm401, %v378
      %412 = vst.msk [vmem:[%s283 + $0x50] sm:$0xff] %vm401, %v379
      %413 = vst.msk [vmem:[%s283 + $0x58] sm:$0xff] %vm401, %v380
      %414 = vst.msk [vmem:[%s283 + $0x60] sm:$0xff] %vm401, %v381
      %415 = vst.msk [vmem:[%s283 + $0x68] sm:$0xff] %vm401, %v382
      %416 = vst.msk [vmem:[%s283 + $0x70] sm:$0xff] %vm401, %v383
      %417 = vst.msk [vmem:[%s283 + $0x78] sm:$0xff] %vm401, %v384
      %418 = vst.msk [vmem:[%s283 + $0x80] sm:$0xff] %vm401, %v385
      %419 = vst.msk [vmem:[%s283 + $0x88] sm:$0xff] %vm401, %v386
      %420 = vst.msk [vmem:[%s283 + $0x90] sm:$0xff] %vm401, %v387
      %421 = vst.msk [vmem:[%s283 + $0x98] sm:$0xff] %vm401, %v388
      %422 = vst.msk [vmem:[%s283 + $0xa0] sm:$0xff] %vm401, %v389
      %423 = vst.msk [vmem:[%s283 + $0xa8] sm:$0xff] %vm401, %v390
      %424 = vst.msk [vmem:[%s283 + $0xb0] sm:$0xff] %vm401, %v391
      %425 = vst.msk [vmem:[%s283 + $0xb8] sm:$0xff] %vm401, %v392
      %426 = vst.msk [vmem:[%s283 + $0xc0] sm:$0xff] %vm401, %v393
      %427 = vst.msk [vmem:[%s283 + $0xc8] sm:$0xff] %vm401, %v394
      %428 = vst.msk [vmem:[%s283 + $0xd0] sm:$0xff] %vm401, %v395
      %429 = vst.msk [vmem:[%s283 + $0xd8] sm:$0xff] %vm401, %v396
      %430 = vst.msk [vmem:[%s283 + $0xe0] sm:$0xff] %vm401, %v397
      %431 = vst.msk [vmem:[%s283 + $0xe8] sm:$0xff] %vm401, %v398
      %432 = vst.msk [vmem:[%s283 + $0xf0] sm:$0xff] %vm401, %v399
      %433 = vst.msk [vmem:[%s283 + $0xf8] sm:$0xff] %vm401, %v400
      %v434 = vld [vmem:[%s277] sm:$0xff]
      %v435 = vld [vmem:[%s277 + $0x8] sm:$0xff]
      %v436 = vld [vmem:[%s277 + $0x10] sm:$0xff]
      %v437 = vld [vmem:[%s277 + $0x18] sm:$0xff]
      %v438 = vld [vmem:[%s277 + $0x20] sm:$0xff]
      %v439 = vld [vmem:[%s277 + $0x28] sm:$0xff]
      %v440 = vld [vmem:[%s277 + $0x30] sm:$0xff]
      %v441 = vld [vmem:[%s277 + $0x38] sm:$0xff]
      %v442 = vld [vmem:[%s277 + $0x40] sm:$0xff]
      %v443 = vld [vmem:[%s277 + $0x48] sm:$0xff]
      %v444 = vld [vmem:[%s277 + $0x50] sm:$0xff]
      %v445 = vld [vmem:[%s277 + $0x58] sm:$0xff]
      %v446 = vld [vmem:[%s277 + $0x60] sm:$0xff]
      %v447 = vld [vmem:[%s277 + $0x68] sm:$0xff]
      %v448 = vld [vmem:[%s277 + $0x70] sm:$0xff]
      %v449 = vld [vmem:[%s277 + $0x78] sm:$0xff]
      %v450 = vld [vmem:[%s277 + $0x80] sm:$0xff]
      %v451 = vld [vmem:[%s277 + $0x88] sm:$0xff]
      %v452 = vld [vmem:[%s277 + $0x90] sm:$0xff]
      %v453 = vld [vmem:[%s277 + $0x98] sm:$0xff]
      %v454 = vld [vmem:[%s277 + $0xa0] sm:$0xff]
      %v455 = vld [vmem:[%s277 + $0xa8] sm:$0xff]
      %v456 = vld [vmem:[%s277 + $0xb0] sm:$0xff]
      %v457 = vld [vmem:[%s277 + $0xb8] sm:$0xff]
      %v458 = vld [vmem:[%s277 + $0xc0] sm:$0xff]
      %v459 = vld [vmem:[%s277 + $0xc8] sm:$0xff]
      %v460 = vld [vmem:[%s277 + $0xd0] sm:$0xff]
      %v461 = vld [vmem:[%s277 + $0xd8] sm:$0xff]
      %v462 = vld [vmem:[%s277 + $0xe0] sm:$0xff]
      %v463 = vld [vmem:[%s277 + $0xe8] sm:$0xff]
      %v464 = vld [vmem:[%s277 + $0xf0] sm:$0xff]
      %v465 = vld [vmem:[%s277 + $0xf8] sm:$0xff]
      %v466 = vld [vmem:[%s4] sm:$0x1]
      %v468 = vlaneseq
      %v469 = vshrl.u32 %v468, 7
      %v470 = vsub.s32 0, %v469
      %v471 = vrot.slane %v466, %v470
      %v473 = vadd.f32 %v434, %v471
      %v474 = vadd.f32 %v435, %v471
      %v475 = vadd.f32 %v436, %v471
      %v476 = vadd.f32 %v437, %v471
      %v477 = vadd.f32 %v438, %v471
      %v478 = vadd.f32 %v439, %v471
      %v479 = vadd.f32 %v440, %v471
      %v480 = vadd.f32 %v441, %v471
      %v481 = vadd.f32 %v442, %v471
      %v482 = vadd.f32 %v443, %v471
      %v483 = vadd.f32 %v444, %v471
      %v484 = vadd.f32 %v445, %v471
      %v485 = vadd.f32 %v446, %v471
      %v486 = vadd.f32 %v447, %v471
      %v487 = vadd.f32 %v448, %v471
      %v488 = vadd.f32 %v449, %v471
      %v489 = vadd.f32 %v450, %v471
      %v490 = vadd.f32 %v451, %v471
      %v491 = vadd.f32 %v452, %v471
      %v492 = vadd.f32 %v453, %v471
      %v493 = vadd.f32 %v454, %v471
      %v494 = vadd.f32 %v455, %v471
      %v495 = vadd.f32 %v456, %v471
      %v496 = vadd.f32 %v457, %v471
      %v497 = vadd.f32 %v458, %v471
      %v498 = vadd.f32 %v459, %v471
      %v499 = vadd.f32 %v460, %v471
      %v500 = vadd.f32 %v461, %v471
      %v501 = vadd.f32 %v462, %v471
      %v502 = vadd.f32 %v463, %v471
      %v503 = vadd.f32 %v464, %v471
      %v504 = vadd.f32 %v465, %v471
      %505 = vst.msk [vmem:[%s289] sm:$0xff] %vm401, %v473
      %506 = vst.msk [vmem:[%s289 + $0x8] sm:$0xff] %vm401, %v474
      %507 = vst.msk [vmem:[%s289 + $0x10] sm:$0xff] %vm401, %v475
      %508 = vst.msk [vmem:[%s289 + $0x18] sm:$0xff] %vm401, %v476
      %509 = vst.msk [vmem:[%s289 + $0x20] sm:$0xff] %vm401, %v477
      %510 = vst.msk [vmem:[%s289 + $0x28] sm:$0xff] %vm401, %v478
      %511 = vst.msk [vmem:[%s289 + $0x30] sm:$0xff] %vm401, %v479
      %512 = vst.msk [vmem:[%s289 + $0x38] sm:$0xff] %vm401, %v480
      %513 = vst.msk [vmem:[%s289 + $0x40] sm:$0xff] %vm401, %v481
      %514 = vst.msk [vmem:[%s289 + $0x48] sm:$0xff] %vm401, %v482
      %515 = vst.msk [vmem:[%s289 + $0x50] sm:$0xff] %vm401, %v483
      %516 = vst.msk [vmem:[%s289 + $0x58] sm:$0xff] %vm401, %v484
      %517 = vst.msk [vmem:[%s289 + $0x60] sm:$0xff] %vm401, %v485
      %518 = vst.msk [vmem:[%s289 + $0x68] sm:$0xff] %vm401, %v486
      %519 = vst.msk [vmem:[%s289 + $0x70] sm:$0xff] %vm401, %v487
      %520 = vst.msk [vmem:[%s289 + $0x78] sm:$0xff] %vm401, %v488
      %521 = vst.msk [vmem:[%s289 + $0x80] sm:$0xff] %vm401, %v489
      %522 = vst.msk [vmem:[%s289 + $0x88] sm:$0xff] %vm401, %v490
      %523 = vst.msk [vmem:[%s289 + $0x90] sm:$0xff] %vm401, %v491
      %524 = vst.msk [vmem:[%s289 + $0x98] sm:$0xff] %vm401, %v492
      %525 = vst.msk [vmem:[%s289 + $0xa0] sm:$0xff] %vm401, %v493
      %526 = vst.msk [vmem:[%s289 + $0xa8] sm:$0xff] %vm401, %v494
      %527 = vst.msk [vmem:[%s289 + $0xb0] sm:$0xff] %vm401, %v495
      %528 = vst.msk [vmem:[%s289 + $0xb8] sm:$0xff] %vm401, %v496
      %529 = vst.msk [vmem:[%s289 + $0xc0] sm:$0xff] %vm401, %v497
      %530 = vst.msk [vmem:[%s289 + $0xc8] sm:$0xff] %vm401, %v498
      %531 = vst.msk [vmem:[%s289 + $0xd0] sm:$0xff] %vm401, %v499
      %532 = vst.msk [vmem:[%s289 + $0xd8] sm:$0xff] %vm401, %v500
      %533 = vst.msk [vmem:[%s289 + $0xe0] sm:$0xff] %vm401, %v501
      %534 = vst.msk [vmem:[%s289 + $0xe8] sm:$0xff] %vm401, %v502
      %535 = vst.msk [vmem:[%s289 + $0xf0] sm:$0xff] %vm401, %v503
      %536 = vst.msk [vmem:[%s289 + $0xf8] sm:$0xff] %vm401, %v504
      %s537 = smul.u32 32, %s18
      %p538 = scmp.lt.s32.totalorder %s537, 63
      %s539 = scalar_select %p538, %s537, 63
      %s540 = smul.addr %s539, 8
      %s541 = scalar_lea.vmem %s5, %s540
      %s542 = smul.u32 32, %s18
      %p543 = scmp.lt.s32.totalorder %s542, 63
      %s544 = scalar_select %p543, %s542, 63
      %s545 = smul.addr %s544, 8
      %s546 = scalar_lea.vmem %s6, %s545
      // Predicated region
      $region41: #{maf_forward.5} parent=39 // pred_check
        %p547 = pneg %p151
      $region42: #{maf_forward.5} parent=39 // pred_check_branch
        %549 = sbr.rel (%p547) target = $region44
      $region43: #{maf_forward.5} parent=39 // pred_region
        %s550 = smul.u32 32, %s18
      $region44: #{maf_forward.5} parent=39 // pred_fallthru
        _
      // Predicated region
      $region45: #{maf_forward.5} parent=39 // pred_check
        %p551 = pneg %p177
      $region46: #{maf_forward.5} parent=39 // pred_check_branch
        %553 = sbr.rel (%p551) target = $region48
      $region47: #{maf_forward.5} parent=39 // pred_region
        %s554 = smul.u32 32, %s18
      $region48: #{maf_forward.5} parent=39 // pred_fallthru
        _
    $region40: #{maf_forward.5} parent=5 // pred_fallthru
      _
    %p555 = scmp.le.s32.totalorder 2, %s13
    // Predicated region
    $region49: #{maf_forward.5} parent=5 // pred_check
      %p556 = pneg %p555
    $region50: #{maf_forward.5} parent=5 // pred_check_branch
      %558 = sbr.rel (%p556) target = $region52
    $region51: #{maf_forward.5} parent=5 // pred_region
      %s559 = ssub.s32 %s13, 2
      // Predicated region
      $region53: #{maf_forward.5} parent=51 // pred_check
        %p560 = pneg %p157
      $region54: #{maf_forward.5} parent=51 // pred_check_branch
        %562 = sbr.rel (%p560) target = $region56
      $region55: #{maf_forward.5} parent=51 // pred_region
        %s563 = smul.u32 32, %s19
        %p564 = scmp.lt.s32.totalorder %s563, 63
        %s565 = scalar_select %p564, %s563, 63
        %s566 = smul.addr %s565, 8
        %s567 = scalar_lea.vmem %s5, %s566
      $region56: #{maf_forward.5} parent=51 // pred_fallthru
        _
      // Predicated region
      $region57: #{maf_forward.5} parent=51 // pred_check
        %p568 = pneg %p183
      $region58: #{maf_forward.5} parent=51 // pred_check_branch
        %570 = sbr.rel (%p568) target = $region60
      $region59: #{maf_forward.5} parent=51 // pred_region
        %s571 = smul.u32 32, %s19
        %p572 = scmp.lt.s32.totalorder %s571, 63
        %s573 = scalar_select %p572, %s571, 63
        %s574 = smul.addr %s573, 8
        %s575 = scalar_lea.vmem %s6, %s574
      $region60: #{maf_forward.5} parent=51 // pred_fallthru
        _
    $region52: #{maf_forward.5} parent=5 // pred_fallthru
      _
  $region6: #{maf_forward.5} parent=0 // loop_footer
    %s17 = sadd.s32 1, %s13
  $region7: #{maf_forward.5} parent=0 // loop_footer_branch
    %12 = sbr.rel target = $region3
  $region8: #{maf_forward.5} parent=0 // loop_exit
    _

// kernel: maf_forward.3
$region0: #{maf_forward.3}
  #allocation0 [shape = 'u32[]', space=smem, size = 0x4, offset = 0x4, fixed_abs, tag = 'smem constant byte address 0x4 - core index']
  #allocation1 [shape = 'u32[144,128]{1,0:T(1,128)}', space=vmem, size = 0x12000, scoped, tag = 'internal scratch']
  %s0 = inlined_call_operand.vmem [shape: f32[512,10], index: 0, kind: input, shape index: {}]
  %s1 = inlined_call_operand.vmem [shape: f32[512,4], index: 1, kind: input, shape index: {}]
  %s2 = inlined_call_operand.vmem [shape: f32[1,10], index: 2, kind: input, shape index: {}]
  %s3 = inlined_call_operand.vmem [shape: f32[1,10], index: 3, kind: input, shape index: {}]
  %s4 = inlined_call_operand.vmem [shape: f32[10,32], index: 4, kind: input, shape index: {}]
  %s5 = inlined_call_operand.vmem [shape: f32[1,32], index: 5, kind: input, shape index: {}]
  %s6 = inlined_call_operand.vmem [shape: f32[1,32,32], index: 6, kind: input, shape index: {}]
  %s7 = inlined_call_operand.vmem [shape: f32[1,1,32], index: 7, kind: input, shape index: {}]
  %s8 = inlined_call_operand.vmem [shape: f32[32,4], index: 8, kind: input, shape index: {}]
  %s9 = inlined_call_operand.vmem [shape: f32[1,4], index: 9, kind: input, shape index: {}]
  %s10 = inlined_call_operand.vmem [shape: f32[32,4], index: 10, kind: input, shape index: {}]
  %s11 = inlined_call_operand.vmem [shape: f32[1,4], index: 11, kind: input, shape index: {}]
  %s12 = inlined_call_operand.vmem [shape: f32[512,10], index: 12, kind: output, shape index: {0}]
  %s13 = inlined_call_operand.vmem [shape: f32[512,4], index: 13, kind: output, shape index: {1}]
  %s14 = inlined_call_operand.vmem [shape: f32[2,8,4], index: 14, kind: output, shape index: {2}]
  %s15 = inlined_call_operand.vmem [shape: f32[2,8,4], index: 15, kind: output, shape index: {3}]
  %16 = xla_tuple %s12, %s13, %s14, %s15
  %s17 = sld [smem:[#allocation0]]
  $region105: #{maf_forward.3} parent=0
    _
  %s19 = ssub.s32 1, %s17
  %s20 = scalar_select 0, %s19, %s17
  loop: start=0, step=1, limit=4
  $region2: #{maf_forward.3} parent=0 // loop_pre_header
    _
  $region3: #{maf_forward.3} parent=0 // loop_header
    %s22 = sphi 0, %s26
    %p23 = scmp.ge.s32.totalorder %s22, 4
    %s32 = sphi 0, %s34
    %s35 = sphi 0, %s32
    %s36 = sphi 0, %s35
    %s52 = sphi 0, %s36
    %s58 = sphi 0, %s60
    %s61 = sphi 0, %s58
    %s62 = sphi 0, %s61
    %s78 = sphi 0, %s62
    %s82 = sphi 0, %s82
    %s84 = sphi 0, %s82
    %s85 = sphi 0, %s84
    %s99 = sphi 0, %s85
    %s103 = sphi 0, %s103
    %s105 = sphi 0, %s103
    %s106 = sphi 0, %s105
    %s120 = sphi 0, %s106
    %s124 = sphi 0, %s124
    %s126 = sphi 0, %s124
    %s127 = sphi 0, %s126
    %s141 = sphi 0, %s127
    %s145 = sphi 0, %s145
    %s147 = sphi 0, %s145
    %s148 = sphi 0, %s147
    %s162 = sphi 0, %s148
    %s166 = sphi 0, %s166
    %s168 = sphi 0, %s166
    %s169 = sphi 0, %s168
    %s183 = sphi 0, %s169
    %s187 = sphi 0, %s187
    %s189 = sphi 0, %s187
    %s190 = sphi 0, %s189
    %s204 = sphi 0, %s190
    %s208 = sphi 0, %s208
    %s210 = sphi 0, %s208
    %s211 = sphi 0, %s210
    %s225 = sphi 0, %s211
    %s229 = sphi 0, %s229
    %s231 = sphi 0, %s229
    %s232 = sphi 0, %s231
    %s246 = sphi 0, %s232
    %s250 = sphi 0, %s250
    %s252 = sphi 0, %s250
    %s253 = sphi 0, %s252
    %s267 = sphi 0, %s253
    %s271 = sphi 0, %s271
    %s273 = sphi 0, %s271
    %s274 = sphi 0, %s273
    %s288 = sphi 0, %s274
    %s294 = sphi 0, %s296
    %s297 = sphi 0, %s294
    %s298 = sphi 0, %s297
    %s314 = sphi 0, %s298
    %s320 = sphi 0, %s322
    %s323 = sphi 0, %s320
    %s324 = sphi 0, %s323
    %s340 = sphi 0, %s324
    %s346 = sphi 0, %s348
    %s349 = sphi 0, %s346
    %s350 = sphi 0, %s349
    %s366 = sphi 0, %s350
    %s372 = sphi 0, %s374
    %s375 = sphi 0, %s372
    %s376 = sphi 0, %s375
    %s392 = sphi 0, %s376
  $region4: #{maf_forward.3} parent=0 // loop_header_branch
    %25 = sbr.rel (%p23) target = $region8
  $region5: #{maf_forward.3} parent=0 // loop_body
    %s27 = ssub.s32 %s22, 1
    %s28 = ssub.s32 %s22, 2
    %s29 = sadd.s32 %s22, 1
    %s30 = ssub.s32 %s22, %s29
    %p31 = scmp.eq.s32.totalorder %s30, 0
    %s33 = sadd.s32 %s32, 1
    %s34 = scalar_select %p31, %s32, %s33
    %p37 = pneg %p31
    %p38 = scmp.eq.s32.totalorder %s22, 1
    %p39 = por %p37, %p38
    %p40 = scmp.ne.s32.totalorder %s32, %s35
    %p41 = scmp.eq.s32.totalorder %s22, 0
    %p42 = por %p40, %p41
    %p43 = scmp.ne.s32.totalorder %s32, %s35
    %p44 = scmp.eq.s32.totalorder %s27, 1
    %p45 = por %p43, %p44
    %p46 = scmp.ne.s32.totalorder %s35, %s36
    %p47 = scmp.eq.s32.totalorder %s27, 0
    %p48 = por %p46, %p47
    %p49 = scmp.ne.s32.totalorder %s35, %s36
    %p50 = scmp.eq.s32.totalorder %s28, 1
    %p51 = por %p49, %p50
    %p53 = scmp.ne.s32.totalorder %s36, %s52
    %p54 = scmp.eq.s32.totalorder %s28, 0
    %p55 = por %p53, %p54
    %s56 = ssub.s32 %s22, %s29
    %p57 = scmp.eq.s32.totalorder %s56, 0
    %s59 = sadd.s32 %s58, 1
    %s60 = scalar_select %p57, %s58, %s59
    %p63 = pneg %p57
    %p64 = scmp.eq.s32.totalorder %s22, 1
    %p65 = por %p63, %p64
    %p66 = scmp.ne.s32.totalorder %s58, %s61
    %p67 = scmp.eq.s32.totalorder %s22, 0
    %p68 = por %p66, %p67
    %p69 = scmp.ne.s32.totalorder %s58, %s61
    %p70 = scmp.eq.s32.totalorder %s27, 1
    %p71 = por %p69, %p70
    %p72 = scmp.ne.s32.totalorder %s61, %s62
    %p73 = scmp.eq.s32.totalorder %s27, 0
    %p74 = por %p72, %p73
    %p75 = scmp.ne.s32.totalorder %s61, %s62
    %p76 = scmp.eq.s32.totalorder %s28, 1
    %p77 = por %p75, %p76
    %p79 = scmp.ne.s32.totalorder %s62, %s78
    %p80 = scmp.eq.s32.totalorder %s28, 0
    %p81 = por %p79, %p80
    %s83 = sadd.s32 %s82, 1
    %p86 = scmp.eq.s32.totalorder %s22, 1
    %p87 = scmp.ne.s32.totalorder %s82, %s84
    %p88 = scmp.eq.s32.totalorder %s22, 0
    %p89 = por %p87, %p88
    %p90 = scmp.ne.s32.totalorder %s82, %s84
    %p91 = scmp.eq.s32.totalorder %s27, 1
    %p92 = por %p90, %p91
    %p93 = scmp.ne.s32.totalorder %s84, %s85
    %p94 = scmp.eq.s32.totalorder %s27, 0
    %p95 = por %p93, %p94
    %p96 = scmp.ne.s32.totalorder %s84, %s85
    %p97 = scmp.eq.s32.totalorder %s28, 1
    %p98 = por %p96, %p97
    %p100 = scmp.ne.s32.totalorder %s85, %s99
    %p101 = scmp.eq.s32.totalorder %s28, 0
    %p102 = por %p100, %p101
    %s104 = sadd.s32 %s103, 1
    %p107 = scmp.eq.s32.totalorder %s22, 1
    %p108 = scmp.ne.s32.totalorder %s103, %s105
    %p109 = scmp.eq.s32.totalorder %s22, 0
    %p110 = por %p108, %p109
    %p111 = scmp.ne.s32.totalorder %s103, %s105
    %p112 = scmp.eq.s32.totalorder %s27, 1
    %p113 = por %p111, %p112
    %p114 = scmp.ne.s32.totalorder %s105, %s106
    %p115 = scmp.eq.s32.totalorder %s27, 0
    %p116 = por %p114, %p115
    %p117 = scmp.ne.s32.totalorder %s105, %s106
    %p118 = scmp.eq.s32.totalorder %s28, 1
    %p119 = por %p117, %p118
    %p121 = scmp.ne.s32.totalorder %s106, %s120
    %p122 = scmp.eq.s32.totalorder %s28, 0
    %p123 = por %p121, %p122
    %s125 = sadd.s32 %s124, 1
    %p128 = scmp.eq.s32.totalorder %s22, 1
    %p129 = scmp.ne.s32.totalorder %s124, %s126
    %p130 = scmp.eq.s32.totalorder %s22, 0
    %p131 = por %p129, %p130
    %p132 = scmp.ne.s32.totalorder %s124, %s126
    %p133 = scmp.eq.s32.totalorder %s27, 1
    %p134 = por %p132, %p133
    %p135 = scmp.ne.s32.totalorder %s126, %s127
    %p136 = scmp.eq.s32.totalorder %s27, 0
    %p137 = por %p135, %p136
    %p138 = scmp.ne.s32.totalorder %s126, %s127
    %p139 = scmp.eq.s32.totalorder %s28, 1
    %p140 = por %p138, %p139
    %p142 = scmp.ne.s32.totalorder %s127, %s141
    %p143 = scmp.eq.s32.totalorder %s28, 0
    %p144 = por %p142, %p143
    %s146 = sadd.s32 %s145, 1
    %p149 = scmp.eq.s32.totalorder %s22, 1
    %p150 = scmp.ne.s32.totalorder %s145, %s147
    %p151 = scmp.eq.s32.totalorder %s22, 0
    %p152 = por %p150, %p151
    %p153 = scmp.ne.s32.totalorder %s145, %s147
    %p154 = scmp.eq.s32.totalorder %s27, 1
    %p155 = por %p153, %p154
    %p156 = scmp.ne.s32.totalorder %s147, %s148
    %p157 = scmp.eq.s32.totalorder %s27, 0
    %p158 = por %p156, %p157
    %p159 = scmp.ne.s32.totalorder %s147, %s148
    %p160 = scmp.eq.s32.totalorder %s28, 1
    %p161 = por %p159, %p160
    %p163 = scmp.ne.s32.totalorder %s148, %s162
    %p164 = scmp.eq.s32.totalorder %s28, 0
    %p165 = por %p163, %p164
    %s167 = sadd.s32 %s166, 1
    %p170 = scmp.eq.s32.totalorder %s22, 1
    %p171 = scmp.ne.s32.totalorder %s166, %s168
    %p172 = scmp.eq.s32.totalorder %s22, 0
    %p173 = por %p171, %p172
    %p174 = scmp.ne.s32.totalorder %s166, %s168
    %p175 = scmp.eq.s32.totalorder %s27, 1
    %p176 = por %p174, %p175
    %p177 = scmp.ne.s32.totalorder %s168, %s169
    %p178 = scmp.eq.s32.totalorder %s27, 0
    %p179 = por %p177, %p178
    %p180 = scmp.ne.s32.totalorder %s168, %s169
    %p181 = scmp.eq.s32.totalorder %s28, 1
    %p182 = por %p180, %p181
    %p184 = scmp.ne.s32.totalorder %s169, %s183
    %p185 = scmp.eq.s32.totalorder %s28, 0
    %p186 = por %p184, %p185
    %s188 = sadd.s32 %s187, 1
    %p191 = scmp.eq.s32.totalorder %s22, 1
    %p192 = scmp.ne.s32.totalorder %s187, %s189
    %p193 = scmp.eq.s32.totalorder %s22, 0
    %p194 = por %p192, %p193
    %p195 = scmp.ne.s32.totalorder %s187, %s189
    %p196 = scmp.eq.s32.totalorder %s27, 1
    %p197 = por %p195, %p196
    %p198 = scmp.ne.s32.totalorder %s189, %s190
    %p199 = scmp.eq.s32.totalorder %s27, 0
    %p200 = por %p198, %p199
    %p201 = scmp.ne.s32.totalorder %s189, %s190
    %p202 = scmp.eq.s32.totalorder %s28, 1
    %p203 = por %p201, %p202
    %p205 = scmp.ne.s32.totalorder %s190, %s204
    %p206 = scmp.eq.s32.totalorder %s28, 0
    %p207 = por %p205, %p206
    %s209 = sadd.s32 %s208, 1
    %p212 = scmp.eq.s32.totalorder %s22, 1
    %p213 = scmp.ne.s32.totalorder %s208, %s210
    %p214 = scmp.eq.s32.totalorder %s22, 0
    %p215 = por %p213, %p214
    %p216 = scmp.ne.s32.totalorder %s208, %s210
    %p217 = scmp.eq.s32.totalorder %s27, 1
    %p218 = por %p216, %p217
    %p219 = scmp.ne.s32.totalorder %s210, %s211
    %p220 = scmp.eq.s32.totalorder %s27, 0
    %p221 = por %p219, %p220
    %p222 = scmp.ne.s32.totalorder %s210, %s211
    %p223 = scmp.eq.s32.totalorder %s28, 1
    %p224 = por %p222, %p223
    %p226 = scmp.ne.s32.totalorder %s211, %s225
    %p227 = scmp.eq.s32.totalorder %s28, 0
    %p228 = por %p226, %p227
    %s230 = sadd.s32 %s229, 1
    %p233 = scmp.eq.s32.totalorder %s22, 1
    %p234 = scmp.ne.s32.totalorder %s229, %s231
    %p235 = scmp.eq.s32.totalorder %s22, 0
    %p236 = por %p234, %p235
    %p237 = scmp.ne.s32.totalorder %s229, %s231
    %p238 = scmp.eq.s32.totalorder %s27, 1
    %p239 = por %p237, %p238
    %p240 = scmp.ne.s32.totalorder %s231, %s232
    %p241 = scmp.eq.s32.totalorder %s27, 0
    %p242 = por %p240, %p241
    %p243 = scmp.ne.s32.totalorder %s231, %s232
    %p244 = scmp.eq.s32.totalorder %s28, 1
    %p245 = por %p243, %p244
    %p247 = scmp.ne.s32.totalorder %s232, %s246
    %p248 = scmp.eq.s32.totalorder %s28, 0
    %p249 = por %p247, %p248
    %s251 = sadd.s32 %s250, 1
    %p254 = scmp.eq.s32.totalorder %s22, 1
    %p255 = scmp.ne.s32.totalorder %s250, %s252
    %p256 = scmp.eq.s32.totalorder %s22, 0
    %p257 = por %p255, %p256
    %p258 = scmp.ne.s32.totalorder %s250, %s252
    %p259 = scmp.eq.s32.totalorder %s27, 1
    %p260 = por %p258, %p259
    %p261 = scmp.ne.s32.totalorder %s252, %s253
    %p262 = scmp.eq.s32.totalorder %s27, 0
    %p263 = por %p261, %p262
    %p264 = scmp.ne.s32.totalorder %s252, %s253
    %p265 = scmp.eq.s32.totalorder %s28, 1
    %p266 = por %p264, %p265
    %p268 = scmp.ne.s32.totalorder %s253, %s267
    %p269 = scmp.eq.s32.totalorder %s28, 0
    %p270 = por %p268, %p269
    %s272 = sadd.s32 %s271, 1
    %p275 = scmp.eq.s32.totalorder %s22, 1
    %p276 = scmp.ne.s32.totalorder %s271, %s273
    %p277 = scmp.eq.s32.totalorder %s22, 0
    %p278 = por %p276, %p277
    %p279 = scmp.ne.s32.totalorder %s271, %s273
    %p280 = scmp.eq.s32.totalorder %s27, 1
    %p281 = por %p279, %p280
    %p282 = scmp.ne.s32.totalorder %s273, %s274
    %p283 = scmp.eq.s32.totalorder %s27, 0
    %p284 = por %p282, %p283
    %p285 = scmp.ne.s32.totalorder %s273, %s274
    %p286 = scmp.eq.s32.totalorder %s28, 1
    %p287 = por %p285, %p286
    %p289 = scmp.ne.s32.totalorder %s274, %s288
    %p290 = scmp.eq.s32.totalorder %s28, 0
    %p291 = por %p289, %p290
    %s292 = ssub.s32 %s22, %s29
    %p293 = scmp.eq.s32.totalorder %s292, 0
    %s295 = sadd.s32 %s294, 1
    %s296 = scalar_select %p293, %s294, %s295
    %p299 = pneg %p293
    %p300 = scmp.eq.s32.totalorder %s22, 1
    %p301 = por %p299, %p300
    %p302 = scmp.ne.s32.totalorder %s294, %s297
    %p303 = scmp.eq.s32.totalorder %s22, 0
    %p304 = por %p302, %p303
    %p305 = scmp.ne.s32.totalorder %s294, %s297
    %p306 = scmp.eq.s32.totalorder %s27, 1
    %p307 = por %p305, %p306
    %p308 = scmp.ne.s32.totalorder %s297, %s298
    %p309 = scmp.eq.s32.totalorder %s27, 0
    %p310 = por %p308, %p309
    %p311 = scmp.ne.s32.totalorder %s297, %s298
    %p312 = scmp.eq.s32.totalorder %s28, 1
    %p313 = por %p311, %p312
    %p315 = scmp.ne.s32.totalorder %s298, %s314
    %p316 = scmp.eq.s32.totalorder %s28, 0
    %p317 = por %p315, %p316
    %s318 = ssub.s32 %s22, %s29
    %p319 = scmp.eq.s32.totalorder %s318, 0
    %s321 = sadd.s32 %s320, 1
    %s322 = scalar_select %p319, %s320, %s321
    %p325 = pneg %p319
    %p326 = scmp.eq.s32.totalorder %s22, 1
    %p327 = por %p325, %p326
    %p328 = scmp.ne.s32.totalorder %s320, %s323
    %p329 = scmp.eq.s32.totalorder %s22, 0
    %p330 = por %p328, %p329
    %p331 = scmp.ne.s32.totalorder %s320, %s323
    %p332 = scmp.eq.s32.totalorder %s27, 1
    %p333 = por %p331, %p332
    %p334 = scmp.ne.s32.totalorder %s323, %s324
    %p335 = scmp.eq.s32.totalorder %s27, 0
    %p336 = por %p334, %p335
    %p337 = scmp.ne.s32.totalorder %s323, %s324
    %p338 = scmp.eq.s32.totalorder %s28, 1
    %p339 = por %p337, %p338
    %p341 = scmp.ne.s32.totalorder %s324, %s340
    %p342 = scmp.eq.s32.totalorder %s28, 0
    %p343 = por %p341, %p342
    %s344 = ssub.s32 %s22, %s29
    %p345 = scmp.eq.s32.totalorder %s344, 0
    %s347 = sadd.s32 %s346, 1
    %s348 = scalar_select %p345, %s346, %s347
    %p351 = pneg %p345
    %p352 = scmp.eq.s32.totalorder %s22, 1
    %p353 = por %p351, %p352
    %p354 = scmp.ne.s32.totalorder %s346, %s349
    %p355 = scmp.eq.s32.totalorder %s22, 0
    %p356 = por %p354, %p355
    %p357 = scmp.ne.s32.totalorder %s346, %s349
    %p358 = scmp.eq.s32.totalorder %s27, 1
    %p359 = por %p357, %p358
    %p360 = scmp.ne.s32.totalorder %s349, %s350
    %p361 = scmp.eq.s32.totalorder %s27, 0
    %p362 = por %p360, %p361
    %p363 = scmp.ne.s32.totalorder %s349, %s350
    %p364 = scmp.eq.s32.totalorder %s28, 1
    %p365 = por %p363, %p364
    %p367 = scmp.ne.s32.totalorder %s350, %s366
    %p368 = scmp.eq.s32.totalorder %s28, 0
    %p369 = por %p367, %p368
    %s370 = ssub.s32 %s22, %s29
    %p371 = scmp.eq.s32.totalorder %s370, 0
    %s373 = sadd.s32 %s372, 1
    %s374 = scalar_select %p371, %s372, %s373
    %p377 = pneg %p371
    %p378 = scmp.eq.s32.totalorder %s22, 1
    %p379 = por %p377, %p378
    %p380 = scmp.ne.s32.totalorder %s372, %s375
    %p381 = scmp.eq.s32.totalorder %s22, 0
    %p382 = por %p380, %p381
    %p383 = scmp.ne.s32.totalorder %s372, %s375
    %p384 = scmp.eq.s32.totalorder %s27, 1
    %p385 = por %p383, %p384
    %p386 = scmp.ne.s32.totalorder %s375, %s376
    %p387 = scmp.eq.s32.totalorder %s27, 0
    %p388 = por %p386, %p387
    %p389 = scmp.ne.s32.totalorder %s375, %s376
    %p390 = scmp.eq.s32.totalorder %s28, 1
    %p391 = por %p389, %p390
    %p393 = scmp.ne.s32.totalorder %s376, %s392
    %p394 = scmp.eq.s32.totalorder %s28, 0
    %p395 = por %p393, %p394
    %p396 = scmp.le.s32.totalorder 1, %s22
    %p397 = scmp.lt.s32.totalorder %s22, 3
    %p398 = pnand %p396, %p397
    %p399 = pneg %p398
    // Predicated region
    $region9: #{maf_forward.3} parent=5 // pred_check
      _
    $region10: #{maf_forward.3} parent=5 // pred_check_branch
      %401 = sbr.rel (%p398) target = $region12
    $region11: #{maf_forward.3} parent=5 // pred_region
      %s402 = ssub.s32 %s22, 1
      // Predicated region
      $region13: #{maf_forward.3} parent=11 // pred_check
        %p403 = pneg %p95
      $region14: #{maf_forward.3} parent=11 // pred_check_branch
        %405 = sbr.rel (%p403) target = $region16
      $region15: #{maf_forward.3} parent=11 // pred_region
        _
      $region16: #{maf_forward.3} parent=11 // pred_fallthru
        _
      // Predicated region
      $region17: #{maf_forward.3} parent=11 // pred_check
        %p406 = pneg %p116
      $region18: #{maf_forward.3} parent=11 // pred_check_branch
        %408 = sbr.rel (%p406) target = $region20
      $region19: #{maf_forward.3} parent=11 // pred_region
        _
      $region20: #{maf_forward.3} parent=11 // pred_fallthru
        _
      // Predicated region
      $region21: #{maf_forward.3} parent=11 // pred_check
        %p409 = pneg %p137
      $region22: #{maf_forward.3} parent=11 // pred_check_branch
        %411 = sbr.rel (%p409) target = $region24
      $region23: #{maf_forward.3} parent=11 // pred_region
        _
      $region24: #{maf_forward.3} parent=11 // pred_fallthru
        _
      // Predicated region
      $region25: #{maf_forward.3} parent=11 // pred_check
        %p412 = pneg %p158
      $region26: #{maf_forward.3} parent=11 // pred_check_branch
        %414 = sbr.rel (%p412) target = $region28
      $region27: #{maf_forward.3} parent=11 // pred_region
        _
      $region28: #{maf_forward.3} parent=11 // pred_fallthru
        _
      // Predicated region
      $region29: #{maf_forward.3} parent=11 // pred_check
        %p415 = pneg %p179
      $region30: #{maf_forward.3} parent=11 // pred_check_branch
        %417 = sbr.rel (%p415) target = $region32
      $region31: #{maf_forward.3} parent=11 // pred_region
        _
      $region32: #{maf_forward.3} parent=11 // pred_fallthru
        _
      // Predicated region
      $region33: #{maf_forward.3} parent=11 // pred_check
        %p418 = pneg %p200
      $region34: #{maf_forward.3} parent=11 // pred_check_branch
        %420 = sbr.rel (%p418) target = $region36
      $region35: #{maf_forward.3} parent=11 // pred_region
        _
      $region36: #{maf_forward.3} parent=11 // pred_fallthru
        _
      // Predicated region
      $region37: #{maf_forward.3} parent=11 // pred_check
        %p421 = pneg %p221
      $region38: #{maf_forward.3} parent=11 // pred_check_branch
        %423 = sbr.rel (%p421) target = $region40
      $region39: #{maf_forward.3} parent=11 // pred_region
        _
      $region40: #{maf_forward.3} parent=11 // pred_fallthru
        _
      // Predicated region
      $region41: #{maf_forward.3} parent=11 // pred_check
        %p424 = pneg %p242
      $region42: #{maf_forward.3} parent=11 // pred_check_branch
        %426 = sbr.rel (%p424) target = $region44
      $region43: #{maf_forward.3} parent=11 // pred_region
        _
      $region44: #{maf_forward.3} parent=11 // pred_fallthru
        _
      // Predicated region
      $region45: #{maf_forward.3} parent=11 // pred_check
        %p427 = pneg %p263
      $region46: #{maf_forward.3} parent=11 // pred_check_branch
        %429 = sbr.rel (%p427) target = $region48
      $region47: #{maf_forward.3} parent=11 // pred_region
        _
      $region48: #{maf_forward.3} parent=11 // pred_fallthru
        _
      // Predicated region
      $region49: #{maf_forward.3} parent=11 // pred_check
        %p430 = pneg %p284
      $region50: #{maf_forward.3} parent=11 // pred_check_branch
        %432 = sbr.rel (%p430) target = $region52
      $region51: #{maf_forward.3} parent=11 // pred_region
        _
      $region52: #{maf_forward.3} parent=11 // pred_fallthru
        _
    $region12: #{maf_forward.3} parent=5 // pred_fallthru
      _
    %p433 = scmp.lt.s32.totalorder %s22, 2
    // Predicated region
    $region53: #{maf_forward.3} parent=5 // pred_check
      %p434 = pneg %p433
    $region54: #{maf_forward.3} parent=5 // pred_check_branch
      %436 = sbr.rel (%p434) target = $region56
    $region55: #{maf_forward.3} parent=5 // pred_region
      // Predicated region
      $region57: #{maf_forward.3} parent=55 // pred_check
        %p437 = pneg %p42
      $region58: #{maf_forward.3} parent=55 // pred_check_branch
        %439 = sbr.rel (%p437) target = $region60
      $region59: #{maf_forward.3} parent=55 // pred_region
        %s440 = smul.u32 32, %s22
        %p441 = scmp.lt.s32.totalorder %s440, 63
        %s442 = scalar_select %p441, %s440, 63
        %s443 = smul.addr %s442, 8
        %s444 = scalar_lea.vmem %s0, %s443
        %s445 = smul.u32 32, %s22
      $region60: #{maf_forward.3} parent=55 // pred_fallthru
        _
      // Predicated region
      $region61: #{maf_forward.3} parent=55 // pred_check
        %p446 = pneg %p68
      $region62: #{maf_forward.3} parent=55 // pred_check_branch
        %448 = sbr.rel (%p446) target = $region64
      $region63: #{maf_forward.3} parent=55 // pred_region
        %s449 = smul.u32 32, %s22
        %p450 = scmp.lt.s32.totalorder %s449, 63
        %s451 = scalar_select %p450, %s449, 63
        %s452 = smul.addr %s451, 8
        %s453 = scalar_lea.vmem %s1, %s452
        %s454 = smul.u32 32, %s22
      $region64: #{maf_forward.3} parent=55 // pred_fallthru
        _
    $region56: #{maf_forward.3} parent=5 // pred_fallthru
      _
    %p455 = scmp.le.s32.totalorder 1, %s22
    %p456 = scmp.lt.s32.totalorder %s22, 3
    %p457 = pnand %p455, %p456
    %p458 = pneg %p457
    // Predicated region
    $region65: #{maf_forward.3} parent=5 // pred_check
      _
    $region66: #{maf_forward.3} parent=5 // pred_check_branch
      %460 = sbr.rel (%p457) target = $region68
    $region67: #{maf_forward.3} parent=5 // pred_region
      %s461 = ssub.s32 %s22, 1
      %s462 = smul.u32 32, %s27
      %p463 = scmp.lt.s32.totalorder %s462, 63
      %s464 = scalar_select %p463, %s462, 63
      %s465 = smul.addr %s464, 8
      %s466 = scalar_lea.vmem %s0, %s465
      %p467 = pneg %p48
      %p468 = pneg %p45
      %s469 = smul.u32 32, %s27
      %p470 = scmp.lt.s32.totalorder %s469, 63
      %s471 = scalar_select %p470, %s469, 63
      %s472 = smul.addr %s471, 8
      %s473 = scalar_lea.vmem %s1, %s472
      %p474 = pneg %p74
      %p475 = pneg %p71
      %p476 = pneg %p95
      %p477 = pneg %p92
      %p478 = pneg %p116
      %p479 = pneg %p113
      %p480 = pneg %p137
      %p481 = pneg %p134
      %p482 = pneg %p158
      %p483 = pneg %p155
      %p484 = pneg %p179
      %p485 = pneg %p176
      %p486 = pneg %p200
      %p487 = pneg %p197
      %p488 = pneg %p221
      %p489 = pneg %p218
      %p490 = pneg %p242
      %p491 = pneg %p239
      %p492 = pneg %p263
      %p493 = pneg %p260
      %p494 = pneg %p284
      %p495 = pneg %p281
      %p496 = pneg %p310
      %p497 = pneg %p307
      %s498 = smul.u32 32, %s27
      %p499 = scmp.lt.s32.totalorder %s498, 63
      %s500 = scalar_select %p499, %s498, 63
      %s501 = smul.addr %s500, 8
      %s502 = scalar_lea.vmem %s12, %s501
      %p503 = pneg %p336
      %p504 = pneg %p333
      %s505 = smul.u32 32, %s27
      %p506 = scmp.lt.s32.totalorder %s505, 63
      %s507 = scalar_select %p506, %s505, 63
      %s508 = smul.addr %s507, 8
      %s509 = scalar_lea.vmem %s13, %s508
      %p510 = pneg %p362
      %p511 = pneg %p359
      %p512 = scmp.lt.s32.totalorder %s27, 1
      %s513 = scalar_select %p512, %s27, 1
      %s514 = smul.addr %s513, 8
      %s515 = scalar_lea.vmem %s14, %s514
      %p516 = pneg %p388
      %p517 = pneg %p385
      %p518 = scmp.lt.s32.totalorder %s27, 1
      %s519 = scalar_select %p518, %s27, 1
      %s520 = smul.addr %s519, 8
      %s521 = scalar_lea.vmem %s15, %s520
      %s522 = smul.u32 32, %s27
      %p523 = scmp.lt.s32.totalorder %s522, 63
      %s524 = scalar_select %p523, %s522, 63
      %s525 = smul.addr %s524, 8
      %s526 = scalar_lea.vmem %s0, %s525
      %s527 = smul.u32 32, %s27
      %s528 = smul.u32 32, %s27
      %p529 = scmp.lt.s32.totalorder %s528, 63
      %s530 = scalar_select %p529, %s528, 63
      %s531 = smul.addr %s530, 8
      %s532 = scalar_lea.vmem %s1, %s531
      %s533 = smul.u32 32, %s27
      %s534 = smul.u32 32, %s27
      %p535 = scmp.lt.s32.totalorder %s534, 63
      %s536 = scalar_select %p535, %s534, 63
      %s537 = smul.addr %s536, 8
      %s538 = scalar_lea.vmem %s12, %s537
      %s539 = smul.u32 32, %s27
      %s540 = smul.u32 32, %s27
      %p541 = scmp.lt.s32.totalorder %s540, 63
      %s542 = scalar_select %p541, %s540, 63
      %s543 = smul.addr %s542, 8
      %s544 = scalar_lea.vmem %s13, %s543
      %s545 = smul.u32 32, %s27
      %p546 = scmp.lt.s32.totalorder %s27, 1
      %s547 = scalar_select %p546, %s27, 1
      %s548 = smul.addr %s547, 8
      %s549 = scalar_lea.vmem %s14, %s548
      %p550 = scmp.lt.s32.totalorder %s27, 1
      %s551 = scalar_select %p550, %s27, 1
      %s552 = smul.addr %s551, 8
      %s553 = scalar_lea.vmem %s15, %s552
      %v554 = vld [vmem:[%s526] sm:$0xff]
      %v555 = vld [vmem:[%s526 + $0x8] sm:$0xff]
      %v556 = vld [vmem:[%s526 + $0x10] sm:$0xff]
      %v557 = vld [vmem:[%s526 + $0x18] sm:$0xff]
      %v558 = vld [vmem:[%s526 + $0x20] sm:$0xff]
      %v559 = vld [vmem:[%s526 + $0x28] sm:$0xff]
      %v560 = vld [vmem:[%s526 + $0x30] sm:$0xff]
      %v561 = vld [vmem:[%s526 + $0x38] sm:$0xff]
      %v562 = vld [vmem:[%s526 + $0x40] sm:$0xff]
      %v563 = vld [vmem:[%s526 + $0x48] sm:$0xff]
      %v564 = vld [vmem:[%s526 + $0x50] sm:$0xff]
      %v565 = vld [vmem:[%s526 + $0x58] sm:$0xff]
      %v566 = vld [vmem:[%s526 + $0x60] sm:$0xff]
      %v567 = vld [vmem:[%s526 + $0x68] sm:$0xff]
      %v568 = vld [vmem:[%s526 + $0x70] sm:$0xff]
      %v569 = vld [vmem:[%s526 + $0x78] sm:$0xff]
      %v570 = vld [vmem:[%s526 + $0x80] sm:$0xff]
      %v571 = vld [vmem:[%s526 + $0x88] sm:$0xff]
      %v572 = vld [vmem:[%s526 + $0x90] sm:$0xff]
      %v573 = vld [vmem:[%s526 + $0x98] sm:$0xff]
      %v574 = vld [vmem:[%s526 + $0xa0] sm:$0xff]
      %v575 = vld [vmem:[%s526 + $0xa8] sm:$0xff]
      %v576 = vld [vmem:[%s526 + $0xb0] sm:$0xff]
      %v577 = vld [vmem:[%s526 + $0xb8] sm:$0xff]
      %v578 = vld [vmem:[%s526 + $0xc0] sm:$0xff]
      %v579 = vld [vmem:[%s526 + $0xc8] sm:$0xff]
      %v580 = vld [vmem:[%s526 + $0xd0] sm:$0xff]
      %v581 = vld [vmem:[%s526 + $0xd8] sm:$0xff]
      %v582 = vld [vmem:[%s526 + $0xe0] sm:$0xff]
      %v583 = vld [vmem:[%s526 + $0xe8] sm:$0xff]
      %v584 = vld [vmem:[%s526 + $0xf0] sm:$0xff]
      %v585 = vld [vmem:[%s526 + $0xf8] sm:$0xff]
      %v586 = vld [vmem:[%s2] sm:$0x1]
      %v588 = vlaneseq
      %v589 = vshrl.u32 %v588, 7
      %v590 = vsub.s32 0, %v589
      %v591 = vrot.slane %v586, %v590
      %v593 = vmul.f32 %v554, %v591
      %v594 = vmul.f32 %v555, %v591
      %v595 = vmul.f32 %v556, %v591
      %v596 = vmul.f32 %v557, %v591
      %v597 = vmul.f32 %v558, %v591
      %v598 = vmul.f32 %v559, %v591
      %v599 = vmul.f32 %v560, %v591
      %v600 = vmul.f32 %v561, %v591
      %v601 = vmul.f32 %v562, %v591
      %v602 = vmul.f32 %v563, %v591
      %v603 = vmul.f32 %v564, %v591
      %v604 = vmul.f32 %v565, %v591
      %v605 = vmul.f32 %v566, %v591
      %v606 = vmul.f32 %v567, %v591
      %v607 = vmul.f32 %v568, %v591
      %v608 = vmul.f32 %v569, %v591
      %v609 = vmul.f32 %v570, %v591
      %v610 = vmul.f32 %v571, %v591
      %v611 = vmul.f32 %v572, %v591
      %v612 = vmul.f32 %v573, %v591
      %v613 = vmul.f32 %v574, %v591
      %v614 = vmul.f32 %v575, %v591
      %v615 = vmul.f32 %v576, %v591
      %v616 = vmul.f32 %v577, %v591
      %v617 = vmul.f32 %v578, %v591
      %v618 = vmul.f32 %v579, %v591
      %v619 = vmul.f32 %v580, %v591
      %v620 = vmul.f32 %v581, %v591
      %v621 = vmul.f32 %v582, %v591
      %v622 = vmul.f32 %v583, %v591
      %v623 = vmul.f32 %v584, %v591
      %v624 = vmul.f32 %v585, %v591
      %v625 = vld [vmem:[%s3] sm:$0x1]
      %v627 = vlaneseq
      %v628 = vshrl.u32 %v627, 7
      %v629 = vsub.s32 0, %v628
      %v630 = vrot.slane %v625, %v629
      %v632 = vadd.f32 %v593, %v630
      %v633 = vadd.f32 %v594, %v630
      %v634 = vadd.f32 %v595, %v630
      %v635 = vadd.f32 %v596, %v630
      %v636 = vadd.f32 %v597, %v630
      %v637 = vadd.f32 %v598, %v630
      %v638 = vadd.f32 %v599, %v630
      %v639 = vadd.f32 %v600, %v630
      %v640 = vadd.f32 %v601, %v630
      %v641 = vadd.f32 %v602, %v630
      %v642 = vadd.f32 %v603, %v630
      %v643 = vadd.f32 %v604, %v630
      %v644 = vadd.f32 %v605, %v630
      %v645 = vadd.f32 %v606, %v630
      %v646 = vadd.f32 %v607, %v630
      %v647 = vadd.f32 %v608, %v630
      %v648 = vadd.f32 %v609, %v630
      %v649 = vadd.f32 %v610, %v630
      %v650 = vadd.f32 %v611, %v630
      %v651 = vadd.f32 %v612, %v630
      %v652 = vadd.f32 %v613, %v630
      %v653 = vadd.f32 %v614, %v630
      %v654 = vadd.f32 %v615, %v630
      %v655 = vadd.f32 %v616, %v630
      %v656 = vadd.f32 %v617, %v630
      %v657 = vadd.f32 %v618, %v630
      %v658 = vadd.f32 %v619, %v630
      %v659 = vadd.f32 %v620, %v630
      %v660 = vadd.f32 %v621, %v630
      %v661 = vadd.f32 %v622, %v630
      %v662 = vadd.f32 %v623, %v630
      %v663 = vadd.f32 %v624, %v630
      %v664 = vld [vmem:[%s4] sm:$0xff]
      %v665 = vld [vmem:[%s4 + $0x8] sm:$0x3]
      %v666 = vld [vmem:[%s5] sm:$0x1]
      %v668 = vlaneseq
      %v669 = vshrl.u32 %v668, 7
      %v670 = vsub.s32 0, %v669
      %v671 = vrot.slane %v666, %v670
      %vm673 = vcmask 80896
      %v675 = vsel %vm673, %v632, 0
      %v678 = vsel %vm673, %v633, 0
      %v681 = vsel %vm673, %v634, 0
      %v684 = vsel %vm673, %v635, 0
      %v687 = vsel %vm673, %v636, 0
      %v690 = vsel %vm673, %v637, 0
      %v693 = vsel %vm673, %v638, 0
      %v696 = vsel %vm673, %v639, 0
      %v699 = vsel %vm673, %v640, 0
      %v702 = vsel %vm673, %v641, 0
      %v705 = vsel %vm673, %v642, 0
      %v708 = vsel %vm673, %v643, 0
      %v711 = vsel %vm673, %v644, 0
      %v714 = vsel %vm673, %v645, 0
      %v717 = vsel %vm673, %v646, 0
      %v720 = vsel %vm673, %v647, 0
      %v723 = vsel %vm673, %v648, 0
      %v726 = vsel %vm673, %v649, 0
      %v729 = vsel %vm673, %v650, 0
      %v732 = vsel %vm673, %v651, 0
      %v735 = vsel %vm673, %v652, 0
      %v738 = vsel %vm673, %v653, 0
      %v741 = vsel %vm673, %v654, 0
      %v744 = vsel %vm673, %v655, 0
      %v747 = vsel %vm673, %v656, 0
      %v750 = vsel %vm673, %v657, 0
      %v753 = vsel %vm673, %v658, 0
      %v756 = vsel %vm673, %v659, 0
      %v759 = vsel %vm673, %v660, 0
      %v762 = vsel %vm673, %v661, 0
      %v765 = vsel %vm673, %v662, 0
      %v768 = vsel %vm673, %v663, 0
      %vm770 = vcmask 1041408
      %v772 = vsel %vm770, %v665, 0
      %774 = vmatprep.subr.mxu0 0.0
      %775 = vmatpush1.msra.mxu0 0.0
      %776 = vmatprep.subr.mxu0 0.0
      %777 = vmatpush1.msra.mxu0 0.0
      %778 = vmatprep.subr.mxu0 0.0
      %779 = vmatpush1.msra.mxu0 0.0
      %780 = vmatprep.subr.mxu0 0.0
      %781 = vmatpush1.msra.mxu0 0.0
      %782 = vmatprep.subr.mxu0 0.0
      %783 = vmatpush1.msra.mxu0 0.0
      %784 = vmatprep.subr.mxu0 0.0
      %785 = vmatpush1.msra.mxu0 0.0
      %786 = vmatprep.subr.mxu0 0.0
      %787 = vmatpush1.msra.mxu0 0.0
      %788 = vmatprep.subr.mxu0 0.0
      %789 = vmatpush1.msra.mxu0 0.0
      %790 = vmatprep.subr.mxu0 0.0
      %791 = vmatpush1.msra.mxu0 0.0
      %792 = vmatprep.subr.mxu0 0.0
      %793 = vmatpush1.msra.mxu0 0.0
      %794 = vmatprep.subr.mxu0 0.0
      %795 = vmatpush1.msra.mxu0 0.0
      %796 = vmatprep.subr.mxu0 0.0
      %797 = vmatpush1.msra.mxu0 0.0
      %798 = vmatprep.subr.mxu0 0.0
      %799 = vmatpush1.msra.mxu0 0.0
      %800 = vmatprep.subr.mxu0 0.0
      %801 = vmatpush1.msra.mxu0 0.0
      %802 = vmatprep.subr.mxu0 0.0
      %803 = vmatpush1.msra.mxu0 %v772
      %804 = vmatprep.subr.mxu0 0.0
      %805 = vmatpush1.msra.mxu0 %v664
      %806 = vmatprep.subr.mxu0 0.0
      %807 = vmatpush2.msra.mxu0 0.0
      %808 = vmatprep.subr.mxu0 0.0
      %809 = vmatpush2.msra.mxu0 0.0
      %810 = vmatprep.subr.mxu0 0.0
      %811 = vmatpush2.msra.mxu0 0.0
      %812 = vmatprep.subr.mxu0 0.0
      %813 = vmatpush2.msra.mxu0 0.0
      %814 = vmatprep.subr.mxu0 0.0
      %815 = vmatpush2.msra.mxu0 0.0
      %816 = vmatprep.subr.mxu0 0.0
      %817 = vmatpush2.msra.mxu0 0.0
      %818 = vmatprep.subr.mxu0 0.0
      %819 = vmatpush2.msra.mxu0 0.0
      %820 = vmatprep.subr.mxu0 0.0
      %821 = vmatpush2.msra.mxu0 0.0
      %822 = vmatprep.subr.mxu0 0.0
      %823 = vmatpush2.msra.mxu0 0.0
      %824 = vmatprep.subr.mxu0 0.0
      %825 = vmatpush2.msra.mxu0 0.0
      %826 = vmatprep.subr.mxu0 0.0
      %827 = vmatpush2.msra.mxu0 0.0
      %828 = vmatprep.subr.mxu0 0.0
      %829 = vmatpush2.msra.mxu0 0.0
      %830 = vmatprep.subr.mxu0 0.0
      %831 = vmatpush2.msra.mxu0 0.0
      %832 = vmatprep.subr.mxu0 0.0
      %833 = vmatpush2.msra.mxu0 0.0
      %834 = vmatprep.subr.mxu0 0.0
      %835 = vmatpush2.msra.mxu0 0.0
      %836 = vmatprep.subr.mxu0 0.0
      %837 = vmatpush2.msra.mxu0 0.0
      %838 = vmatprep.mubr.f32.mxu0 0.0
      %839 = vmatmul.mubr.f32.gmra.mxu0 %v675
      %v840 = vpop.f32.mrf.mxu0
      %v841 = vadd.f32 %v671, %v840
      %v842 = vpop.f32.mrf.mxu0
      %843 = vmatprep.mubr.f32.mxu0 0.0
      %844 = vmatmul.mubr.f32.gmra.mxu0 %v678
      %v845 = vpop.f32.mrf.mxu0
      %v846 = vadd.f32 %v671, %v845
      %v847 = vpop.f32.mrf.mxu0
      %848 = vmatprep.mubr.f32.mxu0 0.0
      %849 = vmatmul.mubr.f32.gmra.mxu0 %v681
      %v850 = vpop.f32.mrf.mxu0
      %v851 = vadd.f32 %v671, %v850
      %v852 = vpop.f32.mrf.mxu0
      %853 = vmatprep.mubr.f32.mxu0 0.0
      %854 = vmatmul.mubr.f32.gmra.mxu0 %v684
      %v855 = vpop.f32.mrf.mxu0
      %v856 = vadd.f32 %v671, %v855
      %v857 = vpop.f32.mrf.mxu0
      %858 = vmatprep.mubr.f32.mxu0 0.0
      %859 = vmatmul.mubr.f32.gmra.mxu0 %v687
      %v860 = vpop.f32.mrf.mxu0
      %v861 = vadd.f32 %v671, %v860
      %v862 = vpop.f32.mrf.mxu0
      %863 = vmatprep.mubr.f32.mxu0 0.0
      %864 = vmatmul.mubr.f32.gmra.mxu0 %v690
      %v865 = vpop.f32.mrf.mxu0
      %v866 = vadd.f32 %v671, %v865
      %v867 = vpop.f32.mrf.mxu0
      %868 = vmatprep.mubr.f32.mxu0 0.0
      %869 = vmatmul.mubr.f32.gmra.mxu0 %v693
      %v870 = vpop.f32.mrf.mxu0
      %v871 = vadd.f32 %v671, %v870
      %v872 = vpop.f32.mrf.mxu0
      %873 = vmatprep.mubr.f32.mxu0 0.0
      %874 = vmatmul.mubr.f32.gmra.mxu0 %v696
      %v875 = vpop.f32.mrf.mxu0
      %v876 = vadd.f32 %v671, %v875
      %v877 = vpop.f32.mrf.mxu0
      %878 = vmatprep.mubr.f32.mxu0 0.0
      %879 = vmatmul.mubr.f32.gmra.mxu0 %v699
      %v880 = vpop.f32.mrf.mxu0
      %v881 = vadd.f32 %v671, %v880
      %v882 = vpop.f32.mrf.mxu0
      %883 = vmatprep.mubr.f32.mxu0 0.0
      %884 = vmatmul.mubr.f32.gmra.mxu0 %v702
      %v885 = vpop.f32.mrf.mxu0
      %v886 = vadd.f32 %v671, %v885
      %v887 = vpop.f32.mrf.mxu0
      %888 = vmatprep.mubr.f32.mxu0 0.0
      %889 = vmatmul.mubr.f32.gmra.mxu0 %v705
      %v890 = vpop.f32.mrf.mxu0
      %v891 = vadd.f32 %v671, %v890
      %v892 = vpop.f32.mrf.mxu0
      %893 = vmatprep.mubr.f32.mxu0 0.0
      %894 = vmatmul.mubr.f32.gmra.mxu0 %v708
      %v895 = vpop.f32.mrf.mxu0
      %v896 = vadd.f32 %v671, %v895
      %v897 = vpop.f32.mrf.mxu0
      %898 = vmatprep.mubr.f32.mxu0 0.0
      %899 = vmatmul.mubr.f32.gmra.mxu0 %v711
      %v900 = vpop.f32.mrf.mxu0
      %v901 = vadd.f32 %v671, %v900
      %v902 = vpop.f32.mrf.mxu0
      %903 = vmatprep.mubr.f32.mxu0 0.0
      %904 = vmatmul.mubr.f32.gmra.mxu0 %v714
      %v905 = vpop.f32.mrf.mxu0
      %v906 = vadd.f32 %v671, %v905
      %v907 = vpop.f32.mrf.mxu0
      %908 = vmatprep.mubr.f32.mxu0 0.0
      %909 = vmatmul.mubr.f32.gmra.mxu0 %v717
      %v910 = vpop.f32.mrf.mxu0
      %v911 = vadd.f32 %v671, %v910
      %v912 = vpop.f32.mrf.mxu0
      %913 = vmatprep.mubr.f32.mxu0 0.0
      %914 = vmatmul.mubr.f32.gmra.mxu0 %v720
      %v915 = vpop.f32.mrf.mxu0
      %v916 = vadd.f32 %v671, %v915
      %v917 = vpop.f32.mrf.mxu0
      %918 = vmatprep.mubr.f32.mxu0 0.0
      %919 = vmatmul.mubr.f32.gmra.mxu0 %v723
      %v920 = vpop.f32.mrf.mxu0
      %v921 = vadd.f32 %v671, %v920
      %v922 = vpop.f32.mrf.mxu0
      %923 = vmatprep.mubr.f32.mxu0 0.0
      %924 = vmatmul.mubr.f32.gmra.mxu0 %v726
      %v925 = vpop.f32.mrf.mxu0
      %v926 = vadd.f32 %v671, %v925
      %v927 = vpop.f32.mrf.mxu0
      %928 = vmatprep.mubr.f32.mxu0 0.0
      %929 = vmatmul.mubr.f32.gmra.mxu0 %v729
      %v930 = vpop.f32.mrf.mxu0
      %v931 = vadd.f32 %v671, %v930
      %v932 = vpop.f32.mrf.mxu0
      %933 = vmatprep.mubr.f32.mxu0 0.0
      %934 = vmatmul.mubr.f32.gmra.mxu0 %v732
      %v935 = vpop.f32.mrf.mxu0
      %v936 = vadd.f32 %v671, %v935
      %v937 = vpop.f32.mrf.mxu0
      %938 = vmatprep.mubr.f32.mxu0 0.0
      %939 = vmatmul.mubr.f32.gmra.mxu0 %v735
      %v940 = vpop.f32.mrf.mxu0
      %v941 = vadd.f32 %v671, %v940
      %v942 = vpop.f32.mrf.mxu0
      %943 = vmatprep.mubr.f32.mxu0 0.0
      %944 = vmatmul.mubr.f32.gmra.mxu0 %v738
      %v945 = vpop.f32.mrf.mxu0
      %v946 = vadd.f32 %v671, %v945
      %v947 = vpop.f32.mrf.mxu0
      %948 = vmatprep.mubr.f32.mxu0 0.0
      %949 = vmatmul.mubr.f32.gmra.mxu0 %v741
      %v950 = vpop.f32.mrf.mxu0
      %v951 = vadd.f32 %v671, %v950
      %v952 = vpop.f32.mrf.mxu0
      %953 = vmatprep.mubr.f32.mxu0 0.0
      %954 = vmatmul.mubr.f32.gmra.mxu0 %v744
      %v955 = vpop.f32.mrf.mxu0
      %v956 = vadd.f32 %v671, %v955
      %v957 = vpop.f32.mrf.mxu0
      %958 = vmatprep.mubr.f32.mxu0 0.0
      %959 = vmatmul.mubr.f32.gmra.mxu0 %v747
      %v960 = vpop.f32.mrf.mxu0
      %v961 = vadd.f32 %v671, %v960
      %v962 = vpop.f32.mrf.mxu0
      %963 = vmatprep.mubr.f32.mxu0 0.0
      %964 = vmatmul.mubr.f32.gmra.mxu0 %v750
      %v965 = vpop.f32.mrf.mxu0
      %v966 = vadd.f32 %v671, %v965
      %v967 = vpop.f32.mrf.mxu0
      %968 = vmatprep.mubr.f32.mxu0 0.0
      %969 = vmatmul.mubr.f32.gmra.mxu0 %v753
      %v970 = vpop.f32.mrf.mxu0
      %v971 = vadd.f32 %v671, %v970
      %v972 = vpop.f32.mrf.mxu0
      %973 = vmatprep.mubr.f32.mxu0 0.0
      %974 = vmatmul.mubr.f32.gmra.mxu0 %v756
      %v975 = vpop.f32.mrf.mxu0
      %v976 = vadd.f32 %v671, %v975
      %v977 = vpop.f32.mrf.mxu0
      %978 = vmatprep.mubr.f32.mxu0 0.0
      %979 = vmatmul.mubr.f32.gmra.mxu0 %v759
      %v980 = vpop.f32.mrf.mxu0
      %v981 = vadd.f32 %v671, %v980
      %v982 = vpop.f32.mrf.mxu0
      %983 = vmatprep.mubr.f32.mxu0 0.0
      %984 = vmatmul.mubr.f32.gmra.mxu0 %v762
      %v985 = vpop.f32.mrf.mxu0
      %v986 = vadd.f32 %v671, %v985
      %v987 = vpop.f32.mrf.mxu0
      %988 = vmatprep.mubr.f32.mxu0 0.0
      %989 = vmatmul.mubr.f32.gmra.mxu0 %v765
      %v990 = vpop.f32.mrf.mxu0
      %v991 = vadd.f32 %v671, %v990
      %v992 = vpop.f32.mrf.mxu0
      %993 = vmatprep.mubr.f32.mxu0 0.0
      %994 = vmatmul.mubr.f32.gmra.mxu0 %v768
      %v995 = vpop.f32.mrf.mxu0
      %v996 = vadd.f32 %v671, %v995
      %v997 = vpop.f32.mrf.mxu0
      %998 = vdwg.mxu0
      %v999 = vmax.f32 %v841, 0.0
      %v1000 = vmax.f32 %v846, 0.0
      %v1001 = vmax.f32 %v851, 0.0
      %v1002 = vmax.f32 %v856, 0.0
      %v1003 = vmax.f32 %v861, 0.0
      %v1004 = vmax.f32 %v866, 0.0
      %v1005 = vmax.f32 %v871, 0.0
      %v1006 = vmax.f32 %v876, 0.0
      %v1007 = vmax.f32 %v881, 0.0
      %v1008 = vmax.f32 %v886, 0.0
      %v1009 = vmax.f32 %v891, 0.0
      %v1010 = vmax.f32 %v896, 0.0
      %v1011 = vmax.f32 %v901, 0.0
      %v1012 = vmax.f32 %v906, 0.0
      %v1013 = vmax.f32 %v911, 0.0
      %v1014 = vmax.f32 %v916, 0.0
      %v1015 = vmax.f32 %v921, 0.0
      %v1016 = vmax.f32 %v926, 0.0
      %v1017 = vmax.f32 %v931, 0.0
      %v1018 = vmax.f32 %v936, 0.0
      %v1019 = vmax.f32 %v941, 0.0
      %v1020 = vmax.f32 %v946, 0.0
      %v1021 = vmax.f32 %v951, 0.0
      %v1022 = vmax.f32 %v956, 0.0
      %v1023 = vmax.f32 %v961, 0.0
      %v1024 = vmax.f32 %v966, 0.0
      %v1025 = vmax.f32 %v971, 0.0
      %v1026 = vmax.f32 %v976, 0.0
      %v1027 = vmax.f32 %v981, 0.0
      %v1028 = vmax.f32 %v986, 0.0
      %v1029 = vmax.f32 %v991, 0.0
      %v1030 = vmax.f32 %v996, 0.0
      %v1031 = vld [vmem:[%s6] sm:$0xff]
      %v1032 = vld [vmem:[%s6 + $0x8] sm:$0xff]
      %v1033 = vld [vmem:[%s6 + $0x10] sm:$0xff]
      %v1034 = vld [vmem:[%s6 + $0x18] sm:$0xff]
      %v1035 = vld [vmem:[%s7] sm:$0x1]
      %v1037 = vlaneseq
      %v1038 = vshrl.u32 %v1037, 7
      %v1039 = vsub.s32 0, %v1038
      %v1040 = vrot.slane %v1035, %v1039
      %vm1042 = vcmask 261120
      %v1044 = vsel %vm1042, %v999, 0
      %v1047 = vsel %vm1042, %v1000, 0
      %v1050 = vsel %vm1042, %v1001, 0
      %v1053 = vsel %vm1042, %v1002, 0
      %v1056 = vsel %vm1042, %v1003, 0
      %v1059 = vsel %vm1042, %v1004, 0
      %v1062 = vsel %vm1042, %v1005, 0
      %v1065 = vsel %vm1042, %v1006, 0
      %v1068 = vsel %vm1042, %v1007, 0
      %v1071 = vsel %vm1042, %v1008, 0
      %v1074 = vsel %vm1042, %v1009, 0
      %v1077 = vsel %vm1042, %v1010, 0
      %v1080 = vsel %vm1042, %v1011, 0
      %v1083 = vsel %vm1042, %v1012, 0
      %v1086 = vsel %vm1042, %v1013, 0
      %v1089 = vsel %vm1042, %v1014, 0
      %v1092 = vsel %vm1042, %v1015, 0
      %v1095 = vsel %vm1042, %v1016, 0
      %v1098 = vsel %vm1042, %v1017, 0
      %v1101 = vsel %vm1042, %v1018, 0
      %v1104 = vsel %vm1042, %v1019, 0
      %v1107 = vsel %vm1042, %v1020, 0
      %v1110 = vsel %vm1042, %v1021, 0
      %v1113 = vsel %vm1042, %v1022, 0
      %v1116 = vsel %vm1042, %v1023, 0
      %v1119 = vsel %vm1042, %v1024, 0
      %v1122 = vsel %vm1042, %v1025, 0
      %v1125 = vsel %vm1042, %v1026, 0
      %v1128 = vsel %vm1042, %v1027, 0
      %v1131 = vsel %vm1042, %v1028, 0
      %v1134 = vsel %vm1042, %v1029, 0
      %v1137 = vsel %vm1042, %v1030, 0
      %1139 = vmatprep.subr.mxu0 0.0
      %1140 = vmatpush1.msra.mxu0 0.0
      %1141 = vmatprep.subr.mxu0 0.0
      %1142 = vmatpush1.msra.mxu0 0.0
      %1143 = vmatprep.subr.mxu0 0.0
      %1144 = vmatpush1.msra.mxu0 0.0
      %1145 = vmatprep.subr.mxu0 0.0
      %1146 = vmatpush1.msra.mxu0 0.0
      %1147 = vmatprep.subr.mxu0 0.0
      %1148 = vmatpush1.msra.mxu0 0.0
      %1149 = vmatprep.subr.mxu0 0.0
      %1150 = vmatpush1.msra.mxu0 0.0
      %1151 = vmatprep.subr.mxu0 0.0
      %1152 = vmatpush1.msra.mxu0 0.0
      %1153 = vmatprep.subr.mxu0 0.0
      %1154 = vmatpush1.msra.mxu0 0.0
      %1155 = vmatprep.subr.mxu0 0.0
      %1156 = vmatpush1.msra.mxu0 0.0
      %1157 = vmatprep.subr.mxu0 0.0
      %1158 = vmatpush1.msra.mxu0 0.0
      %1159 = vmatprep.subr.mxu0 0.0
      %1160 = vmatpush1.msra.mxu0 0.0
      %1161 = vmatprep.subr.mxu0 0.0
      %1162 = vmatpush1.msra.mxu0 0.0
      %1163 = vmatprep.subr.mxu0 0.0
      %1164 = vmatpush1.msra.mxu0 %v1034
      %1165 = vmatprep.subr.mxu0 0.0
      %1166 = vmatpush1.msra.mxu0 %v1033
      %1167 = vmatprep.subr.mxu0 0.0
      %1168 = vmatpush1.msra.mxu0 %v1032
      %1169 = vmatprep.subr.mxu0 0.0
      %1170 = vmatpush1.msra.mxu0 %v1031
      %1171 = vmatprep.subr.mxu0 0.0
      %1172 = vmatpush2.msra.mxu0 0.0
      %1173 = vmatprep.subr.mxu0 0.0
      %1174 = vmatpush2.msra.mxu0 0.0
      %1175 = vmatprep.subr.mxu0 0.0
      %1176 = vmatpush2.msra.mxu0 0.0
      %1177 = vmatprep.subr.mxu0 0.0
      %1178 = vmatpush2.msra.mxu0 0.0
      %1179 = vmatprep.subr.mxu0 0.0
      %1180 = vmatpush2.msra.mxu0 0.0
      %1181 = vmatprep.subr.mxu0 0.0
      %1182 = vmatpush2.msra.mxu0 0.0
      %1183 = vmatprep.subr.mxu0 0.0
      %1184 = vmatpush2.msra.mxu0 0.0
      %1185 = vmatprep.subr.mxu0 0.0
      %1186 = vmatpush2.msra.mxu0 0.0
      %1187 = vmatprep.subr.mxu0 0.0
      %1188 = vmatpush2.msra.mxu0 0.0
      %1189 = vmatprep.subr.mxu0 0.0
      %1190 = vmatpush2.msra.mxu0 0.0
      %1191 = vmatprep.subr.mxu0 0.0
      %1192 = vmatpush2.msra.mxu0 0.0
      %1193 = vmatprep.subr.mxu0 0.0
      %1194 = vmatpush2.msra.mxu0 0.0
      %1195 = vmatprep.subr.mxu0 0.0
      %1196 = vmatpush2.msra.mxu0 0.0
      %1197 = vmatprep.subr.mxu0 0.0
      %1198 = vmatpush2.msra.mxu0 0.0
      %1199 = vmatprep.subr.mxu0 0.0
      %1200 = vmatpush2.msra.mxu0 0.0
      %1201 = vmatprep.subr.mxu0 0.0
      %1202 = vmatpush2.msra.mxu0 0.0
      %1203 = vmatprep.mubr.f32.mxu0 0.0
      %1204 = vmatmul.mubr.f32.gmra.mxu0 %v1044
      %v1205 = vpop.f32.mrf.mxu0
      %v1206 = vadd.f32 %v1040, %v1205
      %v1207 = vpop.f32.mrf.mxu0
      %1208 = vmatprep.mubr.f32.mxu0 0.0
      %1209 = vmatmul.mubr.f32.gmra.mxu0 %v1047
      %v1210 = vpop.f32.mrf.mxu0
      %v1211 = vadd.f32 %v1040, %v1210
      %v1212 = vpop.f32.mrf.mxu0
      %1213 = vmatprep.mubr.f32.mxu0 0.0
      %1214 = vmatmul.mubr.f32.gmra.mxu0 %v1050
      %v1215 = vpop.f32.mrf.mxu0
      %v1216 = vadd.f32 %v1040, %v1215
      %v1217 = vpop.f32.mrf.mxu0
      %1218 = vmatprep.mubr.f32.mxu0 0.0
      %1219 = vmatmul.mubr.f32.gmra.mxu0 %v1053
      %v1220 = vpop.f32.mrf.mxu0
      %v1221 = vadd.f32 %v1040, %v1220
      %v1222 = vpop.f32.mrf.mxu0
      %1223 = vmatprep.mubr.f32.mxu0 0.0
      %1224 = vmatmul.mubr.f32.gmra.mxu0 %v1056
      %v1225 = vpop.f32.mrf.mxu0
      %v1226 = vadd.f32 %v1040, %v1225
      %v1227 = vpop.f32.mrf.mxu0
      %1228 = vmatprep.mubr.f32.mxu0 0.0
      %1229 = vmatmul.mubr.f32.gmra.mxu0 %v1059
      %v1230 = vpop.f32.mrf.mxu0
      %v1231 = vadd.f32 %v1040, %v1230
      %v1232 = vpop.f32.mrf.mxu0
      %1233 = vmatprep.mubr.f32.mxu0 0.0
      %1234 = vmatmul.mubr.f32.gmra.mxu0 %v1062
      %v1235 = vpop.f32.mrf.mxu0
      %v1236 = vadd.f32 %v1040, %v1235
      %v1237 = vpop.f32.mrf.mxu0
      %1238 = vmatprep.mubr.f32.mxu0 0.0
      %1239 = vmatmul.mubr.f32.gmra.mxu0 %v1065
      %v1240 = vpop.f32.mrf.mxu0
      %v1241 = vadd.f32 %v1040, %v1240
      %v1242 = vpop.f32.mrf.mxu0
      %1243 = vmatprep.mubr.f32.mxu0 0.0
      %1244 = vmatmul.mubr.f32.gmra.mxu0 %v1068
      %v1245 = vpop.f32.mrf.mxu0
      %v1246 = vadd.f32 %v1040, %v1245
      %v1247 = vpop.f32.mrf.mxu0
      %1248 = vmatprep.mubr.f32.mxu0 0.0
      %1249 = vmatmul.mubr.f32.gmra.mxu0 %v1071
      %v1250 = vpop.f32.mrf.mxu0
      %v1251 = vadd.f32 %v1040, %v1250
      %v1252 = vpop.f32.mrf.mxu0
      %1253 = vmatprep.mubr.f32.mxu0 0.0
      %1254 = vmatmul.mubr.f32.gmra.mxu0 %v1074
      %v1255 = vpop.f32.mrf.mxu0
      %v1256 = vadd.f32 %v1040, %v1255
      %v1257 = vpop.f32.mrf.mxu0
      %1258 = vmatprep.mubr.f32.mxu0 0.0
      %1259 = vmatmul.mubr.f32.gmra.mxu0 %v1077
      %v1260 = vpop.f32.mrf.mxu0
      %v1261 = vadd.f32 %v1040, %v1260
      %v1262 = vpop.f32.mrf.mxu0
      %1263 = vmatprep.mubr.f32.mxu0 0.0
      %1264 = vmatmul.mubr.f32.gmra.mxu0 %v1080
      %v1265 = vpop.f32.mrf.mxu0
      %v1266 = vadd.f32 %v1040, %v1265
      %v1267 = vpop.f32.mrf.mxu0
      %1268 = vmatprep.mubr.f32.mxu0 0.0
      %1269 = vmatmul.mubr.f32.gmra.mxu0 %v1083
      %v1270 = vpop.f32.mrf.mxu0
      %v1271 = vadd.f32 %v1040, %v1270
      %v1272 = vpop.f32.mrf.mxu0
      %1273 = vmatprep.mubr.f32.mxu0 0.0
      %1274 = vmatmul.mubr.f32.gmra.mxu0 %v1086
      %v1275 = vpop.f32.mrf.mxu0
      %v1276 = vadd.f32 %v1040, %v1275
      %v1277 = vpop.f32.mrf.mxu0
      %1278 = vmatprep.mubr.f32.mxu0 0.0
      %1279 = vmatmul.mubr.f32.gmra.mxu0 %v1089
      %v1280 = vpop.f32.mrf.mxu0
      %v1281 = vadd.f32 %v1040, %v1280
      %v1282 = vpop.f32.mrf.mxu0
      %1283 = vmatprep.mubr.f32.mxu0 0.0
      %1284 = vmatmul.mubr.f32.gmra.mxu0 %v1092
      %v1285 = vpop.f32.mrf.mxu0
      %v1286 = vadd.f32 %v1040, %v1285
      %v1287 = vpop.f32.mrf.mxu0
      %1288 = vmatprep.mubr.f32.mxu0 0.0
      %1289 = vmatmul.mubr.f32.gmra.mxu0 %v1095
      %v1290 = vpop.f32.mrf.mxu0
      %v1291 = vadd.f32 %v1040, %v1290
      %v1292 = vpop.f32.mrf.mxu0
      %1293 = vmatprep.mubr.f32.mxu0 0.0
      %1294 = vmatmul.mubr.f32.gmra.mxu0 %v1098
      %v1295 = vpop.f32.mrf.mxu0
      %v1296 = vadd.f32 %v1040, %v1295
      %v1297 = vpop.f32.mrf.mxu0
      %1298 = vmatprep.mubr.f32.mxu0 0.0
      %1299 = vmatmul.mubr.f32.gmra.mxu0 %v1101
      %v1300 = vpop.f32.mrf.mxu0
      %v1301 = vadd.f32 %v1040, %v1300
      %v1302 = vpop.f32.mrf.mxu0
      %1303 = vmatprep.mubr.f32.mxu0 0.0
      %1304 = vmatmul.mubr.f32.gmra.mxu0 %v1104
      %v1305 = vpop.f32.mrf.mxu0
      %v1306 = vadd.f32 %v1040, %v1305
      %v1307 = vpop.f32.mrf.mxu0
      %1308 = vmatprep.mubr.f32.mxu0 0.0
      %1309 = vmatmul.mubr.f32.gmra.mxu0 %v1107
      %v1310 = vpop.f32.mrf.mxu0
      %v1311 = vadd.f32 %v1040, %v1310
      %v1312 = vpop.f32.mrf.mxu0
      %1313 = vmatprep.mubr.f32.mxu0 0.0
      %1314 = vmatmul.mubr.f32.gmra.mxu0 %v1110
      %v1315 = vpop.f32.mrf.mxu0
      %v1316 = vadd.f32 %v1040, %v1315
      %v1317 = vpop.f32.mrf.mxu0
      %1318 = vmatprep.mubr.f32.mxu0 0.0
      %1319 = vmatmul.mubr.f32.gmra.mxu0 %v1113
      %v1320 = vpop.f32.mrf.mxu0
      %v1321 = vadd.f32 %v1040, %v1320
      %v1322 = vpop.f32.mrf.mxu0
      %1323 = vmatprep.mubr.f32.mxu0 0.0
      %1324 = vmatmul.mubr.f32.gmra.mxu0 %v1116
      %v1325 = vpop.f32.mrf.mxu0
      %v1326 = vadd.f32 %v1040, %v1325
      %v1327 = vpop.f32.mrf.mxu0
      %1328 = vmatprep.mubr.f32.mxu0 0.0
      %1329 = vmatmul.mubr.f32.gmra.mxu0 %v1119
      %v1330 = vpop.f32.mrf.mxu0
      %v1331 = vadd.f32 %v1040, %v1330
      %v1332 = vpop.f32.mrf.mxu0
      %1333 = vmatprep.mubr.f32.mxu0 0.0
      %1334 = vmatmul.mubr.f32.gmra.mxu0 %v1122
      %v1335 = vpop.f32.mrf.mxu0
      %v1336 = vadd.f32 %v1040, %v1335
      %v1337 = vpop.f32.mrf.mxu0
      %1338 = vmatprep.mubr.f32.mxu0 0.0
      %1339 = vmatmul.mubr.f32.gmra.mxu0 %v1125
      %v1340 = vpop.f32.mrf.mxu0
      %v1341 = vadd.f32 %v1040, %v1340
      %v1342 = vpop.f32.mrf.mxu0
      %1343 = vmatprep.mubr.f32.mxu0 0.0
      %1344 = vmatmul.mubr.f32.gmra.mxu0 %v1128
      %v1345 = vpop.f32.mrf.mxu0
      %v1346 = vadd.f32 %v1040, %v1345
      %v1347 = vpop.f32.mrf.mxu0
      %1348 = vmatprep.mubr.f32.mxu0 0.0
      %1349 = vmatmul.mubr.f32.gmra.mxu0 %v1131
      %v1350 = vpop.f32.mrf.mxu0
      %v1351 = vadd.f32 %v1040, %v1350
      %v1352 = vpop.f32.mrf.mxu0
      %1353 = vmatprep.mubr.f32.mxu0 0.0
      %1354 = vmatmul.mubr.f32.gmra.mxu0 %v1134
      %v1355 = vpop.f32.mrf.mxu0
      %v1356 = vadd.f32 %v1040, %v1355
      %v1357 = vpop.f32.mrf.mxu0
      %1358 = vmatprep.mubr.f32.mxu0 0.0
      %1359 = vmatmul.mubr.f32.gmra.mxu0 %v1137
      %v1360 = vpop.f32.mrf.mxu0
      %v1361 = vadd.f32 %v1040, %v1360
      %v1362 = vpop.f32.mrf.mxu0
      %1363 = vdwg.mxu0
      %v1364 = vmax.f32 %v1206, 0.0
      %v1365 = vmax.f32 %v1211, 0.0
      %v1366 = vmax.f32 %v1216, 0.0
      %v1367 = vmax.f32 %v1221, 0.0
      %v1368 = vmax.f32 %v1226, 0.0
      %v1369 = vmax.f32 %v1231, 0.0
      %v1370 = vmax.f32 %v1236, 0.0
      %v1371 = vmax.f32 %v1241, 0.0
      %v1372 = vmax.f32 %v1246, 0.0
      %v1373 = vmax.f32 %v1251, 0.0
      %v1374 = vmax.f32 %v1256, 0.0
      %v1375 = vmax.f32 %v1261, 0.0
      %v1376 = vmax.f32 %v1266, 0.0
      %v1377 = vmax.f32 %v1271, 0.0
      %v1378 = vmax.f32 %v1276, 0.0
      %v1379 = vmax.f32 %v1281, 0.0
      %v1380 = vmax.f32 %v1286, 0.0
      %v1381 = vmax.f32 %v1291, 0.0
      %v1382 = vmax.f32 %v1296, 0.0
      %v1383 = vmax.f32 %v1301, 0.0
      %v1384 = vmax.f32 %v1306, 0.0
      %v1385 = vmax.f32 %v1311, 0.0
      %v1386 = vmax.f32 %v1316, 0.0
      %v1387 = vmax.f32 %v1321, 0.0
      %v1388 = vmax.f32 %v1326, 0.0
      %v1389 = vmax.f32 %v1331, 0.0
      %v1390 = vmax.f32 %v1336, 0.0
      %v1391 = vmax.f32 %v1341, 0.0
      %v1392 = vmax.f32 %v1346, 0.0
      %v1393 = vmax.f32 %v1351, 0.0
      %v1394 = vmax.f32 %v1356, 0.0
      %v1395 = vmax.f32 %v1361, 0.0
      %v1396 = vld [vmem:[%s8] sm:$0xff]
      %v1397 = vld [vmem:[%s8 + $0x8] sm:$0xff]
      %v1398 = vld [vmem:[%s8 + $0x10] sm:$0xff]
      %v1399 = vld [vmem:[%s8 + $0x18] sm:$0xff]
      %v1400 = vld [vmem:[%s9] sm:$0x1]
      %v1402 = vlaneseq
      %v1403 = vshrl.u32 %v1402, 7
      %v1404 = vsub.s32 0, %v1403
      %v1405 = vrot.slane %v1400, %v1404
      %v1408 = vsel %vm1042, %v1364, 0
      %v1411 = vsel %vm1042, %v1365, 0
      %v1414 = vsel %vm1042, %v1366, 0
      %v1417 = vsel %vm1042, %v1367, 0
      %v1420 = vsel %vm1042, %v1368, 0
      %v1423 = vsel %vm1042, %v1369, 0
      %v1426 = vsel %vm1042, %v1370, 0
      %v1429 = vsel %vm1042, %v1371, 0
      %v1432 = vsel %vm1042, %v1372, 0
      %v1435 = vsel %vm1042, %v1373, 0
      %v1438 = vsel %vm1042, %v1374, 0
      %v1441 = vsel %vm1042, %v1375, 0
      %v1444 = vsel %vm1042, %v1376, 0
      %v1447 = vsel %vm1042, %v1377, 0
      %v1450 = vsel %vm1042, %v1378, 0
      %v1453 = vsel %vm1042, %v1379, 0
      %v1456 = vsel %vm1042, %v1380, 0
      %v1459 = vsel %vm1042, %v1381, 0
      %v1462 = vsel %vm1042, %v1382, 0
      %v1465 = vsel %vm1042, %v1383, 0
      %v1468 = vsel %vm1042, %v1384, 0
      %v1471 = vsel %vm1042, %v1385, 0
      %v1474 = vsel %vm1042, %v1386, 0
      %v1477 = vsel %vm1042, %v1387, 0
      %v1480 = vsel %vm1042, %v1388, 0
      %v1483 = vsel %vm1042, %v1389, 0
      %v1486 = vsel %vm1042, %v1390, 0
      %v1489 = vsel %vm1042, %v1391, 0
      %v1492 = vsel %vm1042, %v1392, 0
      %v1495 = vsel %vm1042, %v1393, 0
      %v1498 = vsel %vm1042, %v1394, 0
      %v1501 = vsel %vm1042, %v1395, 0
      %1503 = vmatprep.subr.mxu0 0.0
      %1504 = vmatpush1.msra.mxu0 0.0
      %1505 = vmatprep.subr.mxu0 0.0
      %1506 = vmatpush1.msra.mxu0 0.0
      %1507 = vmatprep.subr.mxu0 0.0
      %1508 = vmatpush1.msra.mxu0 0.0
      %1509 = vmatprep.subr.mxu0 0.0
      %1510 = vmatpush1.msra.mxu0 0.0
      %1511 = vmatprep.subr.mxu0 0.0
      %1512 = vmatpush1.msra.mxu0 0.0
      %1513 = vmatprep.subr.mxu0 0.0
      %1514 = vmatpush1.msra.mxu0 0.0
      %1515 = vmatprep.subr.mxu0 0.0
      %1516 = vmatpush1.msra.mxu0 0.0
      %1517 = vmatprep.subr.mxu0 0.0
      %1518 = vmatpush1.msra.mxu0 0.0
      %1519 = vmatprep.subr.mxu0 0.0
      %1520 = vmatpush1.msra.mxu0 0.0
      %1521 = vmatprep.subr.mxu0 0.0
      %1522 = vmatpush1.msra.mxu0 0.0
      %1523 = vmatprep.subr.mxu0 0.0
      %1524 = vmatpush1.msra.mxu0 0.0
      %1525 = vmatprep.subr.mxu0 0.0
      %1526 = vmatpush1.msra.mxu0 0.0
      %1527 = vmatprep.subr.mxu0 0.0
      %1528 = vmatpush1.msra.mxu0 %v1399
      %1529 = vmatprep.subr.mxu0 0.0
      %1530 = vmatpush1.msra.mxu0 %v1398
      %1531 = vmatprep.subr.mxu0 0.0
      %1532 = vmatpush1.msra.mxu0 %v1397
      %1533 = vmatprep.subr.mxu0 0.0
      %1534 = vmatpush1.msra.mxu0 %v1396
      %1535 = vmatprep.subr.mxu0 0.0
      %1536 = vmatpush2.msra.mxu0 0.0
      %1537 = vmatprep.subr.mxu0 0.0
      %1538 = vmatpush2.msra.mxu0 0.0
      %1539 = vmatprep.subr.mxu0 0.0
      %1540 = vmatpush2.msra.mxu0 0.0
      %1541 = vmatprep.subr.mxu0 0.0
      %1542 = vmatpush2.msra.mxu0 0.0
      %1543 = vmatprep.subr.mxu0 0.0
      %1544 = vmatpush2.msra.mxu0 0.0
      %1545 = vmatprep.subr.mxu0 0.0
      %1546 = vmatpush2.msra.mxu0 0.0
      %1547 = vmatprep.subr.mxu0 0.0
      %1548 = vmatpush2.msra.mxu0 0.0
      %1549 = vmatprep.subr.mxu0 0.0
      %1550 = vmatpush2.msra.mxu0 0.0
      %1551 = vmatprep.subr.mxu0 0.0
      %1552 = vmatpush2.msra.mxu0 0.0
      %1553 = vmatprep.subr.mxu0 0.0
      %1554 = vmatpush2.msra.mxu0 0.0
      %1555 = vmatprep.subr.mxu0 0.0
      %1556 = vmatpush2.msra.mxu0 0.0
      %1557 = vmatprep.subr.mxu0 0.0
      %1558 = vmatpush2.msra.mxu0 0.0
      %1559 = vmatprep.subr.mxu0 0.0
      %1560 = vmatpush2.msra.mxu0 0.0
      %1561 = vmatprep.subr.mxu0 0.0
      %1562 = vmatpush2.msra.mxu0 0.0
      %1563 = vmatprep.subr.mxu0 0.0
      %1564 = vmatpush2.msra.mxu0 0.0
      %1565 = vmatprep.subr.mxu0 0.0
      %1566 = vmatpush2.msra.mxu0 0.0
      %1567 = vmatprep.mubr.f32.mxu0 0.0
      %1568 = vmatmul.mubr.f32.gmra.mxu0 %v1408
      %v1569 = vpop.f32.mrf.mxu0
      %v1570 = vadd.f32 %v1405, %v1569
      %v1571 = vpop.f32.mrf.mxu0
      %1572 = vmatprep.mubr.f32.mxu0 0.0
      %1573 = vmatmul.mubr.f32.gmra.mxu0 %v1411
      %v1574 = vpop.f32.mrf.mxu0
      %v1575 = vadd.f32 %v1405, %v1574
      %v1576 = vpop.f32.mrf.mxu0
      %1577 = vmatprep.mubr.f32.mxu0 0.0
      %1578 = vmatmul.mubr.f32.gmra.mxu0 %v1414
      %v1579 = vpop.f32.mrf.mxu0
      %v1580 = vadd.f32 %v1405, %v1579
      %v1581 = vpop.f32.mrf.mxu0
      %1582 = vmatprep.mubr.f32.mxu0 0.0
      %1583 = vmatmul.mubr.f32.gmra.mxu0 %v1417
      %v1584 = vpop.f32.mrf.mxu0
      %v1585 = vadd.f32 %v1405, %v1584
      %v1586 = vpop.f32.mrf.mxu0
      %1587 = vmatprep.mubr.f32.mxu0 0.0
      %1588 = vmatmul.mubr.f32.gmra.mxu0 %v1420
      %v1589 = vpop.f32.mrf.mxu0
      %v1590 = vadd.f32 %v1405, %v1589
      %v1591 = vpop.f32.mrf.mxu0
      %1592 = vmatprep.mubr.f32.mxu0 0.0
      %1593 = vmatmul.mubr.f32.gmra.mxu0 %v1423
      %v1594 = vpop.f32.mrf.mxu0
      %v1595 = vadd.f32 %v1405, %v1594
      %v1596 = vpop.f32.mrf.mxu0
      %1597 = vmatprep.mubr.f32.mxu0 0.0
      %1598 = vmatmul.mubr.f32.gmra.mxu0 %v1426
      %v1599 = vpop.f32.mrf.mxu0
      %v1600 = vadd.f32 %v1405, %v1599
      %v1601 = vpop.f32.mrf.mxu0
      %1602 = vmatprep.mubr.f32.mxu0 0.0
      %1603 = vmatmul.mubr.f32.gmra.mxu0 %v1429
      %v1604 = vpop.f32.mrf.mxu0
      %v1605 = vadd.f32 %v1405, %v1604
      %v1606 = vpop.f32.mrf.mxu0
      %1607 = vmatprep.mubr.f32.mxu0 0.0
      %1608 = vmatmul.mubr.f32.gmra.mxu0 %v1432
      %v1609 = vpop.f32.mrf.mxu0
      %v1610 = vadd.f32 %v1405, %v1609
      %v1611 = vpop.f32.mrf.mxu0
      %1612 = vmatprep.mubr.f32.mxu0 0.0
      %1613 = vmatmul.mubr.f32.gmra.mxu0 %v1435
      %v1614 = vpop.f32.mrf.mxu0
      %v1615 = vadd.f32 %v1405, %v1614
      %v1616 = vpop.f32.mrf.mxu0
      %1617 = vmatprep.mubr.f32.mxu0 0.0
      %1618 = vmatmul.mubr.f32.gmra.mxu0 %v1438
      %v1619 = vpop.f32.mrf.mxu0
      %v1620 = vadd.f32 %v1405, %v1619
      %v1621 = vpop.f32.mrf.mxu0
      %1622 = vmatprep.mubr.f32.mxu0 0.0
      %1623 = vmatmul.mubr.f32.gmra.mxu0 %v1441
      %v1624 = vpop.f32.mrf.mxu0
      %v1625 = vadd.f32 %v1405, %v1624
      %v1626 = vpop.f32.mrf.mxu0
      %1627 = vmatprep.mubr.f32.mxu0 0.0
      %1628 = vmatmul.mubr.f32.gmra.mxu0 %v1444
      %v1629 = vpop.f32.mrf.mxu0
      %v1630 = vadd.f32 %v1405, %v1629
      %v1631 = vpop.f32.mrf.mxu0
      %1632 = vmatprep.mubr.f32.mxu0 0.0
      %1633 = vmatmul.mubr.f32.gmra.mxu0 %v1447
      %v1634 = vpop.f32.mrf.mxu0
      %v1635 = vadd.f32 %v1405, %v1634
      %v1636 = vpop.f32.mrf.mxu0
      %1637 = vmatprep.mubr.f32.mxu0 0.0
      %1638 = vmatmul.mubr.f32.gmra.mxu0 %v1450
      %v1639 = vpop.f32.mrf.mxu0
      %v1640 = vadd.f32 %v1405, %v1639
      %v1641 = vpop.f32.mrf.mxu0
      %1642 = vmatprep.mubr.f32.mxu0 0.0
      %1643 = vmatmul.mubr.f32.gmra.mxu0 %v1453
      %v1644 = vpop.f32.mrf.mxu0
      %v1645 = vadd.f32 %v1405, %v1644
      %v1646 = vpop.f32.mrf.mxu0
      %1647 = vmatprep.mubr.f32.mxu0 0.0
      %1648 = vmatmul.mubr.f32.gmra.mxu0 %v1456
      %v1649 = vpop.f32.mrf.mxu0
      %v1650 = vadd.f32 %v1405, %v1649
      %v1651 = vpop.f32.mrf.mxu0
      %1652 = vmatprep.mubr.f32.mxu0 0.0
      %1653 = vmatmul.mubr.f32.gmra.mxu0 %v1459
      %v1654 = vpop.f32.mrf.mxu0
      %v1655 = vadd.f32 %v1405, %v1654
      %v1656 = vpop.f32.mrf.mxu0
      %1657 = vmatprep.mubr.f32.mxu0 0.0
      %1658 = vmatmul.mubr.f32.gmra.mxu0 %v1462
      %v1659 = vpop.f32.mrf.mxu0
      %v1660 = vadd.f32 %v1405, %v1659
      %v1661 = vpop.f32.mrf.mxu0
      %1662 = vmatprep.mubr.f32.mxu0 0.0
      %1663 = vmatmul.mubr.f32.gmra.mxu0 %v1465
      %v1664 = vpop.f32.mrf.mxu0
      %v1665 = vadd.f32 %v1405, %v1664
      %v1666 = vpop.f32.mrf.mxu0
      %1667 = vmatprep.mubr.f32.mxu0 0.0
      %1668 = vmatmul.mubr.f32.gmra.mxu0 %v1468
      %v1669 = vpop.f32.mrf.mxu0
      %v1670 = vadd.f32 %v1405, %v1669
      %v1671 = vpop.f32.mrf.mxu0
      %1672 = vmatprep.mubr.f32.mxu0 0.0
      %1673 = vmatmul.mubr.f32.gmra.mxu0 %v1471
      %v1674 = vpop.f32.mrf.mxu0
      %v1675 = vadd.f32 %v1405, %v1674
      %v1676 = vpop.f32.mrf.mxu0
      %1677 = vmatprep.mubr.f32.mxu0 0.0
      %1678 = vmatmul.mubr.f32.gmra.mxu0 %v1474
      %v1679 = vpop.f32.mrf.mxu0
      %v1680 = vadd.f32 %v1405, %v1679
      %v1681 = vpop.f32.mrf.mxu0
      %1682 = vmatprep.mubr.f32.mxu0 0.0
      %1683 = vmatmul.mubr.f32.gmra.mxu0 %v1477
      %v1684 = vpop.f32.mrf.mxu0
      %v1685 = vadd.f32 %v1405, %v1684
      %v1686 = vpop.f32.mrf.mxu0
      %1687 = vmatprep.mubr.f32.mxu0 0.0
      %1688 = vmatmul.mubr.f32.gmra.mxu0 %v1480
      %v1689 = vpop.f32.mrf.mxu0
      %v1690 = vadd.f32 %v1405, %v1689
      %v1691 = vpop.f32.mrf.mxu0
      %1692 = vmatprep.mubr.f32.mxu0 0.0
      %1693 = vmatmul.mubr.f32.gmra.mxu0 %v1483
      %v1694 = vpop.f32.mrf.mxu0
      %v1695 = vadd.f32 %v1405, %v1694
      %v1696 = vpop.f32.mrf.mxu0
      %1697 = vmatprep.mubr.f32.mxu0 0.0
      %1698 = vmatmul.mubr.f32.gmra.mxu0 %v1486
      %v1699 = vpop.f32.mrf.mxu0
      %v1700 = vadd.f32 %v1405, %v1699
      %v1701 = vpop.f32.mrf.mxu0
      %1702 = vmatprep.mubr.f32.mxu0 0.0
      %1703 = vmatmul.mubr.f32.gmra.mxu0 %v1489
      %v1704 = vpop.f32.mrf.mxu0
      %v1705 = vadd.f32 %v1405, %v1704
      %v1706 = vpop.f32.mrf.mxu0
      %1707 = vmatprep.mubr.f32.mxu0 0.0
      %1708 = vmatmul.mubr.f32.gmra.mxu0 %v1492
      %v1709 = vpop.f32.mrf.mxu0
      %v1710 = vadd.f32 %v1405, %v1709
      %v1711 = vpop.f32.mrf.mxu0
      %1712 = vmatprep.mubr.f32.mxu0 0.0
      %1713 = vmatmul.mubr.f32.gmra.mxu0 %v1495
      %v1714 = vpop.f32.mrf.mxu0
      %v1715 = vadd.f32 %v1405, %v1714
      %v1716 = vpop.f32.mrf.mxu0
      %1717 = vmatprep.mubr.f32.mxu0 0.0
      %1718 = vmatmul.mubr.f32.gmra.mxu0 %v1498
      %v1719 = vpop.f32.mrf.mxu0
      %v1720 = vadd.f32 %v1405, %v1719
      %v1721 = vpop.f32.mrf.mxu0
      %1722 = vmatprep.mubr.f32.mxu0 0.0
      %1723 = vmatmul.mubr.f32.gmra.mxu0 %v1501
      %v1724 = vpop.f32.mrf.mxu0
      %v1725 = vadd.f32 %v1405, %v1724
      %v1726 = vpop.f32.mrf.mxu0
      %1727 = vdwg.mxu0
      %v1728 = vld [vmem:[%s10] sm:$0xff]
      %v1729 = vld [vmem:[%s10 + $0x8] sm:$0xff]
      %v1730 = vld [vmem:[%s10 + $0x10] sm:$0xff]
      %v1731 = vld [vmem:[%s10 + $0x18] sm:$0xff]
      %v1732 = vld [vmem:[%s11] sm:$0x1]
      %v1734 = vlaneseq
      %v1735 = vshrl.u32 %v1734, 7
      %v1736 = vsub.s32 0, %v1735
      %v1737 = vrot.slane %v1732, %v1736
      %1739 = vmatprep.subr.mxu0 0.0
      %1740 = vmatpush1.msra.mxu0 0.0
      %1741 = vmatprep.subr.mxu0 0.0
      %1742 = vmatpush1.msra.mxu0 0.0
      %1743 = vmatprep.subr.mxu0 0.0
      %1744 = vmatpush1.msra.mxu0 0.0
      %1745 = vmatprep.subr.mxu0 0.0
      %1746 = vmatpush1.msra.mxu0 0.0
      %1747 = vmatprep.subr.mxu0 0.0
      %1748 = vmatpush1.msra.mxu0 0.0
      %1749 = vmatprep.subr.mxu0 0.0
      %1750 = vmatpush1.msra.mxu0 0.0
      %1751 = vmatprep.subr.mxu0 0.0
      %1752 = vmatpush1.msra.mxu0 0.0
      %1753 = vmatprep.subr.mxu0 0.0
      %1754 = vmatpush1.msra.mxu0 0.0
      %1755 = vmatprep.subr.mxu0 0.0
      %1756 = vmatpush1.msra.mxu0 0.0
      %1757 = vmatprep.subr.mxu0 0.0
      %1758 = vmatpush1.msra.mxu0 0.0
      %1759 = vmatprep.subr.mxu0 0.0
      %1760 = vmatpush1.msra.mxu0 0.0
      %1761 = vmatprep.subr.mxu0 0.0
      %1762 = vmatpush1.msra.mxu0 0.0
      %1763 = vmatprep.subr.mxu0 0.0
      %1764 = vmatpush1.msra.mxu0 %v1731
      %1765 = vmatprep.subr.mxu0 0.0
      %1766 = vmatpush1.msra.mxu0 %v1730
      %1767 = vmatprep.subr.mxu0 0.0
      %1768 = vmatpush1.msra.mxu0 %v1729
      %1769 = vmatprep.subr.mxu0 0.0
      %1770 = vmatpush1.msra.mxu0 %v1728
      %1771 = vmatprep.subr.mxu0 0.0
      %1772 = vmatpush2.msra.mxu0 0.0
      %1773 = vmatprep.subr.mxu0 0.0
      %1774 = vmatpush2.msra.mxu0 0.0
      %1775 = vmatprep.subr.mxu0 0.0
      %1776 = vmatpush2.msra.mxu0 0.0
      %1777 = vmatprep.subr.mxu0 0.0
      %1778 = vmatpush2.msra.mxu0 0.0
      %1779 = vmatprep.subr.mxu0 0.0
      %1780 = vmatpush2.msra.mxu0 0.0
      %1781 = vmatprep.subr.mxu0 0.0
      %1782 = vmatpush2.msra.mxu0 0.0
      %1783 = vmatprep.subr.mxu0 0.0
      %1784 = vmatpush2.msra.mxu0 0.0
      %1785 = vmatprep.subr.mxu0 0.0
      %1786 = vmatpush2.msra.mxu0 0.0
      %1787 = vmatprep.subr.mxu0 0.0
      %1788 = vmatpush2.msra.mxu0 0.0
      %1789 = vmatprep.subr.mxu0 0.0
      %1790 = vmatpush2.msra.mxu0 0.0
      %1791 = vmatprep.subr.mxu0 0.0
      %1792 = vmatpush2.msra.mxu0 0.0
      %1793 = vmatprep.subr.mxu0 0.0
      %1794 = vmatpush2.msra.mxu0 0.0
      %1795 = vmatprep.subr.mxu0 0.0
      %1796 = vmatpush2.msra.mxu0 0.0
      %1797 = vmatprep.subr.mxu0 0.0
      %1798 = vmatpush2.msra.mxu0 0.0
      %1799 = vmatprep.subr.mxu0 0.0
      %1800 = vmatpush2.msra.mxu0 0.0
      %1801 = vmatprep.subr.mxu0 0.0
      %1802 = vmatpush2.msra.mxu0 0.0
      %1803 = vmatprep.mubr.f32.mxu0 0.0
      %1804 = vmatmul.mubr.f32.gmra.mxu0 %v1408
      %v1805 = vpop.f32.mrf.mxu0
      %v1806 = vadd.f32 %v1737, %v1805
      %v1807 = vpop.f32.mrf.mxu0
      %1808 = vmatprep.mubr.f32.mxu0 0.0
      %1809 = vmatmul.mubr.f32.gmra.mxu0 %v1411
      %v1810 = vpop.f32.mrf.mxu0
      %v1811 = vadd.f32 %v1737, %v1810
      %v1812 = vpop.f32.mrf.mxu0
      %1813 = vmatprep.mubr.f32.mxu0 0.0
      %1814 = vmatmul.mubr.f32.gmra.mxu0 %v1414
      %v1815 = vpop.f32.mrf.mxu0
      %v1816 = vadd.f32 %v1737, %v1815
      %v1817 = vpop.f32.mrf.mxu0
      %1818 = vmatprep.mubr.f32.mxu0 0.0
      %1819 = vmatmul.mubr.f32.gmra.mxu0 %v1417
      %v1820 = vpop.f32.mrf.mxu0
      %v1821 = vadd.f32 %v1737, %v1820
      %v1822 = vpop.f32.mrf.mxu0
      %1823 = vmatprep.mubr.f32.mxu0 0.0
      %1824 = vmatmul.mubr.f32.gmra.mxu0 %v1420
      %v1825 = vpop.f32.mrf.mxu0
      %v1826 = vadd.f32 %v1737, %v1825
      %v1827 = vpop.f32.mrf.mxu0
      %1828 = vmatprep.mubr.f32.mxu0 0.0
      %1829 = vmatmul.mubr.f32.gmra.mxu0 %v1423
      %v1830 = vpop.f32.mrf.mxu0
      %v1831 = vadd.f32 %v1737, %v1830
      %v1832 = vpop.f32.mrf.mxu0
      %1833 = vmatprep.mubr.f32.mxu0 0.0
      %1834 = vmatmul.mubr.f32.gmra.mxu0 %v1426
      %v1835 = vpop.f32.mrf.mxu0
      %v1836 = vadd.f32 %v1737, %v1835
      %v1837 = vpop.f32.mrf.mxu0
      %1838 = vmatprep.mubr.f32.mxu0 0.0
      %1839 = vmatmul.mubr.f32.gmra.mxu0 %v1429
      %v1840 = vpop.f32.mrf.mxu0
      %v1841 = vadd.f32 %v1737, %v1840
      %v1842 = vpop.f32.mrf.mxu0
      %1843 = vmatprep.mubr.f32.mxu0 0.0
      %1844 = vmatmul.mubr.f32.gmra.mxu0 %v1432
      %v1845 = vpop.f32.mrf.mxu0
      %v1846 = vadd.f32 %v1737, %v1845
      %v1847 = vpop.f32.mrf.mxu0
      %1848 = vmatprep.mubr.f32.mxu0 0.0
      %1849 = vmatmul.mubr.f32.gmra.mxu0 %v1435
      %v1850 = vpop.f32.mrf.mxu0
      %v1851 = vadd.f32 %v1737, %v1850
      %v1852 = vpop.f32.mrf.mxu0
      %1853 = vmatprep.mubr.f32.mxu0 0.0
      %1854 = vmatmul.mubr.f32.gmra.mxu0 %v1438
      %v1855 = vpop.f32.mrf.mxu0
      %v1856 = vadd.f32 %v1737, %v1855
      %v1857 = vpop.f32.mrf.mxu0
      %1858 = vmatprep.mubr.f32.mxu0 0.0
      %1859 = vmatmul.mubr.f32.gmra.mxu0 %v1441
      %v1860 = vpop.f32.mrf.mxu0
      %v1861 = vadd.f32 %v1737, %v1860
      %v1862 = vpop.f32.mrf.mxu0
      %1863 = vmatprep.mubr.f32.mxu0 0.0
      %1864 = vmatmul.mubr.f32.gmra.mxu0 %v1444
      %v1865 = vpop.f32.mrf.mxu0
      %v1866 = vadd.f32 %v1737, %v1865
      %v1867 = vpop.f32.mrf.mxu0
      %1868 = vmatprep.mubr.f32.mxu0 0.0
      %1869 = vmatmul.mubr.f32.gmra.mxu0 %v1447
      %v1870 = vpop.f32.mrf.mxu0
      %v1871 = vadd.f32 %v1737, %v1870
      %v1872 = vpop.f32.mrf.mxu0
      %1873 = vmatprep.mubr.f32.mxu0 0.0
      %1874 = vmatmul.mubr.f32.gmra.mxu0 %v1450
      %v1875 = vpop.f32.mrf.mxu0
      %v1876 = vadd.f32 %v1737, %v1875
      %v1877 = vpop.f32.mrf.mxu0
      %1878 = vmatprep.mubr.f32.mxu0 0.0
      %1879 = vmatmul.mubr.f32.gmra.mxu0 %v1453
      %v1880 = vpop.f32.mrf.mxu0
      %v1881 = vadd.f32 %v1737, %v1880
      %v1882 = vpop.f32.mrf.mxu0
      %1883 = vmatprep.mubr.f32.mxu0 0.0
      %1884 = vmatmul.mubr.f32.gmra.mxu0 %v1456
      %v1885 = vpop.f32.mrf.mxu0
      %v1886 = vadd.f32 %v1737, %v1885
      %v1887 = vpop.f32.mrf.mxu0
      %1888 = vmatprep.mubr.f32.mxu0 0.0
      %1889 = vmatmul.mubr.f32.gmra.mxu0 %v1459
      %v1890 = vpop.f32.mrf.mxu0
      %v1891 = vadd.f32 %v1737, %v1890
      %v1892 = vpop.f32.mrf.mxu0
      %1893 = vmatprep.mubr.f32.mxu0 0.0
      %1894 = vmatmul.mubr.f32.gmra.mxu0 %v1462
      %v1895 = vpop.f32.mrf.mxu0
      %v1896 = vadd.f32 %v1737, %v1895
      %v1897 = vpop.f32.mrf.mxu0
      %1898 = vmatprep.mubr.f32.mxu0 0.0
      %1899 = vmatmul.mubr.f32.gmra.mxu0 %v1465
      %v1900 = vpop.f32.mrf.mxu0
      %v1901 = vadd.f32 %v1737, %v1900
      %v1902 = vpop.f32.mrf.mxu0
      %1903 = vmatprep.mubr.f32.mxu0 0.0
      %1904 = vmatmul.mubr.f32.gmra.mxu0 %v1468
      %v1905 = vpop.f32.mrf.mxu0
      %v1906 = vadd.f32 %v1737, %v1905
      %v1907 = vpop.f32.mrf.mxu0
      %1908 = vmatprep.mubr.f32.mxu0 0.0
      %1909 = vmatmul.mubr.f32.gmra.mxu0 %v1471
      %v1910 = vpop.f32.mrf.mxu0
      %v1911 = vadd.f32 %v1737, %v1910
      %v1912 = vpop.f32.mrf.mxu0
      %1913 = vmatprep.mubr.f32.mxu0 0.0
      %1914 = vmatmul.mubr.f32.gmra.mxu0 %v1474
      %v1915 = vpop.f32.mrf.mxu0
      %v1916 = vadd.f32 %v1737, %v1915
      %v1917 = vpop.f32.mrf.mxu0
      %1918 = vmatprep.mubr.f32.mxu0 0.0
      %1919 = vmatmul.mubr.f32.gmra.mxu0 %v1477
      %v1920 = vpop.f32.mrf.mxu0
      %v1921 = vadd.f32 %v1737, %v1920
      %v1922 = vpop.f32.mrf.mxu0
      %1923 = vmatprep.mubr.f32.mxu0 0.0
      %1924 = vmatmul.mubr.f32.gmra.mxu0 %v1480
      %v1925 = vpop.f32.mrf.mxu0
      %v1926 = vadd.f32 %v1737, %v1925
      %v1927 = vpop.f32.mrf.mxu0
      %1928 = vmatprep.mubr.f32.mxu0 0.0
      %1929 = vmatmul.mubr.f32.gmra.mxu0 %v1483
      %v1930 = vpop.f32.mrf.mxu0
      %v1931 = vadd.f32 %v1737, %v1930
      %v1932 = vpop.f32.mrf.mxu0
      %1933 = vmatprep.mubr.f32.mxu0 0.0
      %1934 = vmatmul.mubr.f32.gmra.mxu0 %v1486
      %v1935 = vpop.f32.mrf.mxu0
      %v1936 = vadd.f32 %v1737, %v1935
      %v1937 = vpop.f32.mrf.mxu0
      %1938 = vmatprep.mubr.f32.mxu0 0.0
      %1939 = vmatmul.mubr.f32.gmra.mxu0 %v1489
      %v1940 = vpop.f32.mrf.mxu0
      %v1941 = vadd.f32 %v1737, %v1940
      %v1942 = vpop.f32.mrf.mxu0
      %1943 = vmatprep.mubr.f32.mxu0 0.0
      %1944 = vmatmul.mubr.f32.gmra.mxu0 %v1492
      %v1945 = vpop.f32.mrf.mxu0
      %v1946 = vadd.f32 %v1737, %v1945
      %v1947 = vpop.f32.mrf.mxu0
      %1948 = vmatprep.mubr.f32.mxu0 0.0
      %1949 = vmatmul.mubr.f32.gmra.mxu0 %v1495
      %v1950 = vpop.f32.mrf.mxu0
      %v1951 = vadd.f32 %v1737, %v1950
      %v1952 = vpop.f32.mrf.mxu0
      %1953 = vmatprep.mubr.f32.mxu0 0.0
      %1954 = vmatmul.mubr.f32.gmra.mxu0 %v1498
      %v1955 = vpop.f32.mrf.mxu0
      %v1956 = vadd.f32 %v1737, %v1955
      %v1957 = vpop.f32.mrf.mxu0
      %1958 = vmatprep.mubr.f32.mxu0 0.0
      %1959 = vmatmul.mubr.f32.gmra.mxu0 %v1501
      %v1960 = vpop.f32.mrf.mxu0
      %v1961 = vadd.f32 %v1737, %v1960
      %v1962 = vpop.f32.mrf.mxu0
      %1963 = vdwg.mxu0
      %v1964 = vsub.f32 %v632, %v1570
      %v1965 = vsub.f32 %v633, %v1575
      %v1966 = vsub.f32 %v634, %v1580
      %v1967 = vsub.f32 %v635, %v1585
      %v1968 = vsub.f32 %v636, %v1590
      %v1969 = vsub.f32 %v637, %v1595
      %v1970 = vsub.f32 %v638, %v1600
      %v1971 = vsub.f32 %v639, %v1605
      %v1972 = vsub.f32 %v640, %v1610
      %v1973 = vsub.f32 %v641, %v1615
      %v1974 = vsub.f32 %v642, %v1620
      %v1975 = vsub.f32 %v643, %v1625
      %v1976 = vsub.f32 %v644, %v1630
      %v1977 = vsub.f32 %v645, %v1635
      %v1978 = vsub.f32 %v646, %v1640
      %v1979 = vsub.f32 %v647, %v1645
      %v1980 = vsub.f32 %v648, %v1650
      %v1981 = vsub.f32 %v649, %v1655
      %v1982 = vsub.f32 %v650, %v1660
      %v1983 = vsub.f32 %v651, %v1665
      %v1984 = vsub.f32 %v652, %v1670
      %v1985 = vsub.f32 %v653, %v1675
      %v1986 = vsub.f32 %v654, %v1680
      %v1987 = vsub.f32 %v655, %v1685
      %v1988 = vsub.f32 %v656, %v1690
      %v1989 = vsub.f32 %v657, %v1695
      %v1990 = vsub.f32 %v658, %v1700
      %v1991 = vsub.f32 %v659, %v1705
      %v1992 = vsub.f32 %v660, %v1710
      %v1993 = vsub.f32 %v661, %v1715
      %v1994 = vsub.f32 %v662, %v1720
      %v1995 = vsub.f32 %v663, %v1725
      %v1996 = vsub.f32 0.0, %v1806
      %v1997 = vsub.f32 0.0, %v1811
      %v1998 = vsub.f32 0.0, %v1816
      %v1999 = vsub.f32 0.0, %v1821
      %v2000 = vsub.f32 0.0, %v1826
      %v2001 = vsub.f32 0.0, %v1831
      %v2002 = vsub.f32 0.0, %v1836
      %v2003 = vsub.f32 0.0, %v1841
      %v2004 = vsub.f32 0.0, %v1846
      %v2005 = vsub.f32 0.0, %v1851
      %v2006 = vsub.f32 0.0, %v1856
      %v2007 = vsub.f32 0.0, %v1861
      %v2008 = vsub.f32 0.0, %v1866
      %v2009 = vsub.f32 0.0, %v1871
      %v2010 = vsub.f32 0.0, %v1876
      %v2011 = vsub.f32 0.0, %v1881
      %v2012 = vsub.f32 0.0, %v1886
      %v2013 = vsub.f32 0.0, %v1891
      %v2014 = vsub.f32 0.0, %v1896
      %v2015 = vsub.f32 0.0, %v1901
      %v2016 = vsub.f32 0.0, %v1906
      %v2017 = vsub.f32 0.0, %v1911
      %v2018 = vsub.f32 0.0, %v1916
      %v2019 = vsub.f32 0.0, %v1921
      %v2020 = vsub.f32 0.0, %v1926
      %v2021 = vsub.f32 0.0, %v1931
      %v2022 = vsub.f32 0.0, %v1936
      %v2023 = vsub.f32 0.0, %v1941
      %v2024 = vsub.f32 0.0, %v1946
      %v2025 = vsub.f32 0.0, %v1951
      %v2026 = vsub.f32 0.0, %v1956
      %v2027 = vsub.f32 0.0, %v1961
      %v2028 = vmul.f32 %v1996, 1.442695
      %v2029 = vpow.pop %v2028
      %v2030 = vmul.f32 %v1997, 1.442695
      %v2031 = vpow.pop %v2030
      %v2032 = vmul.f32 %v1998, 1.442695
      %v2033 = vpow.pop %v2032
      %v2034 = vmul.f32 %v1999, 1.442695
      %v2035 = vpow.pop %v2034
      %v2036 = vmul.f32 %v2000, 1.442695
      %v2037 = vpow.pop %v2036
      %v2038 = vmul.f32 %v2001, 1.442695
      %v2039 = vpow.pop %v2038
      %v2040 = vmul.f32 %v2002, 1.442695
      %v2041 = vpow.pop %v2040
      %v2042 = vmul.f32 %v2003, 1.442695
      %v2043 = vpow.pop %v2042
      %v2044 = vmul.f32 %v2004, 1.442695
      %v2045 = vpow.pop %v2044
      %v2046 = vmul.f32 %v2005, 1.442695
      %v2047 = vpow.pop %v2046
      %v2048 = vmul.f32 %v2006, 1.442695
      %v2049 = vpow.pop %v2048
      %v2050 = vmul.f32 %v2007, 1.442695
      %v2051 = vpow.pop %v2050
      %v2052 = vmul.f32 %v2008, 1.442695
      %v2053 = vpow.pop %v2052
      %v2054 = vmul.f32 %v2009, 1.442695
      %v2055 = vpow.pop %v2054
      %v2056 = vmul.f32 %v2010, 1.442695
      %v2057 = vpow.pop %v2056
      %v2058 = vmul.f32 %v2011, 1.442695
      %v2059 = vpow.pop %v2058
      %v2060 = vmul.f32 %v2012, 1.442695
      %v2061 = vpow.pop %v2060
      %v2062 = vmul.f32 %v2013, 1.442695
      %v2063 = vpow.pop %v2062
      %v2064 = vmul.f32 %v2014, 1.442695
      %v2065 = vpow.pop %v2064
      %v2066 = vmul.f32 %v2015, 1.442695
      %v2067 = vpow.pop %v2066
      %v2068 = vmul.f32 %v2016, 1.442695
      %v2069 = vpow.pop %v2068
      %v2070 = vmul.f32 %v2017, 1.442695
      %v2071 = vpow.pop %v2070
      %v2072 = vmul.f32 %v2018, 1.442695
      %v2073 = vpow.pop %v2072
      %v2074 = vmul.f32 %v2019, 1.442695
      %v2075 = vpow.pop %v2074
      %v2076 = vmul.f32 %v2020, 1.442695
      %v2077 = vpow.pop %v2076
      %v2078 = vmul.f32 %v2021, 1.442695
      %v2079 = vpow.pop %v2078
      %v2080 = vmul.f32 %v2022, 1.442695
      %v2081 = vpow.pop %v2080
      %v2082 = vmul.f32 %v2023, 1.442695
      %v2083 = vpow.pop %v2082
      %v2084 = vmul.f32 %v2024, 1.442695
      %v2085 = vpow.pop %v2084
      %v2086 = vmul.f32 %v2025, 1.442695
      %v2087 = vpow.pop %v2086
      %v2088 = vmul.f32 %v2026, 1.442695
      %v2089 = vpow.pop %v2088
      %v2090 = vmul.f32 %v2027, 1.442695
      %v2091 = vpow.pop %v2090
      %v2092 = vmul.f32 %v1964, %v2029
      %v2093 = vmul.f32 %v1965, %v2031
      %v2094 = vmul.f32 %v1966, %v2033
      %v2095 = vmul.f32 %v1967, %v2035
      %v2096 = vmul.f32 %v1968, %v2037
      %v2097 = vmul.f32 %v1969, %v2039
      %v2098 = vmul.f32 %v1970, %v2041
      %v2099 = vmul.f32 %v1971, %v2043
      %v2100 = vmul.f32 %v1972, %v2045
      %v2101 = vmul.f32 %v1973, %v2047
      %v2102 = vmul.f32 %v1974, %v2049
      %v2103 = vmul.f32 %v1975, %v2051
      %v2104 = vmul.f32 %v1976, %v2053
      %v2105 = vmul.f32 %v1977, %v2055
      %v2106 = vmul.f32 %v1978, %v2057
      %v2107 = vmul.f32 %v1979, %v2059
      %v2108 = vmul.f32 %v1980, %v2061
      %v2109 = vmul.f32 %v1981, %v2063
      %v2110 = vmul.f32 %v1982, %v2065
      %v2111 = vmul.f32 %v1983, %v2067
      %v2112 = vmul.f32 %v1984, %v2069
      %v2113 = vmul.f32 %v1985, %v2071
      %v2114 = vmul.f32 %v1986, %v2073
      %v2115 = vmul.f32 %v1987, %v2075
      %v2116 = vmul.f32 %v1988, %v2077
      %v2117 = vmul.f32 %v1989, %v2079
      %v2118 = vmul.f32 %v1990, %v2081
      %v2119 = vmul.f32 %v1991, %v2083
      %v2120 = vmul.f32 %v1992, %v2085
      %v2121 = vmul.f32 %v1993, %v2087
      %v2122 = vmul.f32 %v1994, %v2089
      %v2123 = vmul.f32 %v1995, %v2091
      %2124 = vst.msk [vmem:[%s538] sm:$0xff] %vm673, %v632
      %2125 = vst.msk [vmem:[%s538 + $0x8] sm:$0xff] %vm673, %v633
      %2126 = vst.msk [vmem:[%s538 + $0x10] sm:$0xff] %vm673, %v634
      %2127 = vst.msk [vmem:[%s538 + $0x18] sm:$0xff] %vm673, %v635
      %2128 = vst.msk [vmem:[%s538 + $0x20] sm:$0xff] %vm673, %v636
      %2129 = vst.msk [vmem:[%s538 + $0x28] sm:$0xff] %vm673, %v637
      %2130 = vst.msk [vmem:[%s538 + $0x30] sm:$0xff] %vm673, %v638
      %2131 = vst.msk [vmem:[%s538 + $0x38] sm:$0xff] %vm673, %v639
      %2132 = vst.msk [vmem:[%s538 + $0x40] sm:$0xff] %vm673, %v640
      %2133 = vst.msk [vmem:[%s538 + $0x48] sm:$0xff] %vm673, %v641
      %2134 = vst.msk [vmem:[%s538 + $0x50] sm:$0xff] %vm673, %v642
      %2135 = vst.msk [vmem:[%s538 + $0x58] sm:$0xff] %vm673, %v643
      %2136 = vst.msk [vmem:[%s538 + $0x60] sm:$0xff] %vm673, %v644
      %2137 = vst.msk [vmem:[%s538 + $0x68] sm:$0xff] %vm673, %v645
      %2138 = vst.msk [vmem:[%s538 + $0x70] sm:$0xff] %vm673, %v646
      %2139 = vst.msk [vmem:[%s538 + $0x78] sm:$0xff] %vm673, %v647
      %2140 = vst.msk [vmem:[%s538 + $0x80] sm:$0xff] %vm673, %v648
      %2141 = vst.msk [vmem:[%s538 + $0x88] sm:$0xff] %vm673, %v649
      %2142 = vst.msk [vmem:[%s538 + $0x90] sm:$0xff] %vm673, %v650
      %2143 = vst.msk [vmem:[%s538 + $0x98] sm:$0xff] %vm673, %v651
      %2144 = vst.msk [vmem:[%s538 + $0xa0] sm:$0xff] %vm673, %v652
      %2145 = vst.msk [vmem:[%s538 + $0xa8] sm:$0xff] %vm673, %v653
      %2146 = vst.msk [vmem:[%s538 + $0xb0] sm:$0xff] %vm673, %v654
      %2147 = vst.msk [vmem:[%s538 + $0xb8] sm:$0xff] %vm673, %v655
      %2148 = vst.msk [vmem:[%s538 + $0xc0] sm:$0xff] %vm673, %v656
      %2149 = vst.msk [vmem:[%s538 + $0xc8] sm:$0xff] %vm673, %v657
      %2150 = vst.msk [vmem:[%s538 + $0xd0] sm:$0xff] %vm673, %v658
      %2151 = vst.msk [vmem:[%s538 + $0xd8] sm:$0xff] %vm673, %v659
      %2152 = vst.msk [vmem:[%s538 + $0xe0] sm:$0xff] %vm673, %v660
      %2153 = vst.msk [vmem:[%s538 + $0xe8] sm:$0xff] %vm673, %v661
      %2154 = vst.msk [vmem:[%s538 + $0xf0] sm:$0xff] %vm673, %v662
      %2155 = vst.msk [vmem:[%s538 + $0xf8] sm:$0xff] %vm673, %v663
      %vm2156 = vcmask 31744
      %2157 = vst.msk [vmem:[%s538] sm:$0xff] %vm2156, %v2092
      %2158 = vst.msk [vmem:[%s538 + $0x8] sm:$0xff] %vm2156, %v2093
      %2159 = vst.msk [vmem:[%s538 + $0x10] sm:$0xff] %vm2156, %v2094
      %2160 = vst.msk [vmem:[%s538 + $0x18] sm:$0xff] %vm2156, %v2095
      %2161 = vst.msk [vmem:[%s538 + $0x20] sm:$0xff] %vm2156, %v2096
      %2162 = vst.msk [vmem:[%s538 + $0x28] sm:$0xff] %vm2156, %v2097
      %2163 = vst.msk [vmem:[%s538 + $0x30] sm:$0xff] %vm2156, %v2098
      %2164 = vst.msk [vmem:[%s538 + $0x38] sm:$0xff] %vm2156, %v2099
      %2165 = vst.msk [vmem:[%s538 + $0x40] sm:$0xff] %vm2156, %v2100
      %2166 = vst.msk [vmem:[%s538 + $0x48] sm:$0xff] %vm2156, %v2101
      %2167 = vst.msk [vmem:[%s538 + $0x50] sm:$0xff] %vm2156, %v2102
      %2168 = vst.msk [vmem:[%s538 + $0x58] sm:$0xff] %vm2156, %v2103
      %2169 = vst.msk [vmem:[%s538 + $0x60] sm:$0xff] %vm2156, %v2104
      %2170 = vst.msk [vmem:[%s538 + $0x68] sm:$0xff] %vm2156, %v2105
      %2171 = vst.msk [vmem:[%s538 + $0x70] sm:$0xff] %vm2156, %v2106
      %2172 = vst.msk [vmem:[%s538 + $0x78] sm:$0xff] %vm2156, %v2107
      %2173 = vst.msk [vmem:[%s538 + $0x80] sm:$0xff] %vm2156, %v2108
      %2174 = vst.msk [vmem:[%s538 + $0x88] sm:$0xff] %vm2156, %v2109
      %2175 = vst.msk [vmem:[%s538 + $0x90] sm:$0xff] %vm2156, %v2110
      %2176 = vst.msk [vmem:[%s538 + $0x98] sm:$0xff] %vm2156, %v2111
      %2177 = vst.msk [vmem:[%s538 + $0xa0] sm:$0xff] %vm2156, %v2112
      %2178 = vst.msk [vmem:[%s538 + $0xa8] sm:$0xff] %vm2156, %v2113
      %2179 = vst.msk [vmem:[%s538 + $0xb0] sm:$0xff] %vm2156, %v2114
      %2180 = vst.msk [vmem:[%s538 + $0xb8] sm:$0xff] %vm2156, %v2115
      %2181 = vst.msk [vmem:[%s538 + $0xc0] sm:$0xff] %vm2156, %v2116
      %2182 = vst.msk [vmem:[%s538 + $0xc8] sm:$0xff] %vm2156, %v2117
      %2183 = vst.msk [vmem:[%s538 + $0xd0] sm:$0xff] %vm2156, %v2118
      %2184 = vst.msk [vmem:[%s538 + $0xd8] sm:$0xff] %vm2156, %v2119
      %2185 = vst.msk [vmem:[%s538 + $0xe0] sm:$0xff] %vm2156, %v2120
      %2186 = vst.msk [vmem:[%s538 + $0xe8] sm:$0xff] %vm2156, %v2121
      %2187 = vst.msk [vmem:[%s538 + $0xf0] sm:$0xff] %vm2156, %v2122
      %2188 = vst.msk [vmem:[%s538 + $0xf8] sm:$0xff] %vm2156, %v2123
      %v2189 = vld [vmem:[%s532] sm:$0xff]
      %v2190 = vld [vmem:[%s532 + $0x8] sm:$0xff]
      %v2191 = vld [vmem:[%s532 + $0x10] sm:$0xff]
      %v2192 = vld [vmem:[%s532 + $0x18] sm:$0xff]
      %v2193 = vld [vmem:[%s532 + $0x20] sm:$0xff]
      %v2194 = vld [vmem:[%s532 + $0x28] sm:$0xff]
      %v2195 = vld [vmem:[%s532 + $0x30] sm:$0xff]
      %v2196 = vld [vmem:[%s532 + $0x38] sm:$0xff]
      %v2197 = vld [vmem:[%s532 + $0x40] sm:$0xff]
      %v2198 = vld [vmem:[%s532 + $0x48] sm:$0xff]
      %v2199 = vld [vmem:[%s532 + $0x50] sm:$0xff]
      %v2200 = vld [vmem:[%s532 + $0x58] sm:$0xff]
      %v2201 = vld [vmem:[%s532 + $0x60] sm:$0xff]
      %v2202 = vld [vmem:[%s532 + $0x68] sm:$0xff]
      %v2203 = vld [vmem:[%s532 + $0x70] sm:$0xff]
      %v2204 = vld [vmem:[%s532 + $0x78] sm:$0xff]
      %v2205 = vld [vmem:[%s532 + $0x80] sm:$0xff]
      %v2206 = vld [vmem:[%s532 + $0x88] sm:$0xff]
      %v2207 = vld [vmem:[%s532 + $0x90] sm:$0xff]
      %v2208 = vld [vmem:[%s532 + $0x98] sm:$0xff]
      %v2209 = vld [vmem:[%s532 + $0xa0] sm:$0xff]
      %v2210 = vld [vmem:[%s532 + $0xa8] sm:$0xff]
      %v2211 = vld [vmem:[%s532 + $0xb0] sm:$0xff]
      %v2212 = vld [vmem:[%s532 + $0xb8] sm:$0xff]
      %v2213 = vld [vmem:[%s532 + $0xc0] sm:$0xff]
      %v2214 = vld [vmem:[%s532 + $0xc8] sm:$0xff]
      %v2215 = vld [vmem:[%s532 + $0xd0] sm:$0xff]
      %v2216 = vld [vmem:[%s532 + $0xd8] sm:$0xff]
      %v2217 = vld [vmem:[%s532 + $0xe0] sm:$0xff]
      %v2218 = vld [vmem:[%s532 + $0xe8] sm:$0xff]
      %v2219 = vld [vmem:[%s532 + $0xf0] sm:$0xff]
      %v2220 = vld [vmem:[%s532 + $0xf8] sm:$0xff]
      %v2221 = vsub.f32 %v2189, %v1806
      %v2222 = vsub.f32 %v2190, %v1811
      %v2223 = vsub.f32 %v2191, %v1816
      %v2224 = vsub.f32 %v2192, %v1821
      %v2225 = vsub.f32 %v2193, %v1826
      %v2226 = vsub.f32 %v2194, %v1831
      %v2227 = vsub.f32 %v2195, %v1836
      %v2228 = vsub.f32 %v2196, %v1841
      %v2229 = vsub.f32 %v2197, %v1846
      %v2230 = vsub.f32 %v2198, %v1851
      %v2231 = vsub.f32 %v2199, %v1856
      %v2232 = vsub.f32 %v2200, %v1861
      %v2233 = vsub.f32 %v2201, %v1866
      %v2234 = vsub.f32 %v2202, %v1871
      %v2235 = vsub.f32 %v2203, %v1876
      %v2236 = vsub.f32 %v2204, %v1881
      %v2237 = vsub.f32 %v2205, %v1886
      %v2238 = vsub.f32 %v2206, %v1891
      %v2239 = vsub.f32 %v2207, %v1896
      %v2240 = vsub.f32 %v2208, %v1901
      %v2241 = vsub.f32 %v2209, %v1906
      %v2242 = vsub.f32 %v2210, %v1911
      %v2243 = vsub.f32 %v2211, %v1916
      %v2244 = vsub.f32 %v2212, %v1921
      %v2245 = vsub.f32 %v2213, %v1926
      %v2246 = vsub.f32 %v2214, %v1931
      %v2247 = vsub.f32 %v2215, %v1936
      %v2248 = vsub.f32 %v2216, %v1941
      %v2249 = vsub.f32 %v2217, %v1946
      %v2250 = vsub.f32 %v2218, %v1951
      %v2251 = vsub.f32 %v2219, %v1956
      %v2252 = vsub.f32 %v2220, %v1961
      %2253 = vst.msk [vmem:[%s544] sm:$0xff] %vm2156, %v2221
      %2254 = vst.msk [vmem:[%s544 + $0x8] sm:$0xff] %vm2156, %v2222
      %2255 = vst.msk [vmem:[%s544 + $0x10] sm:$0xff] %vm2156, %v2223
      %2256 = vst.msk [vmem:[%s544 + $0x18] sm:$0xff] %vm2156, %v2224
      %2257 = vst.msk [vmem:[%s544 + $0x20] sm:$0xff] %vm2156, %v2225
      %2258 = vst.msk [vmem:[%s544 + $0x28] sm:$0xff] %vm2156, %v2226
      %2259 = vst.msk [vmem:[%s544 + $0x30] sm:$0xff] %vm2156, %v2227
      %2260 = vst.msk [vmem:[%s544 + $0x38] sm:$0xff] %vm2156, %v2228
      %2261 = vst.msk [vmem:[%s544 + $0x40] sm:$0xff] %vm2156, %v2229
      %2262 = vst.msk [vmem:[%s544 + $0x48] sm:$0xff] %vm2156, %v2230
      %2263 = vst.msk [vmem:[%s544 + $0x50] sm:$0xff] %vm2156, %v2231
      %2264 = vst.msk [vmem:[%s544 + $0x58] sm:$0xff] %vm2156, %v2232
      %2265 = vst.msk [vmem:[%s544 + $0x60] sm:$0xff] %vm2156, %v2233
      %2266 = vst.msk [vmem:[%s544 + $0x68] sm:$0xff] %vm2156, %v2234
      %2267 = vst.msk [vmem:[%s544 + $0x70] sm:$0xff] %vm2156, %v2235
      %2268 = vst.msk [vmem:[%s544 + $0x78] sm:$0xff] %vm2156, %v2236
      %2269 = vst.msk [vmem:[%s544 + $0x80] sm:$0xff] %vm2156, %v2237
      %2270 = vst.msk [vmem:[%s544 + $0x88] sm:$0xff] %vm2156, %v2238
      %2271 = vst.msk [vmem:[%s544 + $0x90] sm:$0xff] %vm2156, %v2239
      %2272 = vst.msk [vmem:[%s544 + $0x98] sm:$0xff] %vm2156, %v2240
      %2273 = vst.msk [vmem:[%s544 + $0xa0] sm:$0xff] %vm2156, %v2241
      %2274 = vst.msk [vmem:[%s544 + $0xa8] sm:$0xff] %vm2156, %v2242
      %2275 = vst.msk [vmem:[%s544 + $0xb0] sm:$0xff] %vm2156, %v2243
      %2276 = vst.msk [vmem:[%s544 + $0xb8] sm:$0xff] %vm2156, %v2244
      %2277 = vst.msk [vmem:[%s544 + $0xc0] sm:$0xff] %vm2156, %v2245
      %2278 = vst.msk [vmem:[%s544 + $0xc8] sm:$0xff] %vm2156, %v2246
      %2279 = vst.msk [vmem:[%s544 + $0xd0] sm:$0xff] %vm2156, %v2247
      %2280 = vst.msk [vmem:[%s544 + $0xd8] sm:$0xff] %vm2156, %v2248
      %2281 = vst.msk [vmem:[%s544 + $0xe0] sm:$0xff] %vm2156, %v2249
      %2282 = vst.msk [vmem:[%s544 + $0xe8] sm:$0xff] %vm2156, %v2250
      %2283 = vst.msk [vmem:[%s544 + $0xf0] sm:$0xff] %vm2156, %v2251
      %2284 = vst.msk [vmem:[%s544 + $0xf8] sm:$0xff] %vm2156, %v2252
      %v2285 = vsel %vm2156, %v2092, 0.0
      %v2286 = vsel %vm2156, %v2093, 0.0
      %v2287 = vadd.f32 %v2285, %v2286
      %v2288 = vsel %vm2156, %v2094, 0.0
      %v2289 = vadd.f32 %v2287, %v2288
      %v2290 = vsel %vm2156, %v2095, 0.0
      %v2291 = vadd.f32 %v2289, %v2290
      %v2292 = vsel %vm2156, %v2096, 0.0
      %v2293 = vadd.f32 %v2291, %v2292
      %v2294 = vsel %vm2156, %v2097, 0.0
      %v2295 = vadd.f32 %v2293, %v2294
      %v2296 = vsel %vm2156, %v2098, 0.0
      %v2297 = vadd.f32 %v2295, %v2296
      %v2298 = vsel %vm2156, %v2099, 0.0
      %v2299 = vadd.f32 %v2297, %v2298
      %v2300 = vsel %vm2156, %v2100, 0.0
      %v2301 = vadd.f32 %v2299, %v2300
      %v2302 = vsel %vm2156, %v2101, 0.0
      %v2303 = vadd.f32 %v2301, %v2302
      %v2304 = vsel %vm2156, %v2102, 0.0
      %v2305 = vadd.f32 %v2303, %v2304
      %v2306 = vsel %vm2156, %v2103, 0.0
      %v2307 = vadd.f32 %v2305, %v2306
      %v2308 = vsel %vm2156, %v2104, 0.0
      %v2309 = vadd.f32 %v2307, %v2308
      %v2310 = vsel %vm2156, %v2105, 0.0
      %v2311 = vadd.f32 %v2309, %v2310
      %v2312 = vsel %vm2156, %v2106, 0.0
      %v2313 = vadd.f32 %v2311, %v2312
      %v2314 = vsel %vm2156, %v2107, 0.0
      %v2315 = vadd.f32 %v2313, %v2314
      %v2316 = vsel %vm2156, %v2108, 0.0
      %v2317 = vadd.f32 %v2315, %v2316
      %v2318 = vsel %vm2156, %v2109, 0.0
      %v2319 = vadd.f32 %v2317, %v2318
      %v2320 = vsel %vm2156, %v2110, 0.0
      %v2321 = vadd.f32 %v2319, %v2320
      %v2322 = vsel %vm2156, %v2111, 0.0
      %v2323 = vadd.f32 %v2321, %v2322
      %v2324 = vsel %vm2156, %v2112, 0.0
      %v2325 = vadd.f32 %v2323, %v2324
      %v2326 = vsel %vm2156, %v2113, 0.0
      %v2327 = vadd.f32 %v2325, %v2326
      %v2328 = vsel %vm2156, %v2114, 0.0
      %v2329 = vadd.f32 %v2327, %v2328
      %v2330 = vsel %vm2156, %v2115, 0.0
      %v2331 = vadd.f32 %v2329, %v2330
      %v2332 = vsel %vm2156, %v2116, 0.0
      %v2333 = vadd.f32 %v2331, %v2332
      %v2334 = vsel %vm2156, %v2117, 0.0
      %v2335 = vadd.f32 %v2333, %v2334
      %v2336 = vsel %vm2156, %v2118, 0.0
      %v2337 = vadd.f32 %v2335, %v2336
      %v2338 = vsel %vm2156, %v2119, 0.0
      %v2339 = vadd.f32 %v2337, %v2338
      %v2340 = vsel %vm2156, %v2120, 0.0
      %v2341 = vadd.f32 %v2339, %v2340
      %v2342 = vsel %vm2156, %v2121, 0.0
      %v2343 = vadd.f32 %v2341, %v2342
      %v2344 = vsel %vm2156, %v2122, 0.0
      %v2345 = vadd.f32 %v2343, %v2344
      %v2346 = vsel %vm2156, %v2123, 0.0
      %v2347 = vadd.f32 %v2345, %v2346
      %v2348 = vrot.slane %v2347, 4
      %v2349 = vadd.f32 %v2347, %v2348
      %v2350 = vrot.slane %v2349, 2
      %v2351 = vadd.f32 %v2349, %v2350
      %v2352 = vrot.slane %v2351, 1
      %v2353 = vadd.f32 %v2351, %v2352
      %v2354 = vmul.f32 %v2353, 0.00390625
      %v2355 = vsub.f32 %v2092, %v2354
      %v2356 = vsub.f32 %v2093, %v2354
      %v2357 = vsub.f32 %v2094, %v2354
      %v2358 = vsub.f32 %v2095, %v2354
      %v2359 = vsub.f32 %v2096, %v2354
      %v2360 = vsub.f32 %v2097, %v2354
      %v2361 = vsub.f32 %v2098, %v2354
      %v2362 = vsub.f32 %v2099, %v2354
      %v2363 = vsub.f32 %v2100, %v2354
      %v2364 = vsub.f32 %v2101, %v2354
      %v2365 = vsub.f32 %v2102, %v2354
      %v2366 = vsub.f32 %v2103, %v2354
      %v2367 = vsub.f32 %v2104, %v2354
      %v2368 = vsub.f32 %v2105, %v2354
      %v2369 = vsub.f32 %v2106, %v2354
      %v2370 = vsub.f32 %v2107, %v2354
      %v2371 = vsub.f32 %v2108, %v2354
      %v2372 = vsub.f32 %v2109, %v2354
      %v2373 = vsub.f32 %v2110, %v2354
      %v2374 = vsub.f32 %v2111, %v2354
      %v2375 = vsub.f32 %v2112, %v2354
      %v2376 = vsub.f32 %v2113, %v2354
      %v2377 = vsub.f32 %v2114, %v2354
      %v2378 = vsub.f32 %v2115, %v2354
      %v2379 = vsub.f32 %v2116, %v2354
      %v2380 = vsub.f32 %v2117, %v2354
      %v2381 = vsub.f32 %v2118, %v2354
      %v2382 = vsub.f32 %v2119, %v2354
      %v2383 = vsub.f32 %v2120, %v2354
      %v2384 = vsub.f32 %v2121, %v2354
      %v2385 = vsub.f32 %v2122, %v2354
      %v2386 = vsub.f32 %v2123, %v2354
      %v2387 = vmul.f32 %v2355, %v2355
      %v2388 = vmul.f32 %v2356, %v2356
      %v2389 = vmul.f32 %v2357, %v2357
      %v2390 = vmul.f32 %v2358, %v2358
      %v2391 = vmul.f32 %v2359, %v2359
      %v2392 = vmul.f32 %v2360, %v2360
      %v2393 = vmul.f32 %v2361, %v2361
      %v2394 = vmul.f32 %v2362, %v2362
      %v2395 = vmul.f32 %v2363, %v2363
      %v2396 = vmul.f32 %v2364, %v2364
      %v2397 = vmul.f32 %v2365, %v2365
      %v2398 = vmul.f32 %v2366, %v2366
      %v2399 = vmul.f32 %v2367, %v2367
      %v2400 = vmul.f32 %v2368, %v2368
      %v2401 = vmul.f32 %v2369, %v2369
      %v2402 = vmul.f32 %v2370, %v2370
      %v2403 = vmul.f32 %v2371, %v2371
      %v2404 = vmul.f32 %v2372, %v2372
      %v2405 = vmul.f32 %v2373, %v2373
      %v2406 = vmul.f32 %v2374, %v2374
      %v2407 = vmul.f32 %v2375, %v2375
      %v2408 = vmul.f32 %v2376, %v2376
      %v2409 = vmul.f32 %v2377, %v2377
      %v2410 = vmul.f32 %v2378, %v2378
      %v2411 = vmul.f32 %v2379, %v2379
      %v2412 = vmul.f32 %v2380, %v2380
      %v2413 = vmul.f32 %v2381, %v2381
      %v2414 = vmul.f32 %v2382, %v2382
      %v2415 = vmul.f32 %v2383, %v2383
      %v2416 = vmul.f32 %v2384, %v2384
      %v2417 = vmul.f32 %v2385, %v2385
      %v2418 = vmul.f32 %v2386, %v2386
      %v2419 = vsel %vm2156, %v2387, 0.0
      %v2420 = vsel %vm2156, %v2388, 0.0
      %v2421 = vadd.f32 %v2419, %v2420
      %v2422 = vsel %vm2156, %v2389, 0.0
      %v2423 = vadd.f32 %v2421, %v2422
      %v2424 = vsel %vm2156, %v2390, 0.0
      %v2425 = vadd.f32 %v2423, %v2424
      %v2426 = vsel %vm2156, %v2391, 0.0
      %v2427 = vadd.f32 %v2425, %v2426
      %v2428 = vsel %vm2156, %v2392, 0.0
      %v2429 = vadd.f32 %v2427, %v2428
      %v2430 = vsel %vm2156, %v2393, 0.0
      %v2431 = vadd.f32 %v2429, %v2430
      %v2432 = vsel %vm2156, %v2394, 0.0
      %v2433 = vadd.f32 %v2431, %v2432
      %v2434 = vsel %vm2156, %v2395, 0.0
      %v2435 = vadd.f32 %v2433, %v2434
      %v2436 = vsel %vm2156, %v2396, 0.0
      %v2437 = vadd.f32 %v2435, %v2436
      %v2438 = vsel %vm2156, %v2397, 0.0
      %v2439 = vadd.f32 %v2437, %v2438
      %v2440 = vsel %vm2156, %v2398, 0.0
      %v2441 = vadd.f32 %v2439, %v2440
      %v2442 = vsel %vm2156, %v2399, 0.0
      %v2443 = vadd.f32 %v2441, %v2442
      %v2444 = vsel %vm2156, %v2400, 0.0
      %v2445 = vadd.f32 %v2443, %v2444
      %v2446 = vsel %vm2156, %v2401, 0.0
      %v2447 = vadd.f32 %v2445, %v2446
      %v2448 = vsel %vm2156, %v2402, 0.0
      %v2449 = vadd.f32 %v2447, %v2448
      %v2450 = vsel %vm2156, %v2403, 0.0
      %v2451 = vadd.f32 %v2449, %v2450
      %v2452 = vsel %vm2156, %v2404, 0.0
      %v2453 = vadd.f32 %v2451, %v2452
      %v2454 = vsel %vm2156, %v2405, 0.0
      %v2455 = vadd.f32 %v2453, %v2454
      %v2456 = vsel %vm2156, %v2406, 0.0
      %v2457 = vadd.f32 %v2455, %v2456
      %v2458 = vsel %vm2156, %v2407, 0.0
      %v2459 = vadd.f32 %v2457, %v2458
      %v2460 = vsel %vm2156, %v2408, 0.0
      %v2461 = vadd.f32 %v2459, %v2460
      %v2462 = vsel %vm2156, %v2409, 0.0
      %v2463 = vadd.f32 %v2461, %v2462
      %v2464 = vsel %vm2156, %v2410, 0.0
      %v2465 = vadd.f32 %v2463, %v2464
      %v2466 = vsel %vm2156, %v2411, 0.0
      %v2467 = vadd.f32 %v2465, %v2466
      %v2468 = vsel %vm2156, %v2412, 0.0
      %v2469 = vadd.f32 %v2467, %v2468
      %v2470 = vsel %vm2156, %v2413, 0.0
      %v2471 = vadd.f32 %v2469, %v2470
      %v2472 = vsel %vm2156, %v2414, 0.0
      %v2473 = vadd.f32 %v2471, %v2472
      %v2474 = vsel %vm2156, %v2415, 0.0
      %v2475 = vadd.f32 %v2473, %v2474
      %v2476 = vsel %vm2156, %v2416, 0.0
      %v2477 = vadd.f32 %v2475, %v2476
      %v2478 = vsel %vm2156, %v2417, 0.0
      %v2479 = vadd.f32 %v2477, %v2478
      %v2480 = vsel %vm2156, %v2418, 0.0
      %v2481 = vadd.f32 %v2479, %v2480
      %v2482 = vrot.slane %v2481, 4
      %v2483 = vadd.f32 %v2481, %v2482
      %v2484 = vrot.slane %v2483, 2
      %v2485 = vadd.f32 %v2483, %v2484
      %v2486 = vrot.slane %v2485, 1
      %v2487 = vadd.f32 %v2485, %v2486
      %2488 = vst.msk [vmem:[%s549] sm:$0xff] %vm2156, %v2353
      %2489 = vst.msk [vmem:[%s553] sm:$0xff] %vm2156, %v2487
      %s2490 = smul.u32 32, %s27
      %p2491 = scmp.lt.s32.totalorder %s2490, 63
      %s2492 = scalar_select %p2491, %s2490, 63
      %s2493 = smul.addr %s2492, 8
      %s2494 = scalar_lea.vmem %s12, %s2493
      %s2495 = smul.u32 32, %s27
      %p2496 = scmp.lt.s32.totalorder %s2495, 63
      %s2497 = scalar_select %p2496, %s2495, 63
      %s2498 = smul.addr %s2497, 8
      %s2499 = scalar_lea.vmem %s13, %s2498
      %p2500 = scmp.lt.s32.totalorder %s27, 1
      %s2501 = scalar_select %p2500, %s27, 1
      %s2502 = smul.addr %s2501, 8
      %s2503 = scalar_lea.vmem %s14, %s2502
      %p2504 = scmp.lt.s32.totalorder %s27, 1
      %s2505 = scalar_select %p2504, %s27, 1
      %s2506 = smul.addr %s2505, 8
      %s2507 = scalar_lea.vmem %s15, %s2506
      // Predicated region
      $region69: #{maf_forward.3} parent=67 // pred_check
        %p2508 = pneg %p307
      $region70: #{maf_forward.3} parent=67 // pred_check_branch
        %2510 = sbr.rel (%p2508) target = $region72
      $region71: #{maf_forward.3} parent=67 // pred_region
        %s2511 = smul.u32 32, %s27
      $region72: #{maf_forward.3} parent=67 // pred_fallthru
        _
      // Predicated region
      $region73: #{maf_forward.3} parent=67 // pred_check
        %p2512 = pneg %p333
      $region74: #{maf_forward.3} parent=67 // pred_check_branch
        %2514 = sbr.rel (%p2512) target = $region76
      $region75: #{maf_forward.3} parent=67 // pred_region
        %s2515 = smul.u32 32, %s27
      $region76: #{maf_forward.3} parent=67 // pred_fallthru
        _
      // Predicated region
      $region77: #{maf_forward.3} parent=67 // pred_check
        %p2516 = pneg %p359
      $region78: #{maf_forward.3} parent=67 // pred_check_branch
        %2518 = sbr.rel (%p2516) target = $region80
      $region79: #{maf_forward.3} parent=67 // pred_region
        _
      $region80: #{maf_forward.3} parent=67 // pred_fallthru
        _
      // Predicated region
      $region81: #{maf_forward.3} parent=67 // pred_check
        %p2519 = pneg %p385
      $region82: #{maf_forward.3} parent=67 // pred_check_branch
        %2521 = sbr.rel (%p2519) target = $region84
      $region83: #{maf_forward.3} parent=67 // pred_region
        _
      $region84: #{maf_forward.3} parent=67 // pred_fallthru
        _
    $region68: #{maf_forward.3} parent=5 // pred_fallthru
      _
    %p2522 = scmp.le.s32.totalorder 2, %s22
    // Predicated region
    $region85: #{maf_forward.3} parent=5 // pred_check
      %p2523 = pneg %p2522
    $region86: #{maf_forward.3} parent=5 // pred_check_branch
      %2525 = sbr.rel (%p2523) target = $region88
    $region87: #{maf_forward.3} parent=5 // pred_region
      %s2526 = ssub.s32 %s22, 2
      // Predicated region
      $region89: #{maf_forward.3} parent=87 // pred_check
        %p2527 = pneg %p313
      $region90: #{maf_forward.3} parent=87 // pred_check_branch
        %2529 = sbr.rel (%p2527) target = $region92
      $region91: #{maf_forward.3} parent=87 // pred_region
        %s2530 = smul.u32 32, %s28
        %p2531 = scmp.lt.s32.totalorder %s2530, 63
        %s2532 = scalar_select %p2531, %s2530, 63
        %s2533 = smul.addr %s2532, 8
        %s2534 = scalar_lea.vmem %s12, %s2533
      $region92: #{maf_forward.3} parent=87 // pred_fallthru
        _
      // Predicated region
      $region93: #{maf_forward.3} parent=87 // pred_check
        %p2535 = pneg %p339
      $region94: #{maf_forward.3} parent=87 // pred_check_branch
        %2537 = sbr.rel (%p2535) target = $region96
      $region95: #{maf_forward.3} parent=87 // pred_region
        %s2538 = smul.u32 32, %s28
        %p2539 = scmp.lt.s32.totalorder %s2538, 63
        %s2540 = scalar_select %p2539, %s2538, 63
        %s2541 = smul.addr %s2540, 8
        %s2542 = scalar_lea.vmem %s13, %s2541
      $region96: #{maf_forward.3} parent=87 // pred_fallthru
        _
      // Predicated region
      $region97: #{maf_forward.3} parent=87 // pred_check
        %p2543 = pneg %p365
      $region98: #{maf_forward.3} parent=87 // pred_check_branch
        %2545 = sbr.rel (%p2543) target = $region100
      $region99: #{maf_forward.3} parent=87 // pred_region
        %p2546 = scmp.lt.s32.totalorder %s28, 1
        %s2547 = scalar_select %p2546, %s28, 1
        %s2548 = smul.addr %s2547, 8
        %s2549 = scalar_lea.vmem %s14, %s2548
      $region100: #{maf_forward.3} parent=87 // pred_fallthru
        _
      // Predicated region
      $region101: #{maf_forward.3} parent=87 // pred_check
        %p2550 = pneg %p391
      $region102: #{maf_forward.3} parent=87 // pred_check_branch
        %2552 = sbr.rel (%p2550) target = $region104
      $region103: #{maf_forward.3} parent=87 // pred_region
        %p2553 = scmp.lt.s32.totalorder %s28, 1
        %s2554 = scalar_select %p2553, %s28, 1
        %s2555 = smul.addr %s2554, 8
        %s2556 = scalar_lea.vmem %s15, %s2555
      $region104: #{maf_forward.3} parent=87 // pred_fallthru
        _
    $region88: #{maf_forward.3} parent=5 // pred_fallthru
      _
  $region6: #{maf_forward.3} parent=0 // loop_footer
    %s26 = sadd.s32 1, %s22
  $region7: #{maf_forward.3} parent=0 // loop_footer_branch
    %21 = sbr.rel target = $region3
  $region8: #{maf_forward.3} parent=0 // loop_exit
    _

</llo_original>
